<compile_context>
chip_gen: v7x
topology: tpu7x:2x2x1
jax: 0.10.0
libtpu: 0.0.40
codegen_flags: <defaults>
</compile_context>

<pallas_src>
import functools

import jax
import jax.numpy as jnp
from jax import lax
from jax.experimental import pallas as pl
from jax.experimental.pallas import tpu as pltpu

EPS = 1e-5  # torch.nn.LayerNorm default


def _layernorm(x, g, b):
    mu = jnp.mean(x, axis=-1, keepdims=True)
    var = jnp.mean((x - mu) ** 2, axis=-1, keepdims=True)
    return (x - mu) * lax.rsqrt(var + EPS) * g + b


# ----------------------------------------------------------------------------------
# Fused kernel: one grid step == one batch element.
# ----------------------------------------------------------------------------------
def _layer_kernel(x_ref, g1_ref, b1_ref, cos_ref, sa_ref, sb_ref,
                  wq_ref, wk_ref, wv_ref, wo_ref, g2_ref, b2_ref,
                  w1_ref, v1_ref, w2_ref,
                  o_ref,
                  qh_s, kh_s, vh_s, at2_s, rope_s,
                  *, H, hd, Sg, HD):
    f32 = jnp.float32
    bf16 = jnp.bfloat16

    x = x_ref[...]                                                  # (S, D) f32
    xn = _layernorm(x, g1_ref[...], b1_ref[...]).astype(bf16)

    # ---- Q/K/V projections (bf16 operands, f32 accumulation).  1/sqrt(hd) folded into wq.
    q2 = jnp.dot(xn, wq_ref[...], preferred_element_type=f32)      # (S, HD)
    k2 = jnp.dot(xn, wk_ref[...], preferred_element_type=f32)
    v2 = jnp.dot(xn, wv_ref[...], preferred_element_type=f32)

    # ---- interleaved-pair RoPE in the flat (S, HD) layout.
    # out[2i]   = x[2i]*cos - x[2i+1]*sin
    # out[2i+1] = x[2i]*sin + x[2i+1]*cos
    # The +-1 lane neighbour is obtained with offset reads from a zero-padded VMEM scratch
    # (replaces the previous P-matrix MXU matmul; wrap lanes are multiplied by zero tables).
    rope_s[...] = jnp.zeros_like(rope_s)
    cos2d = cos_ref[...]
    sinA = sa_ref[...]      # nonzero on even lanes: multiplies x[c+1]
    sinB = sb_ref[...]      # nonzero on odd  lanes: multiplies x[c-1]

    def _rope(x2, slot):
        rope_s[slot, :, 1:HD + 1] = x2
        right = rope_s[slot, :, 2:HD + 2]                           # x2[:, c+1]
        left = rope_s[slot, :, 0:HD]                                # x2[:, c-1]
        return x2 * cos2d + right * sinA + left * sinB

    q2 = _rope(q2, 0).astype(bf16)
    k2 = _rope(k2, 1).astype(bf16)
    v2 = v2.astype(bf16)

    # ---- regroup (S, HD) -> (H, S, hd), replicating torch's raw .view(B, H, S, hd).
    # Head h's data is the slab rows [h*Sg, (h+1)*Sg) of the (S, HD) tile, split into
    # hd-wide chunks.  We gather chunk-major (a pure permutation of the sequence axis).
    for h in range(H):
        r0 = h * Sg
        for p in range(H):
            c0 = p * hd
            t0 = p * Sg
            qh_s[h, t0:t0 + Sg, :] = q2[r0:r0 + Sg, c0:c0 + hd]
            kh_s[h, t0:t0 + Sg, :] = k2[r0:r0 + Sg, c0:c0 + hd]
            vh_s[h, t0:t0 + Sg, :] = v2[r0:r0 + Sg, c0:c0 + hd]

    qh = qh_s[...]                                                  # (H, S, hd) bf16
    kh = kh_s[...]
    vh = vh_s[...]

    # ---- attention (all heads batched on the MXU), softmax in f32.
    s = lax.dot_general(qh, kh, (((2,), (2,)), ((0,), (0,))),
                        preferred_element_type=f32)                 # (H, S, S)
    s = s - jnp.max(s, axis=-1, keepdims=True)
    e = jnp.exp(s)
    inv_den = pl.reciprocal(jnp.sum(e, axis=-1, keepdims=True), approx=True)
    probs = (e * inv_den).astype(bf16)
    o4 = lax.dot_general(probs, vh, (((2,), (1,)), ((0,), (0,))),
                         preferred_element_type=f32)                # (H, S, hd)
    o4 = o4.astype(bf16)

    # ---- scatter heads back to (S, HD) == torch `output.reshape(B, S, H*hd)`.
    # The chunk-major gather order cancels here (attention is permutation-equivariant).
    for h in range(H):
        r0 = h * Sg
        for p in range(H):
            at2_s[r0:r0 + Sg, p * hd:(p + 1) * hd] = o4[h, p * Sg:(p + 1) * Sg, :]

    attn2 = at2_s[...]                                              # (S, HD) bf16

    # ---- output projection + residual + LN2 + SwiGLU FFN + residual.
    h_res = x + jnp.dot(attn2, wo_ref[...], preferred_element_type=f32)   # (S, D) f32
    hn = _layernorm(h_res, g2_ref[...], b2_ref[...]).astype(bf16)
    a1 = jnp.dot(hn, w1_ref[...], preferred_element_type=f32)
    a2 = jnp.dot(hn, v1_ref[...], preferred_element_type=f32)
    ff = (a1 * jax.nn.sigmoid(a1) * a2).astype(bf16)                # SiLU(Wx) * Vx
    o_ref[...] = (h_res + jnp.dot(ff, w2_ref[...],
                                  preferred_element_type=f32)).astype(o_ref.dtype)


# ----------------------------------------------------------------------------------
# RoPE tables laid out for the flat (S, HD) projection tile (matching the torch .view).
# Element (s, c) corresponds to torch sequence position  pos = (s % Sg)*H + c//hd  and
# rotary pair (c % hd)//2.  pos == 0 (class token) is left unrotated.
# ----------------------------------------------------------------------------------
def _rope_tables_2d(S, HD, hd, H, base):
    f32 = jnp.float32
    Sg = S // H
    s_idx = jnp.arange(S)[:, None]                 # (S, 1)
    c_idx = jnp.arange(HD)[None, :]                # (1, HD)
    pos = (s_idx % Sg) * H + (c_idx // hd)         # (S, HD)
    pair = (c_idx % hd) // 2
    inv_freq = 1.0 / (base ** ((2.0 * pair.astype(f32)) / hd))
    ang = jnp.maximum(pos - 1, 0).astype(f32) * inv_freq
    is_cls = pos == 0
    cos2d = jnp.where(is_cls, 1.0, jnp.cos(ang)).astype(f32)
    sinv = jnp.where(is_cls, 0.0, jnp.sin(ang)).astype(f32)
    even = (c_idx % 2) == 0
    sinA = jnp.where(even, -sinv, 0.0).astype(f32)   # multiplies right neighbour x[c+1]
    sinB = jnp.where(even, 0.0, sinv).astype(f32)    # multiplies left  neighbour x[c-1]
    return cos2d, sinA, sinB


def transformer_layer(x, params, *, head_dim, n_heads, base=10000.0):
    B, S, D = x.shape
    hd, H = head_dim, n_heads
    HD = H * hd
    assert S % H == 0, "slab head-regrouping requires seq_len % n_heads == 0"
    assert hd % 2 == 0, "RoPE requires an even head_dim"
    Sg = S // H
    hidden = params["W"].shape[1]
    bf16 = jnp.bfloat16

    cos2d, sinA, sinB = _rope_tables_2d(S, HD, hd, H, base)

    # bf16 weights for the MXU; fold 1/sqrt(hd) into the Q projection.
    inv_scale = 1.0 / float(hd) ** 0.5
    wq = (params["wq"] * inv_scale).astype(bf16)
    wk = params["wk"].astype(bf16)
    wv = params["wv"].astype(bf16)
    wo = params["wo"].astype(bf16)
    W1 = params["W"].astype(bf16)
    V1 = params["V"].astype(bf16)
    W2 = params["W2"].astype(bf16)

    kernel = functools.partial(_layer_kernel, H=H, hd=hd, Sg=Sg, HD=HD)

    def full(shape):      # whole array, same block every grid step (stays VMEM-resident)
        return pl.BlockSpec(shape, lambda b, _s=shape: (0,) * len(_s))

    def per_b(shape):     # one batch element per grid step, batch dim squeezed
        return pl.BlockSpec((None,) + shape, lambda b, _s=shape: (b,) + (0,) * len(_s))

    out = pl.pallas_call(
        kernel,
        grid=(B,),
        in_specs=[per_b((S, D)),
                  full((1, D)), full((1, D)),
                  full((S, HD)), full((S, HD)), full((S, HD)),
                  full((D, HD)), full((D, HD)), full((D, HD)),
                  full((HD, D)),
                  full((1, D)), full((1, D)),
                  full((D, hidden)), full((D, hidden)), full((hidden, D))],
        out_specs=per_b((S, D)),
        out_shape=jax.ShapeDtypeStruct((B, S, D), jnp.float32),
        scratch_shapes=[pltpu.VMEM((H, S, hd), bf16),       # q heads (chunk-major order)
                        pltpu.VMEM((H, S, hd), bf16),       # k heads
                        pltpu.VMEM((H, S, hd), bf16),       # v heads
                        pltpu.VMEM((S, HD), bf16),          # attention output, torch layout
                        pltpu.VMEM((2, S, HD + 2), jnp.float32)],  # padded buffer for RoPE lane shift
        compiler_params=pltpu.CompilerParams(
            dimension_semantics=("parallel",),
            vmem_limit_bytes=48 * 1024 * 1024),
    )(x, params["g1"], params["b1"], cos2d, sinA, sinB,
      wq, wk, wv, wo, params["g2"], params["b2"], W1, V1, W2)
    return out


# ----------------------------------------------------------------------------------
# Pure-JAX (f32) reimplementation of the PyTorch forward pass, for verification.
# ----------------------------------------------------------------------------------
def _reference(x, params, *, head_dim, n_heads, base=10000.0):
    B, S, D = x.shape
    hd, H = head_dim, n_heads
    xn = _layernorm(x, params["g1"], params["b1"])
    q = (xn @ params["wq"]).reshape(B, H, S, hd)     # raw row-major view, as in torch
    k = (xn @ params["wk"]).reshape(B, H, S, hd)
    v = (xn @ params["wv"]).reshape(B, H, S, hd)

    inv_freq = 1.0 / base ** (jnp.arange(0, hd, 2, dtype=jnp.float32) / hd)
    t = jnp.arange(S - 1, dtype=jnp.float32)
    freqs = t[:, None] * inv_freq[None, :]           # (S-1, hd//2)
    cosf, sinf = jnp.cos(freqs), jnp.sin(freqs)

    def rope(u):
        tail = u[:, :, 1:].reshape(B, H, S - 1, hd // 2, 2)
        a, b = tail[..., 0], tail[..., 1]
        rot = jnp.stack([a * cosf - b * sinf, a * sinf + b * cosf], axis=-1)
        return jnp.concatenate([u[:, :, :1], rot.reshape(B, H, S - 1, hd)], axis=2)

    q, k = rope(q), rope(k)
    w = jax.nn.softmax(jnp.einsum("bhqd,bhkd->bhqk", q, k) / hd ** 0.5, axis=-1)
    o = jnp.einsum("bhqk,bhkd->bhqd", w, v).reshape(B, S, H * hd)
    h = x + o @ params["wo"]
    hn = _layernorm(h, params["g2"], params["b2"])
    ff = jax.nn.silu(hn @ params["W"]) * (hn @ params["V"])
    return h + ff @ params["W2"]


def init_params(key, dim, head_dim, hidden_dim, n_heads):
    HD = n_heads * head_dim
    ks = jax.random.split(key, 7)
    rnd = lambda k, shape: (0.1 * jax.random.normal(k, shape)).astype(jnp.float32)
    return dict(
        g1=jnp.ones((1, dim), jnp.float32),
        b1=jnp.zeros((1, dim), jnp.float32),
        wq=rnd(ks[0], (dim, HD)),
        wk=rnd(ks[1], (dim, HD)),
        wv=rnd(ks[2], (dim, HD)),
        wo=rnd(ks[3], (HD, dim)),
        g2=jnp.ones((1, dim), jnp.float32),
        b2=jnp.zeros((1, dim), jnp.float32),
        W=rnd(ks[4], (dim, hidden_dim)),
        V=rnd(ks[5], (dim, hidden_dim)),
        W2=rnd(ks[6], (hidden_dim, dim)),
    )


if __name__ == "__main__":
    dim, head_dim, hidden_dim, n_heads = 32, 8, 64, 4
    B, S = 2, 8

    key = jax.random.PRNGKey(0)
    kx, kp = jax.random.split(key)
    x = jax.random.normal(kx, (B, S, dim), dtype=jnp.float32)
    params = init_params(kp, dim, head_dim, hidden_dim, n_heads)

    out = transformer_layer(x, params, head_dim=head_dim, n_heads=n_heads)
    out = jax.block_until_ready(out)

    ref = _reference(x, params, head_dim=head_dim, n_heads=n_heads)
    assert out.shape == (B, S, dim), out.shape
    max_err = float(jnp.max(jnp.abs(out - ref)))
    # bf16 MXU operands + approx reciprocal -> loosened tolerance vs the f32 reference.
    assert jnp.allclose(out, ref, atol=5e-2, rtol=5e-2), f"max_err={max_err}"

    print("KERNEL_OK")
</pallas_src>

<mosaic_0001>
module attributes {stable_mosaic.version = 11 : i64} {
  func.func @_layer_kernel(%arg0: i32, %arg1: memref<1x8x32xf32, #tpu.memory_space<vmem>>, %arg2: memref<1x32xf32, #tpu.memory_space<vmem>>, %arg3: memref<1x32xf32, #tpu.memory_space<vmem>>, %arg4: memref<8x32xf32, #tpu.memory_space<vmem>>, %arg5: memref<8x32xf32, #tpu.memory_space<vmem>>, %arg6: memref<8x32xf32, #tpu.memory_space<vmem>>, %arg7: memref<32x32xbf16, #tpu.memory_space<vmem>>, %arg8: memref<32x32xbf16, #tpu.memory_space<vmem>>, %arg9: memref<32x32xbf16, #tpu.memory_space<vmem>>, %arg10: memref<32x32xbf16, #tpu.memory_space<vmem>>, %arg11: memref<1x32xf32, #tpu.memory_space<vmem>>, %arg12: memref<1x32xf32, #tpu.memory_space<vmem>>, %arg13: memref<32x64xbf16, #tpu.memory_space<vmem>>, %arg14: memref<32x64xbf16, #tpu.memory_space<vmem>>, %arg15: memref<64x32xbf16, #tpu.memory_space<vmem>>, %arg16: memref<1x8x32xf32, #tpu.memory_space<vmem>>, %arg17: memref<4x8x8xbf16, #tpu.memory_space<vmem>>, %arg18: memref<4x8x8xbf16, #tpu.memory_space<vmem>>, %arg19: memref<4x8x8xbf16, #tpu.memory_space<vmem>>, %arg20: memref<8x32xbf16, #tpu.memory_space<vmem>>, %arg21: memref<2x8x34xf32, #tpu.memory_space<vmem>>) attributes {dimension_semantics = [#tpu.dimension_semantics<parallel>], iteration_bounds = array<i64: 2>, scalar_prefetch = 0 : i64, scratch_operands = 5 : i64, tpu.core_type = #tpu.core_type<tc>, window_params = [{transform_indices = @transform_0, window_bounds = array<i64: 1, 8, 32>}, {pipeline_mode = #tpu.pipeline_mode<synchronous>, transform_indices = @transform_1, window_bounds = array<i64: 1, 32>}, {pipeline_mode = #tpu.pipeline_mode<synchronous>, transform_indices = @transform_2, window_bounds = array<i64: 1, 32>}, {pipeline_mode = #tpu.pipeline_mode<synchronous>, transform_indices = @transform_3, window_bounds = array<i64: 8, 32>}, {pipeline_mode = #tpu.pipeline_mode<synchronous>, transform_indices = @transform_4, window_bounds = array<i64: 8, 32>}, {pipeline_mode = #tpu.pipeline_mode<synchronous>, transform_indices = @transform_5, window_bounds = array<i64: 8, 32>}, {pipeline_mode = #tpu.pipeline_mode<synchronous>, transform_indices = @transform_6, window_bounds = array<i64: 32, 32>}, {pipeline_mode = #tpu.pipeline_mode<synchronous>, transform_indices = @transform_7, window_bounds = array<i64: 32, 32>}, {pipeline_mode = #tpu.pipeline_mode<synchronous>, transform_indices = @transform_8, window_bounds = array<i64: 32, 32>}, {pipeline_mode = #tpu.pipeline_mode<synchronous>, transform_indices = @transform_9, window_bounds = array<i64: 32, 32>}, {pipeline_mode = #tpu.pipeline_mode<synchronous>, transform_indices = @transform_10, window_bounds = array<i64: 1, 32>}, {pipeline_mode = #tpu.pipeline_mode<synchronous>, transform_indices = @transform_11, window_bounds = array<i64: 1, 32>}, {pipeline_mode = #tpu.pipeline_mode<synchronous>, transform_indices = @transform_12, window_bounds = array<i64: 32, 64>}, {pipeline_mode = #tpu.pipeline_mode<synchronous>, transform_indices = @transform_13, window_bounds = array<i64: 32, 64>}, {pipeline_mode = #tpu.pipeline_mode<synchronous>, transform_indices = @transform_14, window_bounds = array<i64: 64, 32>}, {transform_indices = @transform_15, window_bounds = array<i64: 1, 8, 32>}]} {
    %c0 = arith.constant 0 : index
    %c0_0 = arith.constant 0 : index
    %c0_1 = arith.constant 0 : index
    %0 = vector.load %arg1[%c0, %c0_0, %c0_1] : memref<1x8x32xf32, #tpu.memory_space<vmem>>, vector<1x8x32xf32>
    %1 = vector.shape_cast %0 : vector<1x8x32xf32> to vector<8x32xf32>
    %c0_2 = arith.constant 0 : index
    %c0_3 = arith.constant 0 : index
    %2 = vector.load %arg2[%c0_2, %c0_3] : memref<1x32xf32, #tpu.memory_space<vmem>>, vector<1x32xf32>
    %c0_4 = arith.constant 0 : index
    %c0_5 = arith.constant 0 : index
    %3 = vector.load %arg3[%c0_4, %c0_5] : memref<1x32xf32, #tpu.memory_space<vmem>>, vector<1x32xf32>
    %cst = arith.constant dense<0.000000e+00> : vector<8xf32>
    %4 = vector.multi_reduction <add>, %1, %cst [1] : vector<8x32xf32> to vector<8xf32>
    %5 = vector.shape_cast %4 : vector<8xf32> to vector<8x1xf32>
    %cst_6 = arith.constant 3.200000e+01 : f32
    %6 = vector.broadcast %cst_6 : f32 to vector<8x1xf32>
    %7 = arith.divf %5, %6 : vector<8x1xf32>
    %8 = vector.broadcast %7 : vector<8x1xf32> to vector<8x32xf32>
    %9 = arith.subf %1, %8 : vector<8x32xf32>
    %10 = arith.mulf %9, %9 : vector<8x32xf32>
    %cst_7 = arith.constant dense<0.000000e+00> : vector<8xf32>
    %11 = vector.multi_reduction <add>, %10, %cst_7 [1] : vector<8x32xf32> to vector<8xf32>
    %12 = vector.shape_cast %11 : vector<8xf32> to vector<8x1xf32>
    %cst_8 = arith.constant 3.200000e+01 : f32
    %13 = vector.broadcast %cst_8 : f32 to vector<8x1xf32>
    %14 = arith.divf %12, %13 : vector<8x1xf32>
    %15 = vector.broadcast %7 : vector<8x1xf32> to vector<8x32xf32>
    %16 = arith.subf %1, %15 : vector<8x32xf32>
    %cst_9 = arith.constant 9.99999974E-6 : f32
    %17 = vector.broadcast %cst_9 : f32 to vector<8x1xf32>
    %18 = arith.addf %14, %17 : vector<8x1xf32>
    %19 = math.rsqrt %18 : vector<8x1xf32>
    %20 = vector.broadcast %19 : vector<8x1xf32> to vector<8x32xf32>
    %21 = arith.mulf %16, %20 : vector<8x32xf32>
    %22 = vector.broadcast %2 : vector<1x32xf32> to vector<8x32xf32>
    %23 = arith.mulf %21, %22 : vector<8x32xf32>
    %24 = vector.broadcast %3 : vector<1x32xf32> to vector<8x32xf32>
    %25 = arith.addf %23, %24 : vector<8x32xf32>
    %26 = arith.truncf %25 : vector<8x32xf32> to vector<8x32xbf16>
    %c0_10 = arith.constant 0 : index
    %c0_11 = arith.constant 0 : index
    %27 = vector.load %arg7[%c0_10, %c0_11] : memref<32x32xbf16, #tpu.memory_space<vmem>>, vector<32x32xbf16>
    %cst_12 = arith.constant dense<0.000000e+00> : vector<8x32xf32>
    %28 = tpu.matmul %26, %27, %cst_12 {dimension_numbers = #tpu.dot_dimension_numbers<[1], [0], [0], [1], [0, 0, 1, 1], [], []>} : vector<8x32xbf16>, vector<32x32xbf16>, vector<8x32xf32> -> vector<8x32xf32>
    %c0_13 = arith.constant 0 : index
    %c0_14 = arith.constant 0 : index
    %29 = vector.load %arg8[%c0_13, %c0_14] : memref<32x32xbf16, #tpu.memory_space<vmem>>, vector<32x32xbf16>
    %cst_15 = arith.constant dense<0.000000e+00> : vector<8x32xf32>
    %30 = tpu.matmul %26, %29, %cst_15 {dimension_numbers = #tpu.dot_dimension_numbers<[1], [0], [0], [1], [0, 0, 1, 1], [], []>} : vector<8x32xbf16>, vector<32x32xbf16>, vector<8x32xf32> -> vector<8x32xf32>
    %c0_16 = arith.constant 0 : index
    %c0_17 = arith.constant 0 : index
    %31 = vector.load %arg9[%c0_16, %c0_17] : memref<32x32xbf16, #tpu.memory_space<vmem>>, vector<32x32xbf16>
    %cst_18 = arith.constant dense<0.000000e+00> : vector<8x32xf32>
    %32 = tpu.matmul %26, %31, %cst_18 {dimension_numbers = #tpu.dot_dimension_numbers<[1], [0], [0], [1], [0, 0, 1, 1], [], []>} : vector<8x32xbf16>, vector<32x32xbf16>, vector<8x32xf32> -> vector<8x32xf32>
    %cst_19 = arith.constant 0.000000e+00 : f32
    %33 = vector.broadcast %cst_19 : f32 to vector<2x8x34xf32>
    %c0_20 = arith.constant 0 : index
    %c0_21 = arith.constant 0 : index
    %c0_22 = arith.constant 0 : index
    %34 = vector.load %arg21[%c0_20, %c0_21, %c0_22] : memref<2x8x34xf32, #tpu.memory_space<vmem>>, vector<2x8x34xf32>
    tpu.vector_store %arg21[%c0_20, %c0_21, %c0_22], %33 {strides = array<i32>} : memref<2x8x34xf32, #tpu.memory_space<vmem>>, vector<2x8x34xf32>,
    %c0_23 = arith.constant 0 : index
    %c0_24 = arith.constant 0 : index
    %35 = vector.load %arg4[%c0_23, %c0_24] : memref<8x32xf32, #tpu.memory_space<vmem>>, vector<8x32xf32>
    %c0_25 = arith.constant 0 : index
    %c0_26 = arith.constant 0 : index
    %36 = vector.load %arg5[%c0_25, %c0_26] : memref<8x32xf32, #tpu.memory_space<vmem>>, vector<8x32xf32>
    %c0_27 = arith.constant 0 : index
    %c0_28 = arith.constant 0 : index
    %37 = vector.load %arg6[%c0_27, %c0_28] : memref<8x32xf32, #tpu.memory_space<vmem>>, vector<8x32xf32>
    %c0_29 = arith.constant 0 : index
    %c0_30 = arith.constant 0 : index
    %c1 = arith.constant 1 : index
    %38 = vector.load %arg21[%c0_29, %c0_30, %c1] : memref<2x8x34xf32, #tpu.memory_space<vmem>>, vector<1x8x32xf32>
    %39 = vector.shape_cast %38 : vector<1x8x32xf32> to vector<8x32xf32>
    %40 = vector.shape_cast %28 : vector<8x32xf32> to vector<1x8x32xf32>
    tpu.vector_store %arg21[%c0_29, %c0_30, %c1], %40 {strides = array<i32>} : memref<2x8x34xf32, #tpu.memory_space<vmem>>, vector<1x8x32xf32>,
    %c0_31 = arith.constant 0 : index
    %c0_32 = arith.constant 0 : index
    %c2 = arith.constant 2 : index
    %41 = vector.load %arg21[%c0_31, %c0_32, %c2] : memref<2x8x34xf32, #tpu.memory_space<vmem>>, vector<1x8x32xf32>
    %42 = vector.shape_cast %41 : vector<1x8x32xf32> to vector<8x32xf32>
    %c0_33 = arith.constant 0 : index
    %c0_34 = arith.constant 0 : index
    %c0_35 = arith.constant 0 : index
    %43 = vector.load %arg21[%c0_33, %c0_34, %c0_35] : memref<2x8x34xf32, #tpu.memory_space<vmem>>, vector<1x8x32xf32>
    %44 = vector.shape_cast %43 : vector<1x8x32xf32> to vector<8x32xf32>
    %45 = arith.mulf %28, %35 : vector<8x32xf32>
    %46 = arith.mulf %42, %36 : vector<8x32xf32>
    %47 = arith.addf %45, %46 : vector<8x32xf32>
    %48 = arith.mulf %44, %37 : vector<8x32xf32>
    %49 = arith.addf %47, %48 : vector<8x32xf32>
    %50 = arith.truncf %49 : vector<8x32xf32> to vector<8x32xbf16>
    %c1_36 = arith.constant 1 : index
    %c0_37 = arith.constant 0 : index
    %c1_38 = arith.constant 1 : index
    %51 = vector.load %arg21[%c1_36, %c0_37, %c1_38] : memref<2x8x34xf32, #tpu.memory_space<vmem>>, vector<1x8x32xf32>
    %52 = vector.shape_cast %51 : vector<1x8x32xf32> to vector<8x32xf32>
    %53 = vector.shape_cast %30 : vector<8x32xf32> to vector<1x8x32xf32>
    tpu.vector_store %arg21[%c1_36, %c0_37, %c1_38], %53 {strides = array<i32>} : memref<2x8x34xf32, #tpu.memory_space<vmem>>, vector<1x8x32xf32>,
    %c1_39 = arith.constant 1 : index
    %c0_40 = arith.constant 0 : index
    %c2_41 = arith.constant 2 : index
    %54 = vector.load %arg21[%c1_39, %c0_40, %c2_41] : memref<2x8x34xf32, #tpu.memory_space<vmem>>, vector<1x8x32xf32>
    %55 = vector.shape_cast %54 : vector<1x8x32xf32> to vector<8x32xf32>
    %c1_42 = arith.constant 1 : index
    %c0_43 = arith.constant 0 : index
    %c0_44 = arith.constant 0 : index
    %56 = vector.load %arg21[%c1_42, %c0_43, %c0_44] : memref<2x8x34xf32, #tpu.memory_space<vmem>>, vector<1x8x32xf32>
    %57 = vector.shape_cast %56 : vector<1x8x32xf32> to vector<8x32xf32>
    %58 = arith.mulf %30, %35 : vector<8x32xf32>
    %59 = arith.mulf %55, %36 : vector<8x32xf32>
    %60 = arith.addf %58, %59 : vector<8x32xf32>
    %61 = arith.mulf %57, %37 : vector<8x32xf32>
    %62 = arith.addf %60, %61 : vector<8x32xf32>
    %63 = arith.truncf %62 : vector<8x32xf32> to vector<8x32xbf16>
    %64 = arith.truncf %32 : vector<8x32xf32> to vector<8x32xbf16>
    %65 = vector.extract_strided_slice %50 {offsets = [0, 0], sizes = [2, 8], strides = [1, 1]} : vector<8x32xbf16> to vector<2x8xbf16>
    %c0_45 = arith.constant 0 : index
    %c0_46 = arith.constant 0 : index
    %c0_47 = arith.constant 0 : index
    %66 = vector.load %arg17[%c0_45, %c0_46, %c0_47] : memref<4x8x8xbf16, #tpu.memory_space<vmem>>, vector<1x2x8xbf16>
    %67 = vector.shape_cast %66 : vector<1x2x8xbf16> to vector<2x8xbf16>
    %68 = vector.shape_cast %65 : vector<2x8xbf16> to vector<1x2x8xbf16>
    tpu.vector_store %arg17[%c0_45, %c0_46, %c0_47], %68 {strides = array<i32>} : memref<4x8x8xbf16, #tpu.memory_space<vmem>>, vector<1x2x8xbf16>,
    %69 = vector.extract_strided_slice %63 {offsets = [0, 0], sizes = [2, 8], strides = [1, 1]} : vector<8x32xbf16> to vector<2x8xbf16>
    %c0_48 = arith.constant 0 : index
    %c0_49 = arith.constant 0 : index
    %c0_50 = arith.constant 0 : index
    %70 = vector.load %arg18[%c0_48, %c0_49, %c0_50] : memref<4x8x8xbf16, #tpu.memory_space<vmem>>, vector<1x2x8xbf16>
    %71 = vector.shape_cast %70 : vector<1x2x8xbf16> to vector<2x8xbf16>
    %72 = vector.shape_cast %69 : vector<2x8xbf16> to vector<1x2x8xbf16>
    tpu.vector_store %arg18[%c0_48, %c0_49, %c0_50], %72 {strides = array<i32>} : memref<4x8x8xbf16, #tpu.memory_space<vmem>>, vector<1x2x8xbf16>,
    %73 = vector.extract_strided_slice %64 {offsets = [0, 0], sizes = [2, 8], strides = [1, 1]} : vector<8x32xbf16> to vector<2x8xbf16>
    %c0_51 = arith.constant 0 : index
    %c0_52 = arith.constant 0 : index
    %c0_53 = arith.constant 0 : index
    %74 = vector.load %arg19[%c0_51, %c0_52, %c0_53] : memref<4x8x8xbf16, #tpu.memory_space<vmem>>, vector<1x2x8xbf16>
    %75 = vector.shape_cast %74 : vector<1x2x8xbf16> to vector<2x8xbf16>
    %76 = vector.shape_cast %73 : vector<2x8xbf16> to vector<1x2x8xbf16>
    tpu.vector_store %arg19[%c0_51, %c0_52, %c0_53], %76 {strides = array<i32>} : memref<4x8x8xbf16, #tpu.memory_space<vmem>>, vector<1x2x8xbf16>,
    %77 = vector.extract_strided_slice %50 {offsets = [0, 8], sizes = [2, 8], strides = [1, 1]} : vector<8x32xbf16> to vector<2x8xbf16>
    %c0_54 = arith.constant 0 : index
    %c2_55 = arith.constant 2 : index
    %c0_56 = arith.constant 0 : index
    %78 = vector.load %arg17[%c0_54, %c2_55, %c0_56] : memref<4x8x8xbf16, #tpu.memory_space<vmem>>, vector<1x2x8xbf16>
    %79 = vector.shape_cast %78 : vector<1x2x8xbf16> to vector<2x8xbf16>
    %80 = vector.shape_cast %77 : vector<2x8xbf16> to vector<1x2x8xbf16>
    tpu.vector_store %arg17[%c0_54, %c2_55, %c0_56], %80 {strides = array<i32>} : memref<4x8x8xbf16, #tpu.memory_space<vmem>>, vector<1x2x8xbf16>,
    %81 = vector.extract_strided_slice %63 {offsets = [0, 8], sizes = [2, 8], strides = [1, 1]} : vector<8x32xbf16> to vector<2x8xbf16>
    %c0_57 = arith.constant 0 : index
    %c2_58 = arith.constant 2 : index
    %c0_59 = arith.constant 0 : index
    %82 = vector.load %arg18[%c0_57, %c2_58, %c0_59] : memref<4x8x8xbf16, #tpu.memory_space<vmem>>, vector<1x2x8xbf16>
    %83 = vector.shape_cast %82 : vector<1x2x8xbf16> to vector<2x8xbf16>
    %84 = vector.shape_cast %81 : vector<2x8xbf16> to vector<1x2x8xbf16>
    tpu.vector_store %arg18[%c0_57, %c2_58, %c0_59], %84 {strides = array<i32>} : memref<4x8x8xbf16, #tpu.memory_space<vmem>>, vector<1x2x8xbf16>,
    %85 = vector.extract_strided_slice %64 {offsets = [0, 8], sizes = [2, 8], strides = [1, 1]} : vector<8x32xbf16> to vector<2x8xbf16>
    %c0_60 = arith.constant 0 : index
    %c2_61 = arith.constant 2 : index
    %c0_62 = arith.constant 0 : index
    %86 = vector.load %arg19[%c0_60, %c2_61, %c0_62] : memref<4x8x8xbf16, #tpu.memory_space<vmem>>, vector<1x2x8xbf16>
    %87 = vector.shape_cast %86 : vector<1x2x8xbf16> to vector<2x8xbf16>
    %88 = vector.shape_cast %85 : vector<2x8xbf16> to vector<1x2x8xbf16>
    tpu.vector_store %arg19[%c0_60, %c2_61, %c0_62], %88 {strides = array<i32>} : memref<4x8x8xbf16, #tpu.memory_space<vmem>>, vector<1x2x8xbf16>,
    %89 = vector.extract_strided_slice %50 {offsets = [0, 16], sizes = [2, 8], strides = [1, 1]} : vector<8x32xbf16> to vector<2x8xbf16>
    %c0_63 = arith.constant 0 : index
    %c4 = arith.constant 4 : index
    %c0_64 = arith.constant 0 : index
    %90 = vector.load %arg17[%c0_63, %c4, %c0_64] : memref<4x8x8xbf16, #tpu.memory_space<vmem>>, vector<1x2x8xbf16>
    %91 = vector.shape_cast %90 : vector<1x2x8xbf16> to vector<2x8xbf16>
    %92 = vector.shape_cast %89 : vector<2x8xbf16> to vector<1x2x8xbf16>
    tpu.vector_store %arg17[%c0_63, %c4, %c0_64], %92 {strides = array<i32>} : memref<4x8x8xbf16, #tpu.memory_space<vmem>>, vector<1x2x8xbf16>,
    %93 = vector.extract_strided_slice %63 {offsets = [0, 16], sizes = [2, 8], strides = [1, 1]} : vector<8x32xbf16> to vector<2x8xbf16>
    %c0_65 = arith.constant 0 : index
    %c4_66 = arith.constant 4 : index
    %c0_67 = arith.constant 0 : index
    %94 = vector.load %arg18[%c0_65, %c4_66, %c0_67] : memref<4x8x8xbf16, #tpu.memory_space<vmem>>, vector<1x2x8xbf16>
    %95 = vector.shape_cast %94 : vector<1x2x8xbf16> to vector<2x8xbf16>
    %96 = vector.shape_cast %93 : vector<2x8xbf16> to vector<1x2x8xbf16>
    tpu.vector_store %arg18[%c0_65, %c4_66, %c0_67], %96 {strides = array<i32>} : memref<4x8x8xbf16, #tpu.memory_space<vmem>>, vector<1x2x8xbf16>,
    %97 = vector.extract_strided_slice %64 {offsets = [0, 16], sizes = [2, 8], strides = [1, 1]} : vector<8x32xbf16> to vector<2x8xbf16>
    %c0_68 = arith.constant 0 : index
    %c4_69 = arith.constant 4 : index
    %c0_70 = arith.constant 0 : index
    %98 = vector.load %arg19[%c0_68, %c4_69, %c0_70] : memref<4x8x8xbf16, #tpu.memory_space<vmem>>, vector<1x2x8xbf16>
    %99 = vector.shape_cast %98 : vector<1x2x8xbf16> to vector<2x8xbf16>
    %100 = vector.shape_cast %97 : vector<2x8xbf16> to vector<1x2x8xbf16>
    tpu.vector_store %arg19[%c0_68, %c4_69, %c0_70], %100 {strides = array<i32>} : memref<4x8x8xbf16, #tpu.memory_space<vmem>>, vector<1x2x8xbf16>,
    %101 = vector.extract_strided_slice %50 {offsets = [0, 24], sizes = [2, 8], strides = [1, 1]} : vector<8x32xbf16> to vector<2x8xbf16>
    %c0_71 = arith.constant 0 : index
    %c6 = arith.constant 6 : index
    %c0_72 = arith.constant 0 : index
    %102 = vector.load %arg17[%c0_71, %c6, %c0_72] : memref<4x8x8xbf16, #tpu.memory_space<vmem>>, vector<1x2x8xbf16>
    %103 = vector.shape_cast %102 : vector<1x2x8xbf16> to vector<2x8xbf16>
    %104 = vector.shape_cast %101 : vector<2x8xbf16> to vector<1x2x8xbf16>
    tpu.vector_store %arg17[%c0_71, %c6, %c0_72], %104 {strides = array<i32>} : memref<4x8x8xbf16, #tpu.memory_space<vmem>>, vector<1x2x8xbf16>,
    %105 = vector.extract_strided_slice %63 {offsets = [0, 24], sizes = [2, 8], strides = [1, 1]} : vector<8x32xbf16> to vector<2x8xbf16>
    %c0_73 = arith.constant 0 : index
    %c6_74 = arith.constant 6 : index
    %c0_75 = arith.constant 0 : index
    %106 = vector.load %arg18[%c0_73, %c6_74, %c0_75] : memref<4x8x8xbf16, #tpu.memory_space<vmem>>, vector<1x2x8xbf16>
    %107 = vector.shape_cast %106 : vector<1x2x8xbf16> to vector<2x8xbf16>
    %108 = vector.shape_cast %105 : vector<2x8xbf16> to vector<1x2x8xbf16>
    tpu.vector_store %arg18[%c0_73, %c6_74, %c0_75], %108 {strides = array<i32>} : memref<4x8x8xbf16, #tpu.memory_space<vmem>>, vector<1x2x8xbf16>,
    %109 = vector.extract_strided_slice %64 {offsets = [0, 24], sizes = [2, 8], strides = [1, 1]} : vector<8x32xbf16> to vector<2x8xbf16>
    %c0_76 = arith.constant 0 : index
    %c6_77 = arith.constant 6 : index
    %c0_78 = arith.constant 0 : index
    %110 = vector.load %arg19[%c0_76, %c6_77, %c0_78] : memref<4x8x8xbf16, #tpu.memory_space<vmem>>, vector<1x2x8xbf16>
    %111 = vector.shape_cast %110 : vector<1x2x8xbf16> to vector<2x8xbf16>
    %112 = vector.shape_cast %109 : vector<2x8xbf16> to vector<1x2x8xbf16>
    tpu.vector_store %arg19[%c0_76, %c6_77, %c0_78], %112 {strides = array<i32>} : memref<4x8x8xbf16, #tpu.memory_space<vmem>>, vector<1x2x8xbf16>,
    %113 = vector.extract_strided_slice %50 {offsets = [2, 0], sizes = [2, 8], strides = [1, 1]} : vector<8x32xbf16> to vector<2x8xbf16>
    %c1_79 = arith.constant 1 : index
    %c0_80 = arith.constant 0 : index
    %c0_81 = arith.constant 0 : index
    %114 = vector.load %arg17[%c1_79, %c0_80, %c0_81] : memref<4x8x8xbf16, #tpu.memory_space<vmem>>, vector<1x2x8xbf16>
    %115 = vector.shape_cast %114 : vector<1x2x8xbf16> to vector<2x8xbf16>
    %116 = vector.shape_cast %113 : vector<2x8xbf16> to vector<1x2x8xbf16>
    tpu.vector_store %arg17[%c1_79, %c0_80, %c0_81], %116 {strides = array<i32>} : memref<4x8x8xbf16, #tpu.memory_space<vmem>>, vector<1x2x8xbf16>,
    %117 = vector.extract_strided_slice %63 {offsets = [2, 0], sizes = [2, 8], strides = [1, 1]} : vector<8x32xbf16> to vector<2x8xbf16>
    %c1_82 = arith.constant 1 : index
    %c0_83 = arith.constant 0 : index
    %c0_84 = arith.constant 0 : index
    %118 = vector.load %arg18[%c1_82, %c0_83, %c0_84] : memref<4x8x8xbf16, #tpu.memory_space<vmem>>, vector<1x2x8xbf16>
    %119 = vector.shape_cast %118 : vector<1x2x8xbf16> to vector<2x8xbf16>
    %120 = vector.shape_cast %117 : vector<2x8xbf16> to vector<1x2x8xbf16>
    tpu.vector_store %arg18[%c1_82, %c0_83, %c0_84], %120 {strides = array<i32>} : memref<4x8x8xbf16, #tpu.memory_space<vmem>>, vector<1x2x8xbf16>,
    %121 = vector.extract_strided_slice %64 {offsets = [2, 0], sizes = [2, 8], strides = [1, 1]} : vector<8x32xbf16> to vector<2x8xbf16>
    %c1_85 = arith.constant 1 : index
    %c0_86 = arith.constant 0 : index
    %c0_87 = arith.constant 0 : index
    %122 = vector.load %arg19[%c1_85, %c0_86, %c0_87] : memref<4x8x8xbf16, #tpu.memory_space<vmem>>, vector<1x2x8xbf16>
    %123 = vector.shape_cast %122 : vector<1x2x8xbf16> to vector<2x8xbf16>
    %124 = vector.shape_cast %121 : vector<2x8xbf16> to vector<1x2x8xbf16>
    tpu.vector_store %arg19[%c1_85, %c0_86, %c0_87], %124 {strides = array<i32>} : memref<4x8x8xbf16, #tpu.memory_space<vmem>>, vector<1x2x8xbf16>,
    %125 = vector.extract_strided_slice %50 {offsets = [2, 8], sizes = [2, 8], strides = [1, 1]} : vector<8x32xbf16> to vector<2x8xbf16>
    %c1_88 = arith.constant 1 : index
    %c2_89 = arith.constant 2 : index
    %c0_90 = arith.constant 0 : index
    %126 = vector.load %arg17[%c1_88, %c2_89, %c0_90] : memref<4x8x8xbf16, #tpu.memory_space<vmem>>, vector<1x2x8xbf16>
    %127 = vector.shape_cast %126 : vector<1x2x8xbf16> to vector<2x8xbf16>
    %128 = vector.shape_cast %125 : vector<2x8xbf16> to vector<1x2x8xbf16>
    tpu.vector_store %arg17[%c1_88, %c2_89, %c0_90], %128 {strides = array<i32>} : memref<4x8x8xbf16, #tpu.memory_space<vmem>>, vector<1x2x8xbf16>,
    %129 = vector.extract_strided_slice %63 {offsets = [2, 8], sizes = [2, 8], strides = [1, 1]} : vector<8x32xbf16> to vector<2x8xbf16>
    %c1_91 = arith.constant 1 : index
    %c2_92 = arith.constant 2 : index
    %c0_93 = arith.constant 0 : index
    %130 = vector.load %arg18[%c1_91, %c2_92, %c0_93] : memref<4x8x8xbf16, #tpu.memory_space<vmem>>, vector<1x2x8xbf16>
    %131 = vector.shape_cast %130 : vector<1x2x8xbf16> to vector<2x8xbf16>
    %132 = vector.shape_cast %129 : vector<2x8xbf16> to vector<1x2x8xbf16>
    tpu.vector_store %arg18[%c1_91, %c2_92, %c0_93], %132 {strides = array<i32>} : memref<4x8x8xbf16, #tpu.memory_space<vmem>>, vector<1x2x8xbf16>,
    %133 = vector.extract_strided_slice %64 {offsets = [2, 8], sizes = [2, 8], strides = [1, 1]} : vector<8x32xbf16> to vector<2x8xbf16>
    %c1_94 = arith.constant 1 : index
    %c2_95 = arith.constant 2 : index
    %c0_96 = arith.constant 0 : index
    %134 = vector.load %arg19[%c1_94, %c2_95, %c0_96] : memref<4x8x8xbf16, #tpu.memory_space<vmem>>, vector<1x2x8xbf16>
    %135 = vector.shape_cast %134 : vector<1x2x8xbf16> to vector<2x8xbf16>
    %136 = vector.shape_cast %133 : vector<2x8xbf16> to vector<1x2x8xbf16>
    tpu.vector_store %arg19[%c1_94, %c2_95, %c0_96], %136 {strides = array<i32>} : memref<4x8x8xbf16, #tpu.memory_space<vmem>>, vector<1x2x8xbf16>,
    %137 = vector.extract_strided_slice %50 {offsets = [2, 16], sizes = [2, 8], strides = [1, 1]} : vector<8x32xbf16> to vector<2x8xbf16>
    %c1_97 = arith.constant 1 : index
    %c4_98 = arith.constant 4 : index
    %c0_99 = arith.constant 0 : index
    %138 = vector.load %arg17[%c1_97, %c4_98, %c0_99] : memref<4x8x8xbf16, #tpu.memory_space<vmem>>, vector<1x2x8xbf16>
    %139 = vector.shape_cast %138 : vector<1x2x8xbf16> to vector<2x8xbf16>
    %140 = vector.shape_cast %137 : vector<2x8xbf16> to vector<1x2x8xbf16>
    tpu.vector_store %arg17[%c1_97, %c4_98, %c0_99], %140 {strides = array<i32>} : memref<4x8x8xbf16, #tpu.memory_space<vmem>>, vector<1x2x8xbf16>,
    %141 = vector.extract_strided_slice %63 {offsets = [2, 16], sizes = [2, 8], strides = [1, 1]} : vector<8x32xbf16> to vector<2x8xbf16>
    %c1_100 = arith.constant 1 : index
    %c4_101 = arith.constant 4 : index
    %c0_102 = arith.constant 0 : index
    %142 = vector.load %arg18[%c1_100, %c4_101, %c0_102] : memref<4x8x8xbf16, #tpu.memory_space<vmem>>, vector<1x2x8xbf16>
    %143 = vector.shape_cast %142 : vector<1x2x8xbf16> to vector<2x8xbf16>
    %144 = vector.shape_cast %141 : vector<2x8xbf16> to vector<1x2x8xbf16>
    tpu.vector_store %arg18[%c1_100, %c4_101, %c0_102], %144 {strides = array<i32>} : memref<4x8x8xbf16, #tpu.memory_space<vmem>>, vector<1x2x8xbf16>,
    %145 = vector.extract_strided_slice %64 {offsets = [2, 16], sizes = [2, 8], strides = [1, 1]} : vector<8x32xbf16> to vector<2x8xbf16>
    %c1_103 = arith.constant 1 : index
    %c4_104 = arith.constant 4 : index
    %c0_105 = arith.constant 0 : index
    %146 = vector.load %arg19[%c1_103, %c4_104, %c0_105] : memref<4x8x8xbf16, #tpu.memory_space<vmem>>, vector<1x2x8xbf16>
    %147 = vector.shape_cast %146 : vector<1x2x8xbf16> to vector<2x8xbf16>
    %148 = vector.shape_cast %145 : vector<2x8xbf16> to vector<1x2x8xbf16>
    tpu.vector_store %arg19[%c1_103, %c4_104, %c0_105], %148 {strides = array<i32>} : memref<4x8x8xbf16, #tpu.memory_space<vmem>>, vector<1x2x8xbf16>,
    %149 = vector.extract_strided_slice %50 {offsets = [2, 24], sizes = [2, 8], strides = [1, 1]} : vector<8x32xbf16> to vector<2x8xbf16>
    %c1_106 = arith.constant 1 : index
    %c6_107 = arith.constant 6 : index
    %c0_108 = arith.constant 0 : index
    %150 = vector.load %arg17[%c1_106, %c6_107, %c0_108] : memref<4x8x8xbf16, #tpu.memory_space<vmem>>, vector<1x2x8xbf16>
    %151 = vector.shape_cast %150 : vector<1x2x8xbf16> to vector<2x8xbf16>
    %152 = vector.shape_cast %149 : vector<2x8xbf16> to vector<1x2x8xbf16>
    tpu.vector_store %arg17[%c1_106, %c6_107, %c0_108], %152 {strides = array<i32>} : memref<4x8x8xbf16, #tpu.memory_space<vmem>>, vector<1x2x8xbf16>,
    %153 = vector.extract_strided_slice %63 {offsets = [2, 24], sizes = [2, 8], strides = [1, 1]} : vector<8x32xbf16> to vector<2x8xbf16>
    %c1_109 = arith.constant 1 : index
    %c6_110 = arith.constant 6 : index
    %c0_111 = arith.constant 0 : index
    %154 = vector.load %arg18[%c1_109, %c6_110, %c0_111] : memref<4x8x8xbf16, #tpu.memory_space<vmem>>, vector<1x2x8xbf16>
    %155 = vector.shape_cast %154 : vector<1x2x8xbf16> to vector<2x8xbf16>
    %156 = vector.shape_cast %153 : vector<2x8xbf16> to vector<1x2x8xbf16>
    tpu.vector_store %arg18[%c1_109, %c6_110, %c0_111], %156 {strides = array<i32>} : memref<4x8x8xbf16, #tpu.memory_space<vmem>>, vector<1x2x8xbf16>,
    %157 = vector.extract_strided_slice %64 {offsets = [2, 24], sizes = [2, 8], strides = [1, 1]} : vector<8x32xbf16> to vector<2x8xbf16>
    %c1_112 = arith.constant 1 : index
    %c6_113 = arith.constant 6 : index
    %c0_114 = arith.constant 0 : index
    %158 = vector.load %arg19[%c1_112, %c6_113, %c0_114] : memref<4x8x8xbf16, #tpu.memory_space<vmem>>, vector<1x2x8xbf16>
    %159 = vector.shape_cast %158 : vector<1x2x8xbf16> to vector<2x8xbf16>
    %160 = vector.shape_cast %157 : vector<2x8xbf16> to vector<1x2x8xbf16>
    tpu.vector_store %arg19[%c1_112, %c6_113, %c0_114], %160 {strides = array<i32>} : memref<4x8x8xbf16, #tpu.memory_space<vmem>>, vector<1x2x8xbf16>,
    %161 = vector.extract_strided_slice %50 {offsets = [4, 0], sizes = [2, 8], strides = [1, 1]} : vector<8x32xbf16> to vector<2x8xbf16>
    %c2_115 = arith.constant 2 : index
    %c0_116 = arith.constant 0 : index
    %c0_117 = arith.constant 0 : index
    %162 = vector.load %arg17[%c2_115, %c0_116, %c0_117] : memref<4x8x8xbf16, #tpu.memory_space<vmem>>, vector<1x2x8xbf16>
    %163 = vector.shape_cast %162 : vector<1x2x8xbf16> to vector<2x8xbf16>
    %164 = vector.shape_cast %161 : vector<2x8xbf16> to vector<1x2x8xbf16>
    tpu.vector_store %arg17[%c2_115, %c0_116, %c0_117], %164 {strides = array<i32>} : memref<4x8x8xbf16, #tpu.memory_space<vmem>>, vector<1x2x8xbf16>,
    %165 = vector.extract_strided_slice %63 {offsets = [4, 0], sizes = [2, 8], strides = [1, 1]} : vector<8x32xbf16> to vector<2x8xbf16>
    %c2_118 = arith.constant 2 : index
    %c0_119 = arith.constant 0 : index
    %c0_120 = arith.constant 0 : index
    %166 = vector.load %arg18[%c2_118, %c0_119, %c0_120] : memref<4x8x8xbf16, #tpu.memory_space<vmem>>, vector<1x2x8xbf16>
    %167 = vector.shape_cast %166 : vector<1x2x8xbf16> to vector<2x8xbf16>
    %168 = vector.shape_cast %165 : vector<2x8xbf16> to vector<1x2x8xbf16>
    tpu.vector_store %arg18[%c2_118, %c0_119, %c0_120], %168 {strides = array<i32>} : memref<4x8x8xbf16, #tpu.memory_space<vmem>>, vector<1x2x8xbf16>,
    %169 = vector.extract_strided_slice %64 {offsets = [4, 0], sizes = [2, 8], strides = [1, 1]} : vector<8x32xbf16> to vector<2x8xbf16>
    %c2_121 = arith.constant 2 : index
    %c0_122 = arith.constant 0 : index
    %c0_123 = arith.constant 0 : index
    %170 = vector.load %arg19[%c2_121, %c0_122, %c0_123] : memref<4x8x8xbf16, #tpu.memory_space<vmem>>, vector<1x2x8xbf16>
    %171 = vector.shape_cast %170 : vector<1x2x8xbf16> to vector<2x8xbf16>
    %172 = vector.shape_cast %169 : vector<2x8xbf16> to vector<1x2x8xbf16>
    tpu.vector_store %arg19[%c2_121, %c0_122, %c0_123], %172 {strides = array<i32>} : memref<4x8x8xbf16, #tpu.memory_space<vmem>>, vector<1x2x8xbf16>,
    %173 = vector.extract_strided_slice %50 {offsets = [4, 8], sizes = [2, 8], strides = [1, 1]} : vector<8x32xbf16> to vector<2x8xbf16>
    %c2_124 = arith.constant 2 : index
    %c2_125 = arith.constant 2 : index
    %c0_126 = arith.constant 0 : index
    %174 = vector.load %arg17[%c2_124, %c2_125, %c0_126] : memref<4x8x8xbf16, #tpu.memory_space<vmem>>, vector<1x2x8xbf16>
    %175 = vector.shape_cast %174 : vector<1x2x8xbf16> to vector<2x8xbf16>
    %176 = vector.shape_cast %173 : vector<2x8xbf16> to vector<1x2x8xbf16>
    tpu.vector_store %arg17[%c2_124, %c2_125, %c0_126], %176 {strides = array<i32>} : memref<4x8x8xbf16, #tpu.memory_space<vmem>>, vector<1x2x8xbf16>,
    %177 = vector.extract_strided_slice %63 {offsets = [4, 8], sizes = [2, 8], strides = [1, 1]} : vector<8x32xbf16> to vector<2x8xbf16>
    %c2_127 = arith.constant 2 : index
    %c2_128 = arith.constant 2 : index
    %c0_129 = arith.constant 0 : index
    %178 = vector.load %arg18[%c2_127, %c2_128, %c0_129] : memref<4x8x8xbf16, #tpu.memory_space<vmem>>, vector<1x2x8xbf16>
    %179 = vector.shape_cast %178 : vector<1x2x8xbf16> to vector<2x8xbf16>
    %180 = vector.shape_cast %177 : vector<2x8xbf16> to vector<1x2x8xbf16>
    tpu.vector_store %arg18[%c2_127, %c2_128, %c0_129], %180 {strides = array<i32>} : memref<4x8x8xbf16, #tpu.memory_space<vmem>>, vector<1x2x8xbf16>,
    %181 = vector.extract_strided_slice %64 {offsets = [4, 8], sizes = [2, 8], strides = [1, 1]} : vector<8x32xbf16> to vector<2x8xbf16>
    %c2_130 = arith.constant 2 : index
    %c2_131 = arith.constant 2 : index
    %c0_132 = arith.constant 0 : index
    %182 = vector.load %arg19[%c2_130, %c2_131, %c0_132] : memref<4x8x8xbf16, #tpu.memory_space<vmem>>, vector<1x2x8xbf16>
    %183 = vector.shape_cast %182 : vector<1x2x8xbf16> to vector<2x8xbf16>
    %184 = vector.shape_cast %181 : vector<2x8xbf16> to vector<1x2x8xbf16>
    tpu.vector_store %arg19[%c2_130, %c2_131, %c0_132], %184 {strides = array<i32>} : memref<4x8x8xbf16, #tpu.memory_space<vmem>>, vector<1x2x8xbf16>,
    %185 = vector.extract_strided_slice %50 {offsets = [4, 16], sizes = [2, 8], strides = [1, 1]} : vector<8x32xbf16> to vector<2x8xbf16>
    %c2_133 = arith.constant 2 : index
    %c4_134 = arith.constant 4 : index
    %c0_135 = arith.constant 0 : index
    %186 = vector.load %arg17[%c2_133, %c4_134, %c0_135] : memref<4x8x8xbf16, #tpu.memory_space<vmem>>, vector<1x2x8xbf16>
    %187 = vector.shape_cast %186 : vector<1x2x8xbf16> to vector<2x8xbf16>
    %188 = vector.shape_cast %185 : vector<2x8xbf16> to vector<1x2x8xbf16>
    tpu.vector_store %arg17[%c2_133, %c4_134, %c0_135], %188 {strides = array<i32>} : memref<4x8x8xbf16, #tpu.memory_space<vmem>>, vector<1x2x8xbf16>,
    %189 = vector.extract_strided_slice %63 {offsets = [4, 16], sizes = [2, 8], strides = [1, 1]} : vector<8x32xbf16> to vector<2x8xbf16>
    %c2_136 = arith.constant 2 : index
    %c4_137 = arith.constant 4 : index
    %c0_138 = arith.constant 0 : index
    %190 = vector.load %arg18[%c2_136, %c4_137, %c0_138] : memref<4x8x8xbf16, #tpu.memory_space<vmem>>, vector<1x2x8xbf16>
    %191 = vector.shape_cast %190 : vector<1x2x8xbf16> to vector<2x8xbf16>
    %192 = vector.shape_cast %189 : vector<2x8xbf16> to vector<1x2x8xbf16>
    tpu.vector_store %arg18[%c2_136, %c4_137, %c0_138], %192 {strides = array<i32>} : memref<4x8x8xbf16, #tpu.memory_space<vmem>>, vector<1x2x8xbf16>,
    %193 = vector.extract_strided_slice %64 {offsets = [4, 16], sizes = [2, 8], strides = [1, 1]} : vector<8x32xbf16> to vector<2x8xbf16>
    %c2_139 = arith.constant 2 : index
    %c4_140 = arith.constant 4 : index
    %c0_141 = arith.constant 0 : index
    %194 = vector.load %arg19[%c2_139, %c4_140, %c0_141] : memref<4x8x8xbf16, #tpu.memory_space<vmem>>, vector<1x2x8xbf16>
    %195 = vector.shape_cast %194 : vector<1x2x8xbf16> to vector<2x8xbf16>
    %196 = vector.shape_cast %193 : vector<2x8xbf16> to vector<1x2x8xbf16>
    tpu.vector_store %arg19[%c2_139, %c4_140, %c0_141], %196 {strides = array<i32>} : memref<4x8x8xbf16, #tpu.memory_space<vmem>>, vector<1x2x8xbf16>,
    %197 = vector.extract_strided_slice %50 {offsets = [4, 24], sizes = [2, 8], strides = [1, 1]} : vector<8x32xbf16> to vector<2x8xbf16>
    %c2_142 = arith.constant 2 : index
    %c6_143 = arith.constant 6 : index
    %c0_144 = arith.constant 0 : index
    %198 = vector.load %arg17[%c2_142, %c6_143, %c0_144] : memref<4x8x8xbf16, #tpu.memory_space<vmem>>, vector<1x2x8xbf16>
    %199 = vector.shape_cast %198 : vector<1x2x8xbf16> to vector<2x8xbf16>
    %200 = vector.shape_cast %197 : vector<2x8xbf16> to vector<1x2x8xbf16>
    tpu.vector_store %arg17[%c2_142, %c6_143, %c0_144], %200 {strides = array<i32>} : memref<4x8x8xbf16, #tpu.memory_space<vmem>>, vector<1x2x8xbf16>,
    %201 = vector.extract_strided_slice %63 {offsets = [4, 24], sizes = [2, 8], strides = [1, 1]} : vector<8x32xbf16> to vector<2x8xbf16>
    %c2_145 = arith.constant 2 : index
    %c6_146 = arith.constant 6 : index
    %c0_147 = arith.constant 0 : index
    %202 = vector.load %arg18[%c2_145, %c6_146, %c0_147] : memref<4x8x8xbf16, #tpu.memory_space<vmem>>, vector<1x2x8xbf16>
    %203 = vector.shape_cast %202 : vector<1x2x8xbf16> to vector<2x8xbf16>
    %204 = vector.shape_cast %201 : vector<2x8xbf16> to vector<1x2x8xbf16>
    tpu.vector_store %arg18[%c2_145, %c6_146, %c0_147], %204 {strides = array<i32>} : memref<4x8x8xbf16, #tpu.memory_space<vmem>>, vector<1x2x8xbf16>,
    %205 = vector.extract_strided_slice %64 {offsets = [4, 24], sizes = [2, 8], strides = [1, 1]} : vector<8x32xbf16> to vector<2x8xbf16>
    %c2_148 = arith.constant 2 : index
    %c6_149 = arith.constant 6 : index
    %c0_150 = arith.constant 0 : index
    %206 = vector.load %arg19[%c2_148, %c6_149, %c0_150] : memref<4x8x8xbf16, #tpu.memory_space<vmem>>, vector<1x2x8xbf16>
    %207 = vector.shape_cast %206 : vector<1x2x8xbf16> to vector<2x8xbf16>
    %208 = vector.shape_cast %205 : vector<2x8xbf16> to vector<1x2x8xbf16>
    tpu.vector_store %arg19[%c2_148, %c6_149, %c0_150], %208 {strides = array<i32>} : memref<4x8x8xbf16, #tpu.memory_space<vmem>>, vector<1x2x8xbf16>,
    %209 = vector.extract_strided_slice %50 {offsets = [6, 0], sizes = [2, 8], strides = [1, 1]} : vector<8x32xbf16> to vector<2x8xbf16>
    %c3 = arith.constant 3 : index
    %c0_151 = arith.constant 0 : index
    %c0_152 = arith.constant 0 : index
    %210 = vector.load %arg17[%c3, %c0_151, %c0_152] : memref<4x8x8xbf16, #tpu.memory_space<vmem>>, vector<1x2x8xbf16>
    %211 = vector.shape_cast %210 : vector<1x2x8xbf16> to vector<2x8xbf16>
    %212 = vector.shape_cast %209 : vector<2x8xbf16> to vector<1x2x8xbf16>
    tpu.vector_store %arg17[%c3, %c0_151, %c0_152], %212 {strides = array<i32>} : memref<4x8x8xbf16, #tpu.memory_space<vmem>>, vector<1x2x8xbf16>,
    %213 = vector.extract_strided_slice %63 {offsets = [6, 0], sizes = [2, 8], strides = [1, 1]} : vector<8x32xbf16> to vector<2x8xbf16>
    %c3_153 = arith.constant 3 : index
    %c0_154 = arith.constant 0 : index
    %c0_155 = arith.constant 0 : index
    %214 = vector.load %arg18[%c3_153, %c0_154, %c0_155] : memref<4x8x8xbf16, #tpu.memory_space<vmem>>, vector<1x2x8xbf16>
    %215 = vector.shape_cast %214 : vector<1x2x8xbf16> to vector<2x8xbf16>
    %216 = vector.shape_cast %213 : vector<2x8xbf16> to vector<1x2x8xbf16>
    tpu.vector_store %arg18[%c3_153, %c0_154, %c0_155], %216 {strides = array<i32>} : memref<4x8x8xbf16, #tpu.memory_space<vmem>>, vector<1x2x8xbf16>,
    %217 = vector.extract_strided_slice %64 {offsets = [6, 0], sizes = [2, 8], strides = [1, 1]} : vector<8x32xbf16> to vector<2x8xbf16>
    %c3_156 = arith.constant 3 : index
    %c0_157 = arith.constant 0 : index
    %c0_158 = arith.constant 0 : index
    %218 = vector.load %arg19[%c3_156, %c0_157, %c0_158] : memref<4x8x8xbf16, #tpu.memory_space<vmem>>, vector<1x2x8xbf16>
    %219 = vector.shape_cast %218 : vector<1x2x8xbf16> to vector<2x8xbf16>
    %220 = vector.shape_cast %217 : vector<2x8xbf16> to vector<1x2x8xbf16>
    tpu.vector_store %arg19[%c3_156, %c0_157, %c0_158], %220 {strides = array<i32>} : memref<4x8x8xbf16, #tpu.memory_space<vmem>>, vector<1x2x8xbf16>,
    %221 = vector.extract_strided_slice %50 {offsets = [6, 8], sizes = [2, 8], strides = [1, 1]} : vector<8x32xbf16> to vector<2x8xbf16>
    %c3_159 = arith.constant 3 : index
    %c2_160 = arith.constant 2 : index
    %c0_161 = arith.constant 0 : index
    %222 = vector.load %arg17[%c3_159, %c2_160, %c0_161] : memref<4x8x8xbf16, #tpu.memory_space<vmem>>, vector<1x2x8xbf16>
    %223 = vector.shape_cast %222 : vector<1x2x8xbf16> to vector<2x8xbf16>
    %224 = vector.shape_cast %221 : vector<2x8xbf16> to vector<1x2x8xbf16>
    tpu.vector_store %arg17[%c3_159, %c2_160, %c0_161], %224 {strides = array<i32>} : memref<4x8x8xbf16, #tpu.memory_space<vmem>>, vector<1x2x8xbf16>,
    %225 = vector.extract_strided_slice %63 {offsets = [6, 8], sizes = [2, 8], strides = [1, 1]} : vector<8x32xbf16> to vector<2x8xbf16>
    %c3_162 = arith.constant 3 : index
    %c2_163 = arith.constant 2 : index
    %c0_164 = arith.constant 0 : index
    %226 = vector.load %arg18[%c3_162, %c2_163, %c0_164] : memref<4x8x8xbf16, #tpu.memory_space<vmem>>, vector<1x2x8xbf16>
    %227 = vector.shape_cast %226 : vector<1x2x8xbf16> to vector<2x8xbf16>
    %228 = vector.shape_cast %225 : vector<2x8xbf16> to vector<1x2x8xbf16>
    tpu.vector_store %arg18[%c3_162, %c2_163, %c0_164], %228 {strides = array<i32>} : memref<4x8x8xbf16, #tpu.memory_space<vmem>>, vector<1x2x8xbf16>,
    %229 = vector.extract_strided_slice %64 {offsets = [6, 8], sizes = [2, 8], strides = [1, 1]} : vector<8x32xbf16> to vector<2x8xbf16>
    %c3_165 = arith.constant 3 : index
    %c2_166 = arith.constant 2 : index
    %c0_167 = arith.constant 0 : index
    %230 = vector.load %arg19[%c3_165, %c2_166, %c0_167] : memref<4x8x8xbf16, #tpu.memory_space<vmem>>, vector<1x2x8xbf16>
    %231 = vector.shape_cast %230 : vector<1x2x8xbf16> to vector<2x8xbf16>
    %232 = vector.shape_cast %229 : vector<2x8xbf16> to vector<1x2x8xbf16>
    tpu.vector_store %arg19[%c3_165, %c2_166, %c0_167], %232 {strides = array<i32>} : memref<4x8x8xbf16, #tpu.memory_space<vmem>>, vector<1x2x8xbf16>,
    %233 = vector.extract_strided_slice %50 {offsets = [6, 16], sizes = [2, 8], strides = [1, 1]} : vector<8x32xbf16> to vector<2x8xbf16>
    %c3_168 = arith.constant 3 : index
    %c4_169 = arith.constant 4 : index
    %c0_170 = arith.constant 0 : index
    %234 = vector.load %arg17[%c3_168, %c4_169, %c0_170] : memref<4x8x8xbf16, #tpu.memory_space<vmem>>, vector<1x2x8xbf16>
    %235 = vector.shape_cast %234 : vector<1x2x8xbf16> to vector<2x8xbf16>
    %236 = vector.shape_cast %233 : vector<2x8xbf16> to vector<1x2x8xbf16>
    tpu.vector_store %arg17[%c3_168, %c4_169, %c0_170], %236 {strides = array<i32>} : memref<4x8x8xbf16, #tpu.memory_space<vmem>>, vector<1x2x8xbf16>,
    %237 = vector.extract_strided_slice %63 {offsets = [6, 16], sizes = [2, 8], strides = [1, 1]} : vector<8x32xbf16> to vector<2x8xbf16>
    %c3_171 = arith.constant 3 : index
    %c4_172 = arith.constant 4 : index
    %c0_173 = arith.constant 0 : index
    %238 = vector.load %arg18[%c3_171, %c4_172, %c0_173] : memref<4x8x8xbf16, #tpu.memory_space<vmem>>, vector<1x2x8xbf16>
    %239 = vector.shape_cast %238 : vector<1x2x8xbf16> to vector<2x8xbf16>
    %240 = vector.shape_cast %237 : vector<2x8xbf16> to vector<1x2x8xbf16>
    tpu.vector_store %arg18[%c3_171, %c4_172, %c0_173], %240 {strides = array<i32>} : memref<4x8x8xbf16, #tpu.memory_space<vmem>>, vector<1x2x8xbf16>,
    %241 = vector.extract_strided_slice %64 {offsets = [6, 16], sizes = [2, 8], strides = [1, 1]} : vector<8x32xbf16> to vector<2x8xbf16>
    %c3_174 = arith.constant 3 : index
    %c4_175 = arith.constant 4 : index
    %c0_176 = arith.constant 0 : index
    %242 = vector.load %arg19[%c3_174, %c4_175, %c0_176] : memref<4x8x8xbf16, #tpu.memory_space<vmem>>, vector<1x2x8xbf16>
    %243 = vector.shape_cast %242 : vector<1x2x8xbf16> to vector<2x8xbf16>
    %244 = vector.shape_cast %241 : vector<2x8xbf16> to vector<1x2x8xbf16>
    tpu.vector_store %arg19[%c3_174, %c4_175, %c0_176], %244 {strides = array<i32>} : memref<4x8x8xbf16, #tpu.memory_space<vmem>>, vector<1x2x8xbf16>,
    %245 = vector.extract_strided_slice %50 {offsets = [6, 24], sizes = [2, 8], strides = [1, 1]} : vector<8x32xbf16> to vector<2x8xbf16>
    %c3_177 = arith.constant 3 : index
    %c6_178 = arith.constant 6 : index
    %c0_179 = arith.constant 0 : index
    %246 = vector.load %arg17[%c3_177, %c6_178, %c0_179] : memref<4x8x8xbf16, #tpu.memory_space<vmem>>, vector<1x2x8xbf16>
    %247 = vector.shape_cast %246 : vector<1x2x8xbf16> to vector<2x8xbf16>
    %248 = vector.shape_cast %245 : vector<2x8xbf16> to vector<1x2x8xbf16>
    tpu.vector_store %arg17[%c3_177, %c6_178, %c0_179], %248 {strides = array<i32>} : memref<4x8x8xbf16, #tpu.memory_space<vmem>>, vector<1x2x8xbf16>,
    %249 = vector.extract_strided_slice %63 {offsets = [6, 24], sizes = [2, 8], strides = [1, 1]} : vector<8x32xbf16> to vector<2x8xbf16>
    %c3_180 = arith.constant 3 : index
    %c6_181 = arith.constant 6 : index
    %c0_182 = arith.constant 0 : index
    %250 = vector.load %arg18[%c3_180, %c6_181, %c0_182] : memref<4x8x8xbf16, #tpu.memory_space<vmem>>, vector<1x2x8xbf16>
    %251 = vector.shape_cast %250 : vector<1x2x8xbf16> to vector<2x8xbf16>
    %252 = vector.shape_cast %249 : vector<2x8xbf16> to vector<1x2x8xbf16>
    tpu.vector_store %arg18[%c3_180, %c6_181, %c0_182], %252 {strides = array<i32>} : memref<4x8x8xbf16, #tpu.memory_space<vmem>>, vector<1x2x8xbf16>,
    %253 = vector.extract_strided_slice %64 {offsets = [6, 24], sizes = [2, 8], strides = [1, 1]} : vector<8x32xbf16> to vector<2x8xbf16>
    %c3_183 = arith.constant 3 : index
    %c6_184 = arith.constant 6 : index
    %c0_185 = arith.constant 0 : index
    %254 = vector.load %arg19[%c3_183, %c6_184, %c0_185] : memref<4x8x8xbf16, #tpu.memory_space<vmem>>, vector<1x2x8xbf16>
    %255 = vector.shape_cast %254 : vector<1x2x8xbf16> to vector<2x8xbf16>
    %256 = vector.shape_cast %253 : vector<2x8xbf16> to vector<1x2x8xbf16>
    tpu.vector_store %arg19[%c3_183, %c6_184, %c0_185], %256 {strides = array<i32>} : memref<4x8x8xbf16, #tpu.memory_space<vmem>>, vector<1x2x8xbf16>,
    %c0_186 = arith.constant 0 : index
    %c0_187 = arith.constant 0 : index
    %c0_188 = arith.constant 0 : index
    %257 = vector.load %arg17[%c0_186, %c0_187, %c0_188] : memref<4x8x8xbf16, #tpu.memory_space<vmem>>, vector<4x8x8xbf16>
    %c0_189 = arith.constant 0 : index
    %c0_190 = arith.constant 0 : index
    %c0_191 = arith.constant 0 : index
    %258 = vector.load %arg18[%c0_189, %c0_190, %c0_191] : memref<4x8x8xbf16, #tpu.memory_space<vmem>>, vector<4x8x8xbf16>
    %c0_192 = arith.constant 0 : index
    %c0_193 = arith.constant 0 : index
    %c0_194 = arith.constant 0 : index
    %259 = vector.load %arg19[%c0_192, %c0_193, %c0_194] : memref<4x8x8xbf16, #tpu.memory_space<vmem>>, vector<4x8x8xbf16>
    %cst_195 = arith.constant dense<0.000000e+00> : vector<4x8x8xf32>
    %260 = tpu.matmul %257, %258, %cst_195 {dimension_numbers = #tpu.dot_dimension_numbers<[2], [2], [1], [1], [0, 0, 0, 1, 1, 1], [0], [0]>} : vector<4x8x8xbf16>, vector<4x8x8xbf16>, vector<4x8x8xf32> -> vector<4x8x8xf32>
    %cst_196 = arith.constant dense<0xFF800000> : vector<4x8xf32>
    %261 = vector.multi_reduction <maximumf>, %260, %cst_196 [2] : vector<4x8x8xf32> to vector<4x8xf32>
    %262 = vector.shape_cast %261 : vector<4x8xf32> to vector<4x8x1xf32>
    %263 = vector.broadcast %262 : vector<4x8x1xf32> to vector<4x8x8xf32>
    %264 = arith.subf %260, %263 : vector<4x8x8xf32>
    %265 = math.exp %264 : vector<4x8x8xf32>
    %cst_197 = arith.constant dense<0.000000e+00> : vector<4x8xf32>
    %266 = vector.multi_reduction <add>, %265, %cst_197 [2] : vector<4x8x8xf32> to vector<4x8xf32>
    %267 = vector.shape_cast %266 : vector<4x8xf32> to vector<4x8x1xf32>
    %268 = tpu.reciprocal %267 {approx = true} : vector<4x8x1xf32> -> vector<4x8x1xf32>
    %269 = vector.broadcast %268 : vector<4x8x1xf32> to vector<4x8x8xf32>
    %270 = arith.mulf %265, %269 : vector<4x8x8xf32>
    %271 = arith.truncf %270 : vector<4x8x8xf32> to vector<4x8x8xbf16>
    %cst_198 = arith.constant dense<0.000000e+00> : vector<4x8x8xf32>
    %272 = tpu.matmul %271, %259, %cst_198 {dimension_numbers = #tpu.dot_dimension_numbers<[2], [1], [1], [2], [0, 0, 0, 1, 1, 2], [0], [0]>} : vector<4x8x8xbf16>, vector<4x8x8xbf16>, vector<4x8x8xf32> -> vector<4x8x8xf32>
    %273 = arith.truncf %272 : vector<4x8x8xf32> to vector<4x8x8xbf16>
    %274 = vector.extract_strided_slice %273 {offsets = [0, 0, 0], sizes = [1, 2, 8], strides = [1, 1, 1]} : vector<4x8x8xbf16> to vector<1x2x8xbf16>
    %275 = vector.shape_cast %274 : vector<1x2x8xbf16> to vector<2x8xbf16>
    %c0_199 = arith.constant 0 : index
    %c0_200 = arith.constant 0 : index
    %276 = vector.load %arg20[%c0_199, %c0_200] : memref<8x32xbf16, #tpu.memory_space<vmem>>, vector<2x8xbf16>
    tpu.vector_store %arg20[%c0_199, %c0_200], %275 {strides = array<i32>} : memref<8x32xbf16, #tpu.memory_space<vmem>>, vector<2x8xbf16>,
    %277 = vector.extract_strided_slice %273 {offsets = [0, 2, 0], sizes = [1, 2, 8], strides = [1, 1, 1]} : vector<4x8x8xbf16> to vector<1x2x8xbf16>
    %278 = vector.shape_cast %277 : vector<1x2x8xbf16> to vector<2x8xbf16>
    %c0_201 = arith.constant 0 : index
    %c8 = arith.constant 8 : index
    %279 = vector.load %arg20[%c0_201, %c8] : memref<8x32xbf16, #tpu.memory_space<vmem>>, vector<2x8xbf16>
    tpu.vector_store %arg20[%c0_201, %c8], %278 {strides = array<i32>} : memref<8x32xbf16, #tpu.memory_space<vmem>>, vector<2x8xbf16>,
    %280 = vector.extract_strided_slice %273 {offsets = [0, 4, 0], sizes = [1, 2, 8], strides = [1, 1, 1]} : vector<4x8x8xbf16> to vector<1x2x8xbf16>
    %281 = vector.shape_cast %280 : vector<1x2x8xbf16> to vector<2x8xbf16>
    %c0_202 = arith.constant 0 : index
    %c16 = arith.constant 16 : index
    %282 = vector.load %arg20[%c0_202, %c16] : memref<8x32xbf16, #tpu.memory_space<vmem>>, vector<2x8xbf16>
    tpu.vector_store %arg20[%c0_202, %c16], %281 {strides = array<i32>} : memref<8x32xbf16, #tpu.memory_space<vmem>>, vector<2x8xbf16>,
    %283 = vector.extract_strided_slice %273 {offsets = [0, 6, 0], sizes = [1, 2, 8], strides = [1, 1, 1]} : vector<4x8x8xbf16> to vector<1x2x8xbf16>
    %284 = vector.shape_cast %283 : vector<1x2x8xbf16> to vector<2x8xbf16>
    %c0_203 = arith.constant 0 : index
    %c24 = arith.constant 24 : index
    %285 = vector.load %arg20[%c0_203, %c24] : memref<8x32xbf16, #tpu.memory_space<vmem>>, vector<2x8xbf16>
    tpu.vector_store %arg20[%c0_203, %c24], %284 {strides = array<i32>} : memref<8x32xbf16, #tpu.memory_space<vmem>>, vector<2x8xbf16>,
    %286 = vector.extract_strided_slice %273 {offsets = [1, 0, 0], sizes = [1, 2, 8], strides = [1, 1, 1]} : vector<4x8x8xbf16> to vector<1x2x8xbf16>
    %287 = vector.shape_cast %286 : vector<1x2x8xbf16> to vector<2x8xbf16>
    %c2_204 = arith.constant 2 : index
    %c0_205 = arith.constant 0 : index
    %288 = vector.load %arg20[%c2_204, %c0_205] : memref<8x32xbf16, #tpu.memory_space<vmem>>, vector<2x8xbf16>
    tpu.vector_store %arg20[%c2_204, %c0_205], %287 {strides = array<i32>} : memref<8x32xbf16, #tpu.memory_space<vmem>>, vector<2x8xbf16>,
    %289 = vector.extract_strided_slice %273 {offsets = [1, 2, 0], sizes = [1, 2, 8], strides = [1, 1, 1]} : vector<4x8x8xbf16> to vector<1x2x8xbf16>
    %290 = vector.shape_cast %289 : vector<1x2x8xbf16> to vector<2x8xbf16>
    %c2_206 = arith.constant 2 : index
    %c8_207 = arith.constant 8 : index
    %291 = vector.load %arg20[%c2_206, %c8_207] : memref<8x32xbf16, #tpu.memory_space<vmem>>, vector<2x8xbf16>
    tpu.vector_store %arg20[%c2_206, %c8_207], %290 {strides = array<i32>} : memref<8x32xbf16, #tpu.memory_space<vmem>>, vector<2x8xbf16>,
    %292 = vector.extract_strided_slice %273 {offsets = [1, 4, 0], sizes = [1, 2, 8], strides = [1, 1, 1]} : vector<4x8x8xbf16> to vector<1x2x8xbf16>
    %293 = vector.shape_cast %292 : vector<1x2x8xbf16> to vector<2x8xbf16>
    %c2_208 = arith.constant 2 : index
    %c16_209 = arith.constant 16 : index
    %294 = vector.load %arg20[%c2_208, %c16_209] : memref<8x32xbf16, #tpu.memory_space<vmem>>, vector<2x8xbf16>
    tpu.vector_store %arg20[%c2_208, %c16_209], %293 {strides = array<i32>} : memref<8x32xbf16, #tpu.memory_space<vmem>>, vector<2x8xbf16>,
    %295 = vector.extract_strided_slice %273 {offsets = [1, 6, 0], sizes = [1, 2, 8], strides = [1, 1, 1]} : vector<4x8x8xbf16> to vector<1x2x8xbf16>
    %296 = vector.shape_cast %295 : vector<1x2x8xbf16> to vector<2x8xbf16>
    %c2_210 = arith.constant 2 : index
    %c24_211 = arith.constant 24 : index
    %297 = vector.load %arg20[%c2_210, %c24_211] : memref<8x32xbf16, #tpu.memory_space<vmem>>, vector<2x8xbf16>
    tpu.vector_store %arg20[%c2_210, %c24_211], %296 {strides = array<i32>} : memref<8x32xbf16, #tpu.memory_space<vmem>>, vector<2x8xbf16>,
    %298 = vector.extract_strided_slice %273 {offsets = [2, 0, 0], sizes = [1, 2, 8], strides = [1, 1, 1]} : vector<4x8x8xbf16> to vector<1x2x8xbf16>
    %299 = vector.shape_cast %298 : vector<1x2x8xbf16> to vector<2x8xbf16>
    %c4_212 = arith.constant 4 : index
    %c0_213 = arith.constant 0 : index
    %300 = vector.load %arg20[%c4_212, %c0_213] : memref<8x32xbf16, #tpu.memory_space<vmem>>, vector<2x8xbf16>
    tpu.vector_store %arg20[%c4_212, %c0_213], %299 {strides = array<i32>} : memref<8x32xbf16, #tpu.memory_space<vmem>>, vector<2x8xbf16>,
    %301 = vector.extract_strided_slice %273 {offsets = [2, 2, 0], sizes = [1, 2, 8], strides = [1, 1, 1]} : vector<4x8x8xbf16> to vector<1x2x8xbf16>
    %302 = vector.shape_cast %301 : vector<1x2x8xbf16> to vector<2x8xbf16>
    %c4_214 = arith.constant 4 : index
    %c8_215 = arith.constant 8 : index
    %303 = vector.load %arg20[%c4_214, %c8_215] : memref<8x32xbf16, #tpu.memory_space<vmem>>, vector<2x8xbf16>
    tpu.vector_store %arg20[%c4_214, %c8_215], %302 {strides = array<i32>} : memref<8x32xbf16, #tpu.memory_space<vmem>>, vector<2x8xbf16>,
    %304 = vector.extract_strided_slice %273 {offsets = [2, 4, 0], sizes = [1, 2, 8], strides = [1, 1, 1]} : vector<4x8x8xbf16> to vector<1x2x8xbf16>
    %305 = vector.shape_cast %304 : vector<1x2x8xbf16> to vector<2x8xbf16>
    %c4_216 = arith.constant 4 : index
    %c16_217 = arith.constant 16 : index
    %306 = vector.load %arg20[%c4_216, %c16_217] : memref<8x32xbf16, #tpu.memory_space<vmem>>, vector<2x8xbf16>
    tpu.vector_store %arg20[%c4_216, %c16_217], %305 {strides = array<i32>} : memref<8x32xbf16, #tpu.memory_space<vmem>>, vector<2x8xbf16>,
    %307 = vector.extract_strided_slice %273 {offsets = [2, 6, 0], sizes = [1, 2, 8], strides = [1, 1, 1]} : vector<4x8x8xbf16> to vector<1x2x8xbf16>
    %308 = vector.shape_cast %307 : vector<1x2x8xbf16> to vector<2x8xbf16>
    %c4_218 = arith.constant 4 : index
    %c24_219 = arith.constant 24 : index
    %309 = vector.load %arg20[%c4_218, %c24_219] : memref<8x32xbf16, #tpu.memory_space<vmem>>, vector<2x8xbf16>
    tpu.vector_store %arg20[%c4_218, %c24_219], %308 {strides = array<i32>} : memref<8x32xbf16, #tpu.memory_space<vmem>>, vector<2x8xbf16>,
    %310 = vector.extract_strided_slice %273 {offsets = [3, 0, 0], sizes = [1, 2, 8], strides = [1, 1, 1]} : vector<4x8x8xbf16> to vector<1x2x8xbf16>
    %311 = vector.shape_cast %310 : vector<1x2x8xbf16> to vector<2x8xbf16>
    %c6_220 = arith.constant 6 : index
    %c0_221 = arith.constant 0 : index
    %312 = vector.load %arg20[%c6_220, %c0_221] : memref<8x32xbf16, #tpu.memory_space<vmem>>, vector<2x8xbf16>
    tpu.vector_store %arg20[%c6_220, %c0_221], %311 {strides = array<i32>} : memref<8x32xbf16, #tpu.memory_space<vmem>>, vector<2x8xbf16>,
    %313 = vector.extract_strided_slice %273 {offsets = [3, 2, 0], sizes = [1, 2, 8], strides = [1, 1, 1]} : vector<4x8x8xbf16> to vector<1x2x8xbf16>
    %314 = vector.shape_cast %313 : vector<1x2x8xbf16> to vector<2x8xbf16>
    %c6_222 = arith.constant 6 : index
    %c8_223 = arith.constant 8 : index
    %315 = vector.load %arg20[%c6_222, %c8_223] : memref<8x32xbf16, #tpu.memory_space<vmem>>, vector<2x8xbf16>
    tpu.vector_store %arg20[%c6_222, %c8_223], %314 {strides = array<i32>} : memref<8x32xbf16, #tpu.memory_space<vmem>>, vector<2x8xbf16>,
    %316 = vector.extract_strided_slice %273 {offsets = [3, 4, 0], sizes = [1, 2, 8], strides = [1, 1, 1]} : vector<4x8x8xbf16> to vector<1x2x8xbf16>
    %317 = vector.shape_cast %316 : vector<1x2x8xbf16> to vector<2x8xbf16>
    %c6_224 = arith.constant 6 : index
    %c16_225 = arith.constant 16 : index
    %318 = vector.load %arg20[%c6_224, %c16_225] : memref<8x32xbf16, #tpu.memory_space<vmem>>, vector<2x8xbf16>
    tpu.vector_store %arg20[%c6_224, %c16_225], %317 {strides = array<i32>} : memref<8x32xbf16, #tpu.memory_space<vmem>>, vector<2x8xbf16>,
    %319 = vector.extract_strided_slice %273 {offsets = [3, 6, 0], sizes = [1, 2, 8], strides = [1, 1, 1]} : vector<4x8x8xbf16> to vector<1x2x8xbf16>
    %320 = vector.shape_cast %319 : vector<1x2x8xbf16> to vector<2x8xbf16>
    %c6_226 = arith.constant 6 : index
    %c24_227 = arith.constant 24 : index
    %321 = vector.load %arg20[%c6_226, %c24_227] : memref<8x32xbf16, #tpu.memory_space<vmem>>, vector<2x8xbf16>
    tpu.vector_store %arg20[%c6_226, %c24_227], %320 {strides = array<i32>} : memref<8x32xbf16, #tpu.memory_space<vmem>>, vector<2x8xbf16>,
    %c0_228 = arith.constant 0 : index
    %c0_229 = arith.constant 0 : index
    %322 = vector.load %arg20[%c0_228, %c0_229] : memref<8x32xbf16, #tpu.memory_space<vmem>>, vector<8x32xbf16>
    %c0_230 = arith.constant 0 : index
    %c0_231 = arith.constant 0 : index
    %323 = vector.load %arg10[%c0_230, %c0_231] : memref<32x32xbf16, #tpu.memory_space<vmem>>, vector<32x32xbf16>
    %cst_232 = arith.constant dense<0.000000e+00> : vector<8x32xf32>
    %324 = tpu.matmul %322, %323, %cst_232 {dimension_numbers = #tpu.dot_dimension_numbers<[1], [0], [0], [1], [0, 0, 1, 1], [], []>} : vector<8x32xbf16>, vector<32x32xbf16>, vector<8x32xf32> -> vector<8x32xf32>
    %325 = arith.addf %1, %324 : vector<8x32xf32>
    %c0_233 = arith.constant 0 : index
    %c0_234 = arith.constant 0 : index
    %326 = vector.load %arg11[%c0_233, %c0_234] : memref<1x32xf32, #tpu.memory_space<vmem>>, vector<1x32xf32>
    %c0_235 = arith.constant 0 : index
    %c0_236 = arith.constant 0 : index
    %327 = vector.load %arg12[%c0_235, %c0_236] : memref<1x32xf32, #tpu.memory_space<vmem>>, vector<1x32xf32>
    %cst_237 = arith.constant dense<0.000000e+00> : vector<8xf32>
    %328 = vector.multi_reduction <add>, %325, %cst_237 [1] : vector<8x32xf32> to vector<8xf32>
    %329 = vector.shape_cast %328 : vector<8xf32> to vector<8x1xf32>
    %cst_238 = arith.constant 3.200000e+01 : f32
    %330 = vector.broadcast %cst_238 : f32 to vector<8x1xf32>
    %331 = arith.divf %329, %330 : vector<8x1xf32>
    %332 = vector.broadcast %331 : vector<8x1xf32> to vector<8x32xf32>
    %333 = arith.subf %325, %332 : vector<8x32xf32>
    %334 = arith.mulf %333, %333 : vector<8x32xf32>
    %cst_239 = arith.constant dense<0.000000e+00> : vector<8xf32>
    %335 = vector.multi_reduction <add>, %334, %cst_239 [1] : vector<8x32xf32> to vector<8xf32>
    %336 = vector.shape_cast %335 : vector<8xf32> to vector<8x1xf32>
    %cst_240 = arith.constant 3.200000e+01 : f32
    %337 = vector.broadcast %cst_240 : f32 to vector<8x1xf32>
    %338 = arith.divf %336, %337 : vector<8x1xf32>
    %339 = vector.broadcast %331 : vector<8x1xf32> to vector<8x32xf32>
    %340 = arith.subf %325, %339 : vector<8x32xf32>
    %cst_241 = arith.constant 9.99999974E-6 : f32
    %341 = vector.broadcast %cst_241 : f32 to vector<8x1xf32>
    %342 = arith.addf %338, %341 : vector<8x1xf32>
    %343 = math.rsqrt %342 : vector<8x1xf32>
    %344 = vector.broadcast %343 : vector<8x1xf32> to vector<8x32xf32>
    %345 = arith.mulf %340, %344 : vector<8x32xf32>
    %346 = vector.broadcast %326 : vector<1x32xf32> to vector<8x32xf32>
    %347 = arith.mulf %345, %346 : vector<8x32xf32>
    %348 = vector.broadcast %327 : vector<1x32xf32> to vector<8x32xf32>
    %349 = arith.addf %347, %348 : vector<8x32xf32>
    %350 = arith.truncf %349 : vector<8x32xf32> to vector<8x32xbf16>
    %c0_242 = arith.constant 0 : index
    %c0_243 = arith.constant 0 : index
    %351 = vector.load %arg13[%c0_242, %c0_243] : memref<32x64xbf16, #tpu.memory_space<vmem>>, vector<32x64xbf16>
    %cst_244 = arith.constant dense<0.000000e+00> : vector<8x64xf32>
    %352 = tpu.matmul %350, %351, %cst_244 {dimension_numbers = #tpu.dot_dimension_numbers<[1], [0], [0], [1], [0, 0, 1, 1], [], []>} : vector<8x32xbf16>, vector<32x64xbf16>, vector<8x64xf32> -> vector<8x64xf32>
    %c0_245 = arith.constant 0 : index
    %c0_246 = arith.constant 0 : index
    %353 = vector.load %arg14[%c0_245, %c0_246] : memref<32x64xbf16, #tpu.memory_space<vmem>>, vector<32x64xbf16>
    %cst_247 = arith.constant dense<0.000000e+00> : vector<8x64xf32>
    %354 = tpu.matmul %350, %353, %cst_247 {dimension_numbers = #tpu.dot_dimension_numbers<[1], [0], [0], [1], [0, 0, 1, 1], [], []>} : vector<8x32xbf16>, vector<32x64xbf16>, vector<8x64xf32> -> vector<8x64xf32>
    %355 = arith.negf %352 : vector<8x64xf32>
    %356 = math.exp %355 : vector<8x64xf32>
    %cst_248 = arith.constant 1.000000e+00 : f32
    %357 = vector.broadcast %cst_248 : f32 to vector<8x64xf32>
    %358 = arith.addf %357, %356 : vector<8x64xf32>
    %359 = arith.divf %357, %358 : vector<8x64xf32>
    %360 = arith.mulf %352, %359 : vector<8x64xf32>
    %361 = arith.mulf %360, %354 : vector<8x64xf32>
    %362 = arith.truncf %361 : vector<8x64xf32> to vector<8x64xbf16>
    %c0_249 = arith.constant 0 : index
    %c0_250 = arith.constant 0 : index
    %363 = vector.load %arg15[%c0_249, %c0_250] : memref<64x32xbf16, #tpu.memory_space<vmem>>, vector<64x32xbf16>
    %cst_251 = arith.constant dense<0.000000e+00> : vector<8x32xf32>
    %364 = tpu.matmul %362, %363, %cst_251 {dimension_numbers = #tpu.dot_dimension_numbers<[1], [0], [0], [1], [0, 0, 1, 1], [], []>} : vector<8x64xbf16>, vector<64x32xbf16>, vector<8x32xf32> -> vector<8x32xf32>
    %365 = arith.addf %325, %364 : vector<8x32xf32>
    %c0_252 = arith.constant 0 : index
    %c0_253 = arith.constant 0 : index
    %c0_254 = arith.constant 0 : index
    %366 = vector.load %arg16[%c0_252, %c0_253, %c0_254] : memref<1x8x32xf32, #tpu.memory_space<vmem>>, vector<1x8x32xf32>
    %367 = vector.shape_cast %366 : vector<1x8x32xf32> to vector<8x32xf32>
    %368 = vector.shape_cast %365 : vector<8x32xf32> to vector<1x8x32xf32>
    tpu.vector_store %arg16[%c0_252, %c0_253, %c0_254], %368 {strides = array<i32>} : memref<1x8x32xf32, #tpu.memory_space<vmem>>, vector<1x8x32xf32>,
    return
  }
  func.func @transform_0(%arg0: i32) -> (i32, i32, i32) {
    %c0_i32 = arith.constant 0 : i32
    %c0_i32_0 = arith.constant 0 : i32
    %c0_i32_1 = arith.constant 0 : i32
    return %arg0, %c0_i32, %c0_i32_0 : i32, i32, i32
  }
  func.func @transform_1(%arg0: i32) -> (i32, i32) {
    %c0_i32 = arith.constant 0 : i32
    %c0_i32_0 = arith.constant 0 : i32
    %c0_i32_1 = arith.constant 0 : i32
    return %c0_i32, %c0_i32_0 : i32, i32
  }
  func.func @transform_2(%arg0: i32) -> (i32, i32) {
    %c0_i32 = arith.constant 0 : i32
    %c0_i32_0 = arith.constant 0 : i32
    %c0_i32_1 = arith.constant 0 : i32
    return %c0_i32, %c0_i32_0 : i32, i32
  }
  func.func @transform_3(%arg0: i32) -> (i32, i32) {
    %c0_i32 = arith.constant 0 : i32
    %c0_i32_0 = arith.constant 0 : i32
    %c0_i32_1 = arith.constant 0 : i32
    return %c0_i32, %c0_i32_0 : i32, i32
  }
  func.func @transform_4(%arg0: i32) -> (i32, i32) {
    %c0_i32 = arith.constant 0 : i32
    %c0_i32_0 = arith.constant 0 : i32
    %c0_i32_1 = arith.constant 0 : i32
    return %c0_i32, %c0_i32_0 : i32, i32
  }
  func.func @transform_5(%arg0: i32) -> (i32, i32) {
    %c0_i32 = arith.constant 0 : i32
    %c0_i32_0 = arith.constant 0 : i32
    %c0_i32_1 = arith.constant 0 : i32
    return %c0_i32, %c0_i32_0 : i32, i32
  }
  func.func @transform_6(%arg0: i32) -> (i32, i32) {
    %c0_i32 = arith.constant 0 : i32
    %c0_i32_0 = arith.constant 0 : i32
    %c0_i32_1 = arith.constant 0 : i32
    return %c0_i32, %c0_i32_0 : i32, i32
  }
  func.func @transform_7(%arg0: i32) -> (i32, i32) {
    %c0_i32 = arith.constant 0 : i32
    %c0_i32_0 = arith.constant 0 : i32
    %c0_i32_1 = arith.constant 0 : i32
    return %c0_i32, %c0_i32_0 : i32, i32
  }
  func.func @transform_8(%arg0: i32) -> (i32, i32) {
    %c0_i32 = arith.constant 0 : i32
    %c0_i32_0 = arith.constant 0 : i32
    %c0_i32_1 = arith.constant 0 : i32
    return %c0_i32, %c0_i32_0 : i32, i32
  }
  func.func @transform_9(%arg0: i32) -> (i32, i32) {
    %c0_i32 = arith.constant 0 : i32
    %c0_i32_0 = arith.constant 0 : i32
    %c0_i32_1 = arith.constant 0 : i32
    return %c0_i32, %c0_i32_0 : i32, i32
  }
  func.func @transform_10(%arg0: i32) -> (i32, i32) {
    %c0_i32 = arith.constant 0 : i32
    %c0_i32_0 = arith.constant 0 : i32
    %c0_i32_1 = arith.constant 0 : i32
    return %c0_i32, %c0_i32_0 : i32, i32
  }
  func.func @transform_11(%arg0: i32) -> (i32, i32) {
    %c0_i32 = arith.constant 0 : i32
    %c0_i32_0 = arith.constant 0 : i32
    %c0_i32_1 = arith.constant 0 : i32
    return %c0_i32, %c0_i32_0 : i32, i32
  }
  func.func @transform_12(%arg0: i32) -> (i32, i32) {
    %c0_i32 = arith.constant 0 : i32
    %c0_i32_0 = arith.constant 0 : i32
    %c0_i32_1 = arith.constant 0 : i32
    return %c0_i32, %c0_i32_0 : i32, i32
  }
  func.func @transform_13(%arg0: i32) -> (i32, i32) {
    %c0_i32 = arith.constant 0 : i32
    %c0_i32_0 = arith.constant 0 : i32
    %c0_i32_1 = arith.constant 0 : i32
    return %c0_i32, %c0_i32_0 : i32, i32
  }
  func.func @transform_14(%arg0: i32) -> (i32, i32) {
    %c0_i32 = arith.constant 0 : i32
    %c0_i32_0 = arith.constant 0 : i32
    %c0_i32_1 = arith.constant 0 : i32
    return %c0_i32, %c0_i32_0 : i32, i32
  }
  func.func @transform_15(%arg0: i32) -> (i32, i32, i32) {
    %c0_i32 = arith.constant 0 : i32
    %c0_i32_0 = arith.constant 0 : i32
    %c0_i32_1 = arith.constant 0 : i32
    return %arg0, %c0_i32, %c0_i32_0 : i32, i32, i32
  }
}

</mosaic_0001>

<llo_original>
// kernel: tpu_custom_call.1
$region0: #{tpu_custom_call.1}
  #allocation0 [shape = 'u32[]', space=smem, size = 0x4, offset = 0x4, fixed_abs, tag = 'smem constant byte address 0x4 - core index']
  #allocation1 [shape = 'u32[144,128]{1,0:T(1,128)}', space=vmem, size = 0x12000, scoped, tag = 'internal scratch']
  #allocation2 [shape = 'bf16[4,8,8]{2,1,0:T(8,128)(2,1)}', space=vmem, size = 0x2000, scoped, tag = 'scratch operand']
  #allocation3 [shape = 'bf16[4,8,8]{2,1,0:T(8,128)(2,1)}', space=vmem, size = 0x2000, scoped, tag = 'scratch operand']
  #allocation4 [shape = 'bf16[4,8,8]{2,1,0:T(8,128)(2,1)}', space=vmem, size = 0x2000, scoped, tag = 'scratch operand']
  #allocation5 [shape = 'bf16[8,32]{1,0:T(8,128)(2,1)}', space=vmem, size = 0x800, scoped, tag = 'scratch operand']
  #allocation6 [shape = 'f32[2,8,34]{2,1,0:T(8,128)}', space=vmem, size = 0x2000, scoped, tag = 'scratch operand']
  %s0 = inlined_call_operand.vmem [shape: f32[2,8,32], index: 0, kind: input, shape index: {}]
  %s1 = inlined_call_operand.vmem [shape: f32[1,32], index: 1, kind: input, shape index: {}]
  %s2 = inlined_call_operand.hbm [shape: f32[1,32], index: 2, kind: input, shape index: {}]
  %s3 = inlined_call_operand.hbm [shape: f32[8,32], index: 3, kind: input, shape index: {}]
  %s4 = inlined_call_operand.hbm [shape: f32[8,32], index: 4, kind: input, shape index: {}]
  %s5 = inlined_call_operand.hbm [shape: f32[8,32], index: 5, kind: input, shape index: {}]
  %s6 = inlined_call_operand.vmem [shape: bf16[32,32], index: 6, kind: input, shape index: {}]
  %s7 = inlined_call_operand.vmem [shape: bf16[32,32], index: 7, kind: input, shape index: {}]
  %s8 = inlined_call_operand.hbm [shape: bf16[32,32], index: 8, kind: input, shape index: {}]
  %s9 = inlined_call_operand.vmem [shape: bf16[32,32], index: 9, kind: input, shape index: {}]
  %s10 = inlined_call_operand.hbm [shape: f32[1,32], index: 10, kind: input, shape index: {}]
  %s11 = inlined_call_operand.hbm [shape: f32[1,32], index: 11, kind: input, shape index: {}]
  %s12 = inlined_call_operand.hbm [shape: bf16[32,64], index: 12, kind: input, shape index: {}]
  %s13 = inlined_call_operand.vmem [shape: bf16[32,64], index: 13, kind: input, shape index: {}]
  %s14 = inlined_call_operand.vmem [shape: bf16[64,32], index: 14, kind: input, shape index: {}]
  %s15 = inlined_call_operand.hbm [shape: f32[2,8,32], index: 15, kind: output, shape index: {}]
  %s16 = sld [smem:[#allocation0]]
  $region125: #{tpu_custom_call.1} parent=0
    _
  %s18 = ssub.s32 1, %s16
  %s19 = scalar_select 0, %s18, %s16
  $region1: #{tpu_custom_call.1} parent=0
    #allocation7 [shape = 'u8[512]{0}', space=vmem, size = 0x400, scoped, tag = 'input window, operand 2, single buffered']
    #allocation8 [shape = 's32[2]{0}', space=sflag, size = 0x8, scoped, tag = 'scoped memory for tpu_custom_call.1']
    #allocation9 [shape = 's32[2]{0}', space=sflag, size = 0x8, scoped, tag = 'scoped memory for tpu_custom_call.1']
    #allocation10 [shape = 'u8[4096]{0}', space=vmem, size = 0x1000, scoped, tag = 'input window, operand 3, single buffered']
    #allocation11 [shape = 's32[1]{0}', space=sflag, size = 0x4, scoped, tag = 'scoped memory for tpu_custom_call.1']
    #allocation12 [shape = 'u8[4096]{0}', space=vmem, size = 0x1000, scoped, tag = 'input window, operand 4, single buffered']
    #allocation13 [shape = 'u8[4096]{0}', space=vmem, size = 0x1000, scoped, tag = 'input window, operand 5, single buffered']
    #allocation14 [shape = 's32[1]{0}', space=sflag, size = 0x4, scoped, tag = 'scoped memory for tpu_custom_call.1']
    #allocation15 [shape = 'u8[8192]{0}', space=vmem, size = 0x2000, scoped, tag = 'input window, operand 8, single buffered']
    #allocation16 [shape = 'u8[512]{0}', space=vmem, size = 0x400, scoped, tag = 'input window, operand 10, single buffered']
    #allocation17 [shape = 's32[1]{0}', space=sflag, size = 0x4, scoped, tag = 'scoped memory for tpu_custom_call.1']
    #allocation18 [shape = 'u8[512]{0}', space=vmem, size = 0x400, scoped, tag = 'input window, operand 11, single buffered']
    #allocation19 [shape = 'u8[8192]{0}', space=vmem, size = 0x2000, scoped, tag = 'input window, operand 12, single buffered']
    #allocation20 [shape = 's32[1]{0}', space=sflag, size = 0x4, scoped, tag = 'scoped memory for tpu_custom_call.1']
    #allocation21 [shape = 'u8[8192]{0}', space=vmem, size = 0x2000, scoped, tag = 'output window, operand 0']
    %20 = vsyncpa [#allocation8], 0
    %21 = vsyncpa [#allocation11], 0
    %22 = vsyncpa [#allocation14], 0
    %23 = vsyncpa [#allocation17], 0
    %24 = vsyncpa [#allocation20], 0
    %25 = vsyncpa [#allocation9], 0
    %s26 = scalar_lea.sflag [#allocation9], 1
    %27 = vsyncpa %s26, 0
    loop: start=0, step=1, limit=4
    $region2: #{tpu_custom_call.1} parent=1 // loop_pre_header
      _
    $region3: #{tpu_custom_call.1} parent=1 // loop_header
      %s29 = sphi 0, %s33
      %p30 = scmp.ge.s32.totalorder %s29, 4
      %s39 = sphi 0, %s41
      %s42 = sphi 0, %s39
      %s43 = sphi 0, %s42
      %s59 = sphi 0, %s43
      %s63 = sphi 0, %s63
      %s65 = sphi 0, %s63
      %s66 = sphi 0, %s65
      %s80 = sphi 0, %s66
      %s84 = sphi 0, %s84
      %s86 = sphi 0, %s84
      %s87 = sphi 0, %s86
      %s101 = sphi 0, %s87
      %s105 = sphi 0, %s105
      %s107 = sphi 0, %s105
      %s108 = sphi 0, %s107
      %s122 = sphi 0, %s108
      %s126 = sphi 0, %s126
      %s128 = sphi 0, %s126
      %s129 = sphi 0, %s128
      %s143 = sphi 0, %s129
      %s147 = sphi 0, %s147
      %s149 = sphi 0, %s147
      %s150 = sphi 0, %s149
      %s164 = sphi 0, %s150
      %s168 = sphi 0, %s168
      %s170 = sphi 0, %s168
      %s171 = sphi 0, %s170
      %s185 = sphi 0, %s171
      %s189 = sphi 0, %s189
      %s191 = sphi 0, %s189
      %s192 = sphi 0, %s191
      %s206 = sphi 0, %s192
      %s210 = sphi 0, %s210
      %s212 = sphi 0, %s210
      %s213 = sphi 0, %s212
      %s227 = sphi 0, %s213
      %s231 = sphi 0, %s231
      %s233 = sphi 0, %s231
      %s234 = sphi 0, %s233
      %s248 = sphi 0, %s234
      %s252 = sphi 0, %s252
      %s254 = sphi 0, %s252
      %s255 = sphi 0, %s254
      %s269 = sphi 0, %s255
      %s273 = sphi 0, %s273
      %s275 = sphi 0, %s273
      %s276 = sphi 0, %s275
      %s290 = sphi 0, %s276
      %s294 = sphi 0, %s294
      %s296 = sphi 0, %s294
      %s297 = sphi 0, %s296
      %s311 = sphi 0, %s297
      %s315 = sphi 0, %s315
      %s317 = sphi 0, %s315
      %s318 = sphi 0, %s317
      %s332 = sphi 0, %s318
      %s336 = sphi 0, %s336
      %s338 = sphi 0, %s336
      %s339 = sphi 0, %s338
      %s353 = sphi 0, %s339
      %s359 = sphi 0, %s361
      %s362 = sphi 0, %s359
      %s363 = sphi 0, %s362
      %s379 = sphi 0, %s363
    $region4: #{tpu_custom_call.1} parent=1 // loop_header_branch
      %32 = sbr.rel (%p30) target = $region8
    $region5: #{tpu_custom_call.1} parent=1 // loop_body
      %s34 = ssub.s32 %s29, 1
      %s35 = ssub.s32 %s29, 2
      %s36 = sadd.s32 %s29, 1
      %s37 = ssub.s32 %s29, %s36
      %p38 = scmp.eq.s32.totalorder %s37, 0
      %s40 = sadd.s32 %s39, 1
      %s41 = scalar_select %p38, %s39, %s40
      %p44 = pneg %p38
      %p45 = scmp.eq.s32.totalorder %s29, 1
      %p46 = por %p44, %p45
      %p47 = scmp.ne.s32.totalorder %s39, %s42
      %p48 = scmp.eq.s32.totalorder %s29, 0
      %p49 = por %p47, %p48
      %p50 = scmp.ne.s32.totalorder %s39, %s42
      %p51 = scmp.eq.s32.totalorder %s34, 1
      %p52 = por %p50, %p51
      %p53 = scmp.ne.s32.totalorder %s42, %s43
      %p54 = scmp.eq.s32.totalorder %s34, 0
      %p55 = por %p53, %p54
      %p56 = scmp.ne.s32.totalorder %s42, %s43
      %p57 = scmp.eq.s32.totalorder %s35, 1
      %p58 = por %p56, %p57
      %p60 = scmp.ne.s32.totalorder %s43, %s59
      %p61 = scmp.eq.s32.totalorder %s35, 0
      %p62 = por %p60, %p61
      %s64 = sadd.s32 %s63, 1
      %p67 = scmp.eq.s32.totalorder %s29, 1
      %p68 = scmp.ne.s32.totalorder %s63, %s65
      %p69 = scmp.eq.s32.totalorder %s29, 0
      %p70 = por %p68, %p69
      %p71 = scmp.ne.s32.totalorder %s63, %s65
      %p72 = scmp.eq.s32.totalorder %s34, 1
      %p73 = por %p71, %p72
      %p74 = scmp.ne.s32.totalorder %s65, %s66
      %p75 = scmp.eq.s32.totalorder %s34, 0
      %p76 = por %p74, %p75
      %p77 = scmp.ne.s32.totalorder %s65, %s66
      %p78 = scmp.eq.s32.totalorder %s35, 1
      %p79 = por %p77, %p78
      %p81 = scmp.ne.s32.totalorder %s66, %s80
      %p82 = scmp.eq.s32.totalorder %s35, 0
      %p83 = por %p81, %p82
      %s85 = sadd.s32 %s84, 1
      %p88 = scmp.eq.s32.totalorder %s29, 1
      %p89 = scmp.ne.s32.totalorder %s84, %s86
      %p90 = scmp.eq.s32.totalorder %s29, 0
      %p91 = por %p89, %p90
      %p92 = scmp.ne.s32.totalorder %s84, %s86
      %p93 = scmp.eq.s32.totalorder %s34, 1
      %p94 = por %p92, %p93
      %p95 = scmp.ne.s32.totalorder %s86, %s87
      %p96 = scmp.eq.s32.totalorder %s34, 0
      %p97 = por %p95, %p96
      %p98 = scmp.ne.s32.totalorder %s86, %s87
      %p99 = scmp.eq.s32.totalorder %s35, 1
      %p100 = por %p98, %p99
      %p102 = scmp.ne.s32.totalorder %s87, %s101
      %p103 = scmp.eq.s32.totalorder %s35, 0
      %p104 = por %p102, %p103
      %s106 = sadd.s32 %s105, 1
      %p109 = scmp.eq.s32.totalorder %s29, 1
      %p110 = scmp.ne.s32.totalorder %s105, %s107
      %p111 = scmp.eq.s32.totalorder %s29, 0
      %p112 = por %p110, %p111
      %p113 = scmp.ne.s32.totalorder %s105, %s107
      %p114 = scmp.eq.s32.totalorder %s34, 1
      %p115 = por %p113, %p114
      %p116 = scmp.ne.s32.totalorder %s107, %s108
      %p117 = scmp.eq.s32.totalorder %s34, 0
      %p118 = por %p116, %p117
      %p119 = scmp.ne.s32.totalorder %s107, %s108
      %p120 = scmp.eq.s32.totalorder %s35, 1
      %p121 = por %p119, %p120
      %p123 = scmp.ne.s32.totalorder %s108, %s122
      %p124 = scmp.eq.s32.totalorder %s35, 0
      %p125 = por %p123, %p124
      %s127 = sadd.s32 %s126, 1
      %p130 = scmp.eq.s32.totalorder %s29, 1
      %p131 = scmp.ne.s32.totalorder %s126, %s128
      %p132 = scmp.eq.s32.totalorder %s29, 0
      %p133 = por %p131, %p132
      %p134 = scmp.ne.s32.totalorder %s126, %s128
      %p135 = scmp.eq.s32.totalorder %s34, 1
      %p136 = por %p134, %p135
      %p137 = scmp.ne.s32.totalorder %s128, %s129
      %p138 = scmp.eq.s32.totalorder %s34, 0
      %p139 = por %p137, %p138
      %p140 = scmp.ne.s32.totalorder %s128, %s129
      %p141 = scmp.eq.s32.totalorder %s35, 1
      %p142 = por %p140, %p141
      %p144 = scmp.ne.s32.totalorder %s129, %s143
      %p145 = scmp.eq.s32.totalorder %s35, 0
      %p146 = por %p144, %p145
      %s148 = sadd.s32 %s147, 1
      %p151 = scmp.eq.s32.totalorder %s29, 1
      %p152 = scmp.ne.s32.totalorder %s147, %s149
      %p153 = scmp.eq.s32.totalorder %s29, 0
      %p154 = por %p152, %p153
      %p155 = scmp.ne.s32.totalorder %s147, %s149
      %p156 = scmp.eq.s32.totalorder %s34, 1
      %p157 = por %p155, %p156
      %p158 = scmp.ne.s32.totalorder %s149, %s150
      %p159 = scmp.eq.s32.totalorder %s34, 0
      %p160 = por %p158, %p159
      %p161 = scmp.ne.s32.totalorder %s149, %s150
      %p162 = scmp.eq.s32.totalorder %s35, 1
      %p163 = por %p161, %p162
      %p165 = scmp.ne.s32.totalorder %s150, %s164
      %p166 = scmp.eq.s32.totalorder %s35, 0
      %p167 = por %p165, %p166
      %s169 = sadd.s32 %s168, 1
      %p172 = scmp.eq.s32.totalorder %s29, 1
      %p173 = scmp.ne.s32.totalorder %s168, %s170
      %p174 = scmp.eq.s32.totalorder %s29, 0
      %p175 = por %p173, %p174
      %p176 = scmp.ne.s32.totalorder %s168, %s170
      %p177 = scmp.eq.s32.totalorder %s34, 1
      %p178 = por %p176, %p177
      %p179 = scmp.ne.s32.totalorder %s170, %s171
      %p180 = scmp.eq.s32.totalorder %s34, 0
      %p181 = por %p179, %p180
      %p182 = scmp.ne.s32.totalorder %s170, %s171
      %p183 = scmp.eq.s32.totalorder %s35, 1
      %p184 = por %p182, %p183
      %p186 = scmp.ne.s32.totalorder %s171, %s185
      %p187 = scmp.eq.s32.totalorder %s35, 0
      %p188 = por %p186, %p187
      %s190 = sadd.s32 %s189, 1
      %p193 = scmp.eq.s32.totalorder %s29, 1
      %p194 = scmp.ne.s32.totalorder %s189, %s191
      %p195 = scmp.eq.s32.totalorder %s29, 0
      %p196 = por %p194, %p195
      %p197 = scmp.ne.s32.totalorder %s189, %s191
      %p198 = scmp.eq.s32.totalorder %s34, 1
      %p199 = por %p197, %p198
      %p200 = scmp.ne.s32.totalorder %s191, %s192
      %p201 = scmp.eq.s32.totalorder %s34, 0
      %p202 = por %p200, %p201
      %p203 = scmp.ne.s32.totalorder %s191, %s192
      %p204 = scmp.eq.s32.totalorder %s35, 1
      %p205 = por %p203, %p204
      %p207 = scmp.ne.s32.totalorder %s192, %s206
      %p208 = scmp.eq.s32.totalorder %s35, 0
      %p209 = por %p207, %p208
      %s211 = sadd.s32 %s210, 1
      %p214 = scmp.eq.s32.totalorder %s29, 1
      %p215 = scmp.ne.s32.totalorder %s210, %s212
      %p216 = scmp.eq.s32.totalorder %s29, 0
      %p217 = por %p215, %p216
      %p218 = scmp.ne.s32.totalorder %s210, %s212
      %p219 = scmp.eq.s32.totalorder %s34, 1
      %p220 = por %p218, %p219
      %p221 = scmp.ne.s32.totalorder %s212, %s213
      %p222 = scmp.eq.s32.totalorder %s34, 0
      %p223 = por %p221, %p222
      %p224 = scmp.ne.s32.totalorder %s212, %s213
      %p225 = scmp.eq.s32.totalorder %s35, 1
      %p226 = por %p224, %p225
      %p228 = scmp.ne.s32.totalorder %s213, %s227
      %p229 = scmp.eq.s32.totalorder %s35, 0
      %p230 = por %p228, %p229
      %s232 = sadd.s32 %s231, 1
      %p235 = scmp.eq.s32.totalorder %s29, 1
      %p236 = scmp.ne.s32.totalorder %s231, %s233
      %p237 = scmp.eq.s32.totalorder %s29, 0
      %p238 = por %p236, %p237
      %p239 = scmp.ne.s32.totalorder %s231, %s233
      %p240 = scmp.eq.s32.totalorder %s34, 1
      %p241 = por %p239, %p240
      %p242 = scmp.ne.s32.totalorder %s233, %s234
      %p243 = scmp.eq.s32.totalorder %s34, 0
      %p244 = por %p242, %p243
      %p245 = scmp.ne.s32.totalorder %s233, %s234
      %p246 = scmp.eq.s32.totalorder %s35, 1
      %p247 = por %p245, %p246
      %p249 = scmp.ne.s32.totalorder %s234, %s248
      %p250 = scmp.eq.s32.totalorder %s35, 0
      %p251 = por %p249, %p250
      %s253 = sadd.s32 %s252, 1
      %p256 = scmp.eq.s32.totalorder %s29, 1
      %p257 = scmp.ne.s32.totalorder %s252, %s254
      %p258 = scmp.eq.s32.totalorder %s29, 0
      %p259 = por %p257, %p258
      %p260 = scmp.ne.s32.totalorder %s252, %s254
      %p261 = scmp.eq.s32.totalorder %s34, 1
      %p262 = por %p260, %p261
      %p263 = scmp.ne.s32.totalorder %s254, %s255
      %p264 = scmp.eq.s32.totalorder %s34, 0
      %p265 = por %p263, %p264
      %p266 = scmp.ne.s32.totalorder %s254, %s255
      %p267 = scmp.eq.s32.totalorder %s35, 1
      %p268 = por %p266, %p267
      %p270 = scmp.ne.s32.totalorder %s255, %s269
      %p271 = scmp.eq.s32.totalorder %s35, 0
      %p272 = por %p270, %p271
      %s274 = sadd.s32 %s273, 1
      %p277 = scmp.eq.s32.totalorder %s29, 1
      %p278 = scmp.ne.s32.totalorder %s273, %s275
      %p279 = scmp.eq.s32.totalorder %s29, 0
      %p280 = por %p278, %p279
      %p281 = scmp.ne.s32.totalorder %s273, %s275
      %p282 = scmp.eq.s32.totalorder %s34, 1
      %p283 = por %p281, %p282
      %p284 = scmp.ne.s32.totalorder %s275, %s276
      %p285 = scmp.eq.s32.totalorder %s34, 0
      %p286 = por %p284, %p285
      %p287 = scmp.ne.s32.totalorder %s275, %s276
      %p288 = scmp.eq.s32.totalorder %s35, 1
      %p289 = por %p287, %p288
      %p291 = scmp.ne.s32.totalorder %s276, %s290
      %p292 = scmp.eq.s32.totalorder %s35, 0
      %p293 = por %p291, %p292
      %s295 = sadd.s32 %s294, 1
      %p298 = scmp.eq.s32.totalorder %s29, 1
      %p299 = scmp.ne.s32.totalorder %s294, %s296
      %p300 = scmp.eq.s32.totalorder %s29, 0
      %p301 = por %p299, %p300
      %p302 = scmp.ne.s32.totalorder %s294, %s296
      %p303 = scmp.eq.s32.totalorder %s34, 1
      %p304 = por %p302, %p303
      %p305 = scmp.ne.s32.totalorder %s296, %s297
      %p306 = scmp.eq.s32.totalorder %s34, 0
      %p307 = por %p305, %p306
      %p308 = scmp.ne.s32.totalorder %s296, %s297
      %p309 = scmp.eq.s32.totalorder %s35, 1
      %p310 = por %p308, %p309
      %p312 = scmp.ne.s32.totalorder %s297, %s311
      %p313 = scmp.eq.s32.totalorder %s35, 0
      %p314 = por %p312, %p313
      %s316 = sadd.s32 %s315, 1
      %p319 = scmp.eq.s32.totalorder %s29, 1
      %p320 = scmp.ne.s32.totalorder %s315, %s317
      %p321 = scmp.eq.s32.totalorder %s29, 0
      %p322 = por %p320, %p321
      %p323 = scmp.ne.s32.totalorder %s315, %s317
      %p324 = scmp.eq.s32.totalorder %s34, 1
      %p325 = por %p323, %p324
      %p326 = scmp.ne.s32.totalorder %s317, %s318
      %p327 = scmp.eq.s32.totalorder %s34, 0
      %p328 = por %p326, %p327
      %p329 = scmp.ne.s32.totalorder %s317, %s318
      %p330 = scmp.eq.s32.totalorder %s35, 1
      %p331 = por %p329, %p330
      %p333 = scmp.ne.s32.totalorder %s318, %s332
      %p334 = scmp.eq.s32.totalorder %s35, 0
      %p335 = por %p333, %p334
      %s337 = sadd.s32 %s336, 1
      %p340 = scmp.eq.s32.totalorder %s29, 1
      %p341 = scmp.ne.s32.totalorder %s336, %s338
      %p342 = scmp.eq.s32.totalorder %s29, 0
      %p343 = por %p341, %p342
      %p344 = scmp.ne.s32.totalorder %s336, %s338
      %p345 = scmp.eq.s32.totalorder %s34, 1
      %p346 = por %p344, %p345
      %p347 = scmp.ne.s32.totalorder %s338, %s339
      %p348 = scmp.eq.s32.totalorder %s34, 0
      %p349 = por %p347, %p348
      %p350 = scmp.ne.s32.totalorder %s338, %s339
      %p351 = scmp.eq.s32.totalorder %s35, 1
      %p352 = por %p350, %p351
      %p354 = scmp.ne.s32.totalorder %s339, %s353
      %p355 = scmp.eq.s32.totalorder %s35, 0
      %p356 = por %p354, %p355
      %s357 = ssub.s32 %s29, %s36
      %p358 = scmp.eq.s32.totalorder %s357, 0
      %s360 = sadd.s32 %s359, 1
      %s361 = scalar_select %p358, %s359, %s360
      %p364 = pneg %p358
      %p365 = scmp.eq.s32.totalorder %s29, 1
      %p366 = por %p364, %p365
      %p367 = scmp.ne.s32.totalorder %s359, %s362
      %p368 = scmp.eq.s32.totalorder %s29, 0
      %p369 = por %p367, %p368
      %p370 = scmp.ne.s32.totalorder %s359, %s362
      %p371 = scmp.eq.s32.totalorder %s34, 1
      %p372 = por %p370, %p371
      %p373 = scmp.ne.s32.totalorder %s362, %s363
      %p374 = scmp.eq.s32.totalorder %s34, 0
      %p375 = por %p373, %p374
      %p376 = scmp.ne.s32.totalorder %s362, %s363
      %p377 = scmp.eq.s32.totalorder %s35, 1
      %p378 = por %p376, %p377
      %p380 = scmp.ne.s32.totalorder %s363, %s379
      %p381 = scmp.eq.s32.totalorder %s35, 0
      %p382 = por %p380, %p381
      %p383 = scmp.le.s32.totalorder 1, %s29
      %p384 = scmp.lt.s32.totalorder %s29, 3
      %p385 = pnand %p383, %p384
      %p386 = pneg %p385
      // Predicated region
      $region9: #{tpu_custom_call.1} parent=5 // pred_check
        _
      $region10: #{tpu_custom_call.1} parent=5 // pred_check_branch
        %388 = sbr.rel (%p385) target = $region12
      $region11: #{tpu_custom_call.1} parent=5 // pred_region
        %s389 = ssub.s32 %s29, 1
        // Predicated region
        $region13: #{tpu_custom_call.1} parent=11 // pred_check
          %p390 = pneg %p76
        $region14: #{tpu_custom_call.1} parent=11 // pred_check_branch
          %392 = sbr.rel (%p390) target = $region16
        $region15: #{tpu_custom_call.1} parent=11 // pred_region
          _
        $region16: #{tpu_custom_call.1} parent=11 // pred_fallthru
          _
        // Predicated region
        $region17: #{tpu_custom_call.1} parent=11 // pred_check
          %p393 = pneg %p97
        $region18: #{tpu_custom_call.1} parent=11 // pred_check_branch
          %395 = sbr.rel (%p393) target = $region20
        $region19: #{tpu_custom_call.1} parent=11 // pred_region
          %s397 = ssub.s32 16, 16
          %398 = vsyncadd [#allocation8], %s397
          %s400 = sshll.u32 [#allocation7], 4
          %s401 = int_to_ptr.vmem [resolvable:$true] %s400
          %403 = dma.hbm_to_vmem [thread:$0]  %s2, 16, %s401, [#allocation8]
        $region20: #{tpu_custom_call.1} parent=11 // pred_fallthru
          _
        // Predicated region
        $region21: #{tpu_custom_call.1} parent=11 // pred_check
          %p404 = pneg %p118
        $region22: #{tpu_custom_call.1} parent=11 // pred_check_branch
          %406 = sbr.rel (%p404) target = $region24
        $region23: #{tpu_custom_call.1} parent=11 // pred_region
          %s408 = ssub.s32 128, 128
          %409 = vsyncadd [#allocation11], %s408
          %s411 = sshll.u32 [#allocation10], 4
          %s412 = int_to_ptr.vmem [resolvable:$true] %s411
          %414 = dma.hbm_to_vmem [thread:$0]  %s3, 128, %s412, [#allocation11]
        $region24: #{tpu_custom_call.1} parent=11 // pred_fallthru
          _
        // Predicated region
        $region25: #{tpu_custom_call.1} parent=11 // pred_check
          %p415 = pneg %p139
        $region26: #{tpu_custom_call.1} parent=11 // pred_check_branch
          %417 = sbr.rel (%p415) target = $region28
        $region27: #{tpu_custom_call.1} parent=11 // pred_region
          %s419 = ssub.s32 128, 128
          %420 = vsyncadd [#allocation11], %s419
          %s422 = sshll.u32 [#allocation12], 4
          %s423 = int_to_ptr.vmem [resolvable:$true] %s422
          %425 = dma.hbm_to_vmem [thread:$0]  %s4, 128, %s423, [#allocation11]
        $region28: #{tpu_custom_call.1} parent=11 // pred_fallthru
          _
        // Predicated region
        $region29: #{tpu_custom_call.1} parent=11 // pred_check
          %p426 = pneg %p160
        $region30: #{tpu_custom_call.1} parent=11 // pred_check_branch
          %428 = sbr.rel (%p426) target = $region32
        $region31: #{tpu_custom_call.1} parent=11 // pred_region
          %s430 = ssub.s32 128, 128
          %431 = vsyncadd [#allocation14], %s430
          %s433 = sshll.u32 [#allocation13], 4
          %s434 = int_to_ptr.vmem [resolvable:$true] %s433
          %436 = dma.hbm_to_vmem [thread:$0]  %s5, 128, %s434, [#allocation14]
        $region32: #{tpu_custom_call.1} parent=11 // pred_fallthru
          _
        // Predicated region
        $region33: #{tpu_custom_call.1} parent=11 // pred_check
          %p437 = pneg %p181
        $region34: #{tpu_custom_call.1} parent=11 // pred_check_branch
          %439 = sbr.rel (%p437) target = $region36
        $region35: #{tpu_custom_call.1} parent=11 // pred_region
          _
        $region36: #{tpu_custom_call.1} parent=11 // pred_fallthru
          _
        // Predicated region
        $region37: #{tpu_custom_call.1} parent=11 // pred_check
          %p440 = pneg %p202
        $region38: #{tpu_custom_call.1} parent=11 // pred_check_branch
          %442 = sbr.rel (%p440) target = $region40
        $region39: #{tpu_custom_call.1} parent=11 // pred_region
          _
        $region40: #{tpu_custom_call.1} parent=11 // pred_fallthru
          _
        // Predicated region
        $region41: #{tpu_custom_call.1} parent=11 // pred_check
          %p443 = pneg %p223
        $region42: #{tpu_custom_call.1} parent=11 // pred_check_branch
          %445 = sbr.rel (%p443) target = $region44
        $region43: #{tpu_custom_call.1} parent=11 // pred_region
          %s447 = ssub.s32 256, 256
          %448 = vsyncadd [#allocation14], %s447
          %s449 = sshll.u32 [#allocation15], 4
          %s450 = int_to_ptr.vmem [resolvable:$true] %s449
          %455 = dma.hbm_to_vmem [thread:$0]  %s8, 256, %s450, [#allocation14], 64, 64, 4
        $region44: #{tpu_custom_call.1} parent=11 // pred_fallthru
          _
        // Predicated region
        $region45: #{tpu_custom_call.1} parent=11 // pred_check
          %p456 = pneg %p244
        $region46: #{tpu_custom_call.1} parent=11 // pred_check_branch
          %458 = sbr.rel (%p456) target = $region48
        $region47: #{tpu_custom_call.1} parent=11 // pred_region
          _
        $region48: #{tpu_custom_call.1} parent=11 // pred_fallthru
          _
        // Predicated region
        $region49: #{tpu_custom_call.1} parent=11 // pred_check
          %p459 = pneg %p265
        $region50: #{tpu_custom_call.1} parent=11 // pred_check_branch
          %461 = sbr.rel (%p459) target = $region52
        $region51: #{tpu_custom_call.1} parent=11 // pred_region
          %s463 = ssub.s32 16, 16
          %464 = vsyncadd [#allocation17], %s463
          %s466 = sshll.u32 [#allocation16], 4
          %s467 = int_to_ptr.vmem [resolvable:$true] %s466
          %469 = dma.hbm_to_vmem [thread:$0]  %s10, 16, %s467, [#allocation17]
        $region52: #{tpu_custom_call.1} parent=11 // pred_fallthru
          _
        // Predicated region
        $region53: #{tpu_custom_call.1} parent=11 // pred_check
          %p470 = pneg %p286
        $region54: #{tpu_custom_call.1} parent=11 // pred_check_branch
          %472 = sbr.rel (%p470) target = $region56
        $region55: #{tpu_custom_call.1} parent=11 // pred_region
          %s474 = ssub.s32 16, 16
          %475 = vsyncadd [#allocation17], %s474
          %s477 = sshll.u32 [#allocation18], 4
          %s478 = int_to_ptr.vmem [resolvable:$true] %s477
          %480 = dma.hbm_to_vmem [thread:$0]  %s11, 16, %s478, [#allocation17]
        $region56: #{tpu_custom_call.1} parent=11 // pred_fallthru
          _
        // Predicated region
        $region57: #{tpu_custom_call.1} parent=11 // pred_check
          %p481 = pneg %p307
        $region58: #{tpu_custom_call.1} parent=11 // pred_check_branch
          %483 = sbr.rel (%p481) target = $region60
        $region59: #{tpu_custom_call.1} parent=11 // pred_region
          %s485 = ssub.s32 256, 256
          %486 = vsyncadd [#allocation20], %s485
          %s487 = sshll.u32 [#allocation19], 4
          %s488 = int_to_ptr.vmem [resolvable:$true] %s487
          %493 = dma.hbm_to_vmem [thread:$0]  %s12, 256, %s488, [#allocation20], 64, 64, 4
        $region60: #{tpu_custom_call.1} parent=11 // pred_fallthru
          _
        // Predicated region
        $region61: #{tpu_custom_call.1} parent=11 // pred_check
          %p494 = pneg %p328
        $region62: #{tpu_custom_call.1} parent=11 // pred_check_branch
          %496 = sbr.rel (%p494) target = $region64
        $region63: #{tpu_custom_call.1} parent=11 // pred_region
          _
        $region64: #{tpu_custom_call.1} parent=11 // pred_fallthru
          _
        // Predicated region
        $region65: #{tpu_custom_call.1} parent=11 // pred_check
          %p497 = pneg %p349
        $region66: #{tpu_custom_call.1} parent=11 // pred_check_branch
          %499 = sbr.rel (%p497) target = $region68
        $region67: #{tpu_custom_call.1} parent=11 // pred_region
          _
        $region68: #{tpu_custom_call.1} parent=11 // pred_fallthru
          _
      $region12: #{tpu_custom_call.1} parent=5 // pred_fallthru
        _
      %p500 = scmp.lt.s32.totalorder %s29, 2
      // Predicated region
      $region69: #{tpu_custom_call.1} parent=5 // pred_check
        %p501 = pneg %p500
      $region70: #{tpu_custom_call.1} parent=5 // pred_check_branch
        %503 = sbr.rel (%p501) target = $region72
      $region71: #{tpu_custom_call.1} parent=5 // pred_region
        // Predicated region
        $region73: #{tpu_custom_call.1} parent=71 // pred_check
          %p504 = pneg %p49
        $region74: #{tpu_custom_call.1} parent=71 // pred_check_branch
          %506 = sbr.rel (%p504) target = $region76
        $region75: #{tpu_custom_call.1} parent=71 // pred_region
          %p507 = scmp.lt.s32.totalorder %s29, 1
          %s508 = scalar_select %p507, %s29, 1
          %s509 = smul.addr %s508, 8
          %s510 = scalar_lea.vmem %s0, %s509
        $region76: #{tpu_custom_call.1} parent=71 // pred_fallthru
          _
      $region72: #{tpu_custom_call.1} parent=5 // pred_fallthru
        _
      %p511 = scmp.le.s32.totalorder 1, %s29
      %p512 = scmp.lt.s32.totalorder %s29, 3
      %p513 = pnand %p511, %p512
      %p514 = pneg %p513
      // Predicated region
      $region77: #{tpu_custom_call.1} parent=5 // pred_check
        _
      $region78: #{tpu_custom_call.1} parent=5 // pred_check_branch
        %516 = sbr.rel (%p513) target = $region80
      $region79: #{tpu_custom_call.1} parent=5 // pred_region
        %s517 = ssub.s32 %s29, 1
        // Predicated region
        $region81: #{tpu_custom_call.1} parent=79 // pred_check
          %p518 = pneg %p97
        $region82: #{tpu_custom_call.1} parent=79 // pred_check_branch
          %520 = sbr.rel (%p518) target = $region84
        $region83: #{tpu_custom_call.1} parent=79 // pred_region
          %521 = dma.done [#allocation8], 16
        $region84: #{tpu_custom_call.1} parent=79 // pred_fallthru
          _
        // Predicated region
        $region85: #{tpu_custom_call.1} parent=79 // pred_check
          %p522 = pneg %p118
        $region86: #{tpu_custom_call.1} parent=79 // pred_check_branch
          %524 = sbr.rel (%p522) target = $region88
        $region87: #{tpu_custom_call.1} parent=79 // pred_region
          %525 = dma.done [#allocation11], 128
        $region88: #{tpu_custom_call.1} parent=79 // pred_fallthru
          _
        // Predicated region
        $region89: #{tpu_custom_call.1} parent=79 // pred_check
          %p526 = pneg %p139
        $region90: #{tpu_custom_call.1} parent=79 // pred_check_branch
          %528 = sbr.rel (%p526) target = $region92
        $region91: #{tpu_custom_call.1} parent=79 // pred_region
          %529 = dma.done [#allocation11], 128
        $region92: #{tpu_custom_call.1} parent=79 // pred_fallthru
          _
        // Predicated region
        $region93: #{tpu_custom_call.1} parent=79 // pred_check
          %p530 = pneg %p160
        $region94: #{tpu_custom_call.1} parent=79 // pred_check_branch
          %532 = sbr.rel (%p530) target = $region96
        $region95: #{tpu_custom_call.1} parent=79 // pred_region
          %533 = dma.done [#allocation14], 128
        $region96: #{tpu_custom_call.1} parent=79 // pred_fallthru
          _
        // Predicated region
        $region97: #{tpu_custom_call.1} parent=79 // pred_check
          %p534 = pneg %p223
        $region98: #{tpu_custom_call.1} parent=79 // pred_check_branch
          %536 = sbr.rel (%p534) target = $region100
        $region99: #{tpu_custom_call.1} parent=79 // pred_region
          %537 = dma.done [#allocation14], 256
        $region100: #{tpu_custom_call.1} parent=79 // pred_fallthru
          _
        // Predicated region
        $region101: #{tpu_custom_call.1} parent=79 // pred_check
          %p538 = pneg %p265
        $region102: #{tpu_custom_call.1} parent=79 // pred_check_branch
          %540 = sbr.rel (%p538) target = $region104
        $region103: #{tpu_custom_call.1} parent=79 // pred_region
          %541 = dma.done [#allocation17], 16
        $region104: #{tpu_custom_call.1} parent=79 // pred_fallthru
          _
        // Predicated region
        $region105: #{tpu_custom_call.1} parent=79 // pred_check
          %p542 = pneg %p286
        $region106: #{tpu_custom_call.1} parent=79 // pred_check_branch
          %544 = sbr.rel (%p542) target = $region108
        $region107: #{tpu_custom_call.1} parent=79 // pred_region
          %545 = dma.done [#allocation17], 16
        $region108: #{tpu_custom_call.1} parent=79 // pred_fallthru
          _
        // Predicated region
        $region109: #{tpu_custom_call.1} parent=79 // pred_check
          %p546 = pneg %p307
        $region110: #{tpu_custom_call.1} parent=79 // pred_check_branch
          %548 = sbr.rel (%p546) target = $region112
        $region111: #{tpu_custom_call.1} parent=79 // pred_region
          %549 = dma.done [#allocation20], 256
        $region112: #{tpu_custom_call.1} parent=79 // pred_fallthru
          _
        %p550 = scmp.lt.s32.totalorder %s34, 1
        %s551 = scalar_select %p550, %s34, 1
        %s552 = smul.addr %s551, 8
        %s553 = scalar_lea.vmem %s0, %s552
        %p554 = pneg %p55
        %p555 = pneg %p52
        %p556 = pneg %p76
        %p557 = pneg %p73
        %p558 = pneg %p97
        %p559 = pneg %p94
        %p560 = pneg %p118
        %p561 = pneg %p115
        %p562 = pneg %p139
        %p563 = pneg %p136
        %p564 = pneg %p160
        %p565 = pneg %p157
        %p566 = pneg %p181
        %p567 = pneg %p178
        %p568 = pneg %p202
        %p569 = pneg %p199
        %p570 = pneg %p223
        %p571 = pneg %p220
        %p572 = pneg %p244
        %p573 = pneg %p241
        %p574 = pneg %p265
        %p575 = pneg %p262
        %p576 = pneg %p286
        %p577 = pneg %p283
        %p578 = pneg %p307
        %p579 = pneg %p304
        %p580 = pneg %p328
        %p581 = pneg %p325
        %p582 = pneg %p349
        %p583 = pneg %p346
        %p584 = pneg %p375
        %p585 = pneg %p372
        %s586 = sand.u32 %s362, 1
        %s587 = scalar_lea.sflag [#allocation9], %s586
        %s588 = sand.u32 %s362, 1
        %s589 = smul.addr %s588, 8
        %s590 = scalar_lea.vmem [#allocation21], %s589
        %p591 = scmp.lt.s32.totalorder %s34, 1
        %s592 = scalar_select %p591, %s34, 1
        %s593 = smul.addr %s592, 8
        %s594 = scalar_lea.vmem %s0, %s593
        %v596 = vld [vmem:[%s594] sm:$0xff]
        %v597 = vld [vmem:[%s1] sm:$0x1]
        %v598 = vld [vmem:[#allocation7] sm:$0x1]
        %vm599 = vcmask 261120
        %v600 = vsel %vm599, %v596, 0.0
        %601 = vadd.xlane.f32.xlu0 %v600
        %v602 = vpop.xlane.xlu0 %601
        %v603 = vrcp.pop 32.0
        %v604 = vmul.f32 %v602, %v603
        %v605 = vsub.f32 %v596, %v604
        %v606 = vmul.f32 %v605, %v605
        %v607 = vsel %vm599, %v606, 0.0
        %608 = vadd.xlane.f32.xlu0 %v607
        %v609 = vpop.xlane.xlu0 %608
        %v610 = vmul.f32 %v609, %v603
        %v611 = vadd.f32 %v610, 1e-05
        %v612 = vrsqrt.pop %v611
        %v613 = vmul.f32 %v605, %v612
        %v615 = vlaneseq
        %v616 = vshrl.u32 %v615, 7
        %v617 = vsub.s32 0, %v616
        %v618 = vrot.slane %v597, %v617
        %v620 = vmul.f32 %v613, %v618
        %v622 = vlaneseq
        %v623 = vshrl.u32 %v622, 7
        %v624 = vsub.s32 0, %v623
        %v625 = vrot.slane %v598, %v624
        %v627 = vadd.f32 %v620, %v625
        %v628 = vpack.c.bf16 %v627, %v627
        %v629 = vld [vmem:[%s6] sm:$0xf]
        %v630 = vld [vmem:[%s6 + $0x4] sm:$0xf]
        %v631 = vld [vmem:[%s6 + $0x8] sm:$0xf]
        %v632 = vld [vmem:[%s6 + $0xc] sm:$0xf]
        %v637 = vunpack.c.l.b16 %v629
        %v638 = vunpack.c.l.b16 %v630
        %v639 = vunpack.c.l.b16 %v631
        %v640 = vunpack.c.l.b16 %v632
        %v641 = vpack.c.b16 %v638, %v637
        %v642 = vpack.c.b16 %v640, %v639
        %v646 = vsel %vm599, %v628, 0
        %648 = vmatprep.subr.bf16.mxu0 0
        %649 = vmatpush1.bf16.msra.mxu0 %v641
        %650 = vmatprep.subr.bf16.mxu0 0
        %651 = vmatpush1.bf16.msra.mxu0 %v642
        %652 = vmatprep.subr.bf16.mxu0 0
        %653 = vmatpush1.bf16.msra.mxu0 0
        %654 = vmatprep.subr.bf16.mxu0 0
        %655 = vmatpush1.bf16.msra.mxu0 0
        %656 = vmatprep.subr.bf16.mxu0 0
        %657 = vmatpush1.bf16.msra.mxu0 0
        %658 = vmatprep.subr.bf16.mxu0 0
        %659 = vmatpush1.bf16.msra.mxu0 0
        %660 = vmatprep.subr.bf16.mxu0 0
        %661 = vmatpush1.bf16.msra.mxu0 0
        %662 = vmatprep.subr.bf16.mxu0 0
        %663 = vmatpush1.bf16.msra.mxu0 0
        %664 = vmatprep.subr.bf16.mxu0 0
        %665 = vmatpush1.bf16.msra.mxu0 0
        %666 = vmatprep.subr.bf16.mxu0 0
        %667 = vmatpush1.bf16.msra.mxu0 0
        %668 = vmatprep.subr.bf16.mxu0 0
        %669 = vmatpush1.bf16.msra.mxu0 0
        %670 = vmatprep.subr.bf16.mxu0 0
        %671 = vmatpush1.bf16.msra.mxu0 0
        %672 = vmatprep.subr.bf16.mxu0 0
        %673 = vmatpush1.bf16.msra.mxu0 0
        %674 = vmatprep.subr.bf16.mxu0 0
        %675 = vmatpush1.bf16.msra.mxu0 0
        %676 = vmatprep.subr.bf16.mxu0 0
        %677 = vmatpush1.bf16.msra.mxu0 0
        %678 = vmatprep.subr.bf16.mxu0 0
        %679 = vmatpush1.bf16.msra.mxu0 0
        %680 = vmatprep.mubr.bf16.mxu0 0
        %681 = vmatmul.mubr.bf16.gmra.mrb[0].mxu0 %v646
        %v682 = vpop.f32.mrb[0].mxu0
        %v683 = vadd.f32 0.0, %v682
        %v684 = vpop.f32.mrb[0].mxu0
        %v685 = vpop.f32.mrb[0].mxu0
        %v686 = vpop.f32.mrb[0].mxu0
        %687 = vdwg.mxu0
        %v688 = vld [vmem:[%s7] sm:$0xf]
        %v689 = vld [vmem:[%s7 + $0x4] sm:$0xf]
        %v690 = vld [vmem:[%s7 + $0x8] sm:$0xf]
        %v691 = vld [vmem:[%s7 + $0xc] sm:$0xf]
        %v696 = vunpack.c.l.b16 %v688
        %v697 = vunpack.c.l.b16 %v689
        %v698 = vunpack.c.l.b16 %v690
        %v699 = vunpack.c.l.b16 %v691
        %v700 = vpack.c.b16 %v697, %v696
        %v701 = vpack.c.b16 %v699, %v698
        %704 = vmatprep.subr.bf16.mxu0 0
        %705 = vmatpush1.bf16.msra.mxu0 %v700
        %706 = vmatprep.subr.bf16.mxu0 0
        %707 = vmatpush1.bf16.msra.mxu0 %v701
        %708 = vmatprep.subr.bf16.mxu0 0
        %709 = vmatpush1.bf16.msra.mxu0 0
        %710 = vmatprep.subr.bf16.mxu0 0
        %711 = vmatpush1.bf16.msra.mxu0 0
        %712 = vmatprep.subr.bf16.mxu0 0
        %713 = vmatpush1.bf16.msra.mxu0 0
        %714 = vmatprep.subr.bf16.mxu0 0
        %715 = vmatpush1.bf16.msra.mxu0 0
        %716 = vmatprep.subr.bf16.mxu0 0
        %717 = vmatpush1.bf16.msra.mxu0 0
        %718 = vmatprep.subr.bf16.mxu0 0
        %719 = vmatpush1.bf16.msra.mxu0 0
        %720 = vmatprep.subr.bf16.mxu0 0
        %721 = vmatpush1.bf16.msra.mxu0 0
        %722 = vmatprep.subr.bf16.mxu0 0
        %723 = vmatpush1.bf16.msra.mxu0 0
        %724 = vmatprep.subr.bf16.mxu0 0
        %725 = vmatpush1.bf16.msra.mxu0 0
        %726 = vmatprep.subr.bf16.mxu0 0
        %727 = vmatpush1.bf16.msra.mxu0 0
        %728 = vmatprep.subr.bf16.mxu0 0
        %729 = vmatpush1.bf16.msra.mxu0 0
        %730 = vmatprep.subr.bf16.mxu0 0
        %731 = vmatpush1.bf16.msra.mxu0 0
        %732 = vmatprep.subr.bf16.mxu0 0
        %733 = vmatpush1.bf16.msra.mxu0 0
        %734 = vmatprep.subr.bf16.mxu0 0
        %735 = vmatpush1.bf16.msra.mxu0 0
        %736 = vmatprep.mubr.bf16.mxu0 0
        %737 = vmatmul.mubr.bf16.gmra.mrb[0].mxu0 %v646
        %v738 = vpop.f32.mrb[0].mxu0
        %v739 = vadd.f32 0.0, %v738
        %v740 = vpop.f32.mrb[0].mxu0
        %v741 = vpop.f32.mrb[0].mxu0
        %v742 = vpop.f32.mrb[0].mxu0
        %743 = vdwg.mxu0
        %v744 = vld [vmem:[#allocation15] sm:$0xf]
        %v745 = vld [vmem:[#allocation15 + $0x4] sm:$0xf]
        %v746 = vld [vmem:[#allocation15 + $0x8] sm:$0xf]
        %v747 = vld [vmem:[#allocation15 + $0xc] sm:$0xf]
        %v752 = vunpack.c.l.b16 %v744
        %v753 = vunpack.c.l.b16 %v745
        %v754 = vunpack.c.l.b16 %v746
        %v755 = vunpack.c.l.b16 %v747
        %v756 = vpack.c.b16 %v753, %v752
        %v757 = vpack.c.b16 %v755, %v754
        %760 = vmatprep.subr.bf16.mxu0 0
        %761 = vmatpush1.bf16.msra.mxu0 %v756
        %762 = vmatprep.subr.bf16.mxu0 0
        %763 = vmatpush1.bf16.msra.mxu0 %v757
        %764 = vmatprep.subr.bf16.mxu0 0
        %765 = vmatpush1.bf16.msra.mxu0 0
        %766 = vmatprep.subr.bf16.mxu0 0
        %767 = vmatpush1.bf16.msra.mxu0 0
        %768 = vmatprep.subr.bf16.mxu0 0
        %769 = vmatpush1.bf16.msra.mxu0 0
        %770 = vmatprep.subr.bf16.mxu0 0
        %771 = vmatpush1.bf16.msra.mxu0 0
        %772 = vmatprep.subr.bf16.mxu0 0
        %773 = vmatpush1.bf16.msra.mxu0 0
        %774 = vmatprep.subr.bf16.mxu0 0
        %775 = vmatpush1.bf16.msra.mxu0 0
        %776 = vmatprep.subr.bf16.mxu0 0
        %777 = vmatpush1.bf16.msra.mxu0 0
        %778 = vmatprep.subr.bf16.mxu0 0
        %779 = vmatpush1.bf16.msra.mxu0 0
        %780 = vmatprep.subr.bf16.mxu0 0
        %781 = vmatpush1.bf16.msra.mxu0 0
        %782 = vmatprep.subr.bf16.mxu0 0
        %783 = vmatpush1.bf16.msra.mxu0 0
        %784 = vmatprep.subr.bf16.mxu0 0
        %785 = vmatpush1.bf16.msra.mxu0 0
        %786 = vmatprep.subr.bf16.mxu0 0
        %787 = vmatpush1.bf16.msra.mxu0 0
        %788 = vmatprep.subr.bf16.mxu0 0
        %789 = vmatpush1.bf16.msra.mxu0 0
        %790 = vmatprep.subr.bf16.mxu0 0
        %791 = vmatpush1.bf16.msra.mxu0 0
        %792 = vmatprep.mubr.bf16.mxu0 0
        %793 = vmatmul.mubr.bf16.gmra.mrb[0].mxu0 %v646
        %v794 = vpop.f32.mrb[0].mxu0
        %v795 = vadd.f32 0.0, %v794
        %v796 = vpop.f32.mrb[0].mxu0
        %v797 = vpop.f32.mrb[0].mxu0
        %v798 = vpop.f32.mrb[0].mxu0
        %799 = vdwg.mxu0
        %vm800 = vcmask 277504
        %801 = vst.msk [vmem:[#allocation6] sm:$0xff] %vm800, 0.0
        %802 = vst.msk [vmem:[#allocation6 + $0x8] sm:$0xff] %vm800, 0.0
        %v803 = vld [vmem:[#allocation10] sm:$0xff]
        %v804 = vld [vmem:[#allocation12] sm:$0xff]
        %v805 = vld [vmem:[#allocation13] sm:$0xff]
        %807 = vrot.lane.b32.xlu0 %v683, 1
        %v808 = vpop.permute.xlu0 %807
        %vm810 = vcmask 269320
        %811 = vst.msk [vmem:[#allocation6] sm:$0xff] %vm810, %v808
        %v812 = vld [vmem:[#allocation6] sm:$0xff]
        %v813 = vmul.f32 %v683, %v803
        %815 = vrot.lane.b32.xlu0 %v804, 2
        %v816 = vpop.permute.xlu0 %815
        %v818 = vmul.f32 %v812, %v816
        %820 = vrot.lane.b32.xlu0 %v818, 126
        %v821 = vpop.permute.xlu0 %820
        %v823 = vadd.f32 %v813, %v821
        %v824 = vmul.f32 %v812, %v805
        %v825 = vadd.f32 %v823, %v824
        %v826 = vpack.c.bf16 %v825, %v825
        %828 = vrot.lane.b32.xlu0 %v739, 1
        %v829 = vpop.permute.xlu0 %828
        %s831 = scalar_lea.vmem [#allocation6], 8
        %832 = vst.msk [vmem:[%s831] sm:$0xff] %vm810, %v829
        %v833 = vld [vmem:[%s831] sm:$0xff]
        %v834 = vmul.f32 %v739, %v803
        %v835 = vmul.f32 %v833, %v816
        %837 = vrot.lane.b32.xlu0 %v835, 126
        %v838 = vpop.permute.xlu0 %837
        %v840 = vadd.f32 %v834, %v838
        %v841 = vmul.f32 %v833, %v805
        %v842 = vadd.f32 %v840, %v841
        %v843 = vpack.c.bf16 %v842, %v842
        %v844 = vpack.c.bf16 %v795, %v795
        %vm845 = vcmask 57344
        %846 = vst.msk [vmem:[#allocation2] sm:$0x1] %vm845, %v826
        %847 = vst.msk [vmem:[#allocation3] sm:$0x1] %vm845, %v843
        %848 = vst.msk [vmem:[#allocation4] sm:$0x1] %vm845, %v844
        %v850 = vunpack.c.l.b16 %v826
        %v851 = vpack.c.b16 %v850, %v850
        %v852 = vrot.slane %v851, 7
        %853 = vrot.lane.b32.xlu0 %v852, 120
        %v854 = vpop.permute.xlu0 %853
        %vm856 = vcmask 58369
        %857 = vst.msk [vmem:[#allocation2] sm:$0x2] %vm856, %v854
        %v859 = vunpack.c.l.b16 %v843
        %v860 = vpack.c.b16 %v859, %v859
        %v861 = vrot.slane %v860, 7
        %862 = vrot.lane.b32.xlu0 %v861, 120
        %v863 = vpop.permute.xlu0 %862
        %865 = vst.msk [vmem:[#allocation3] sm:$0x2] %vm856, %v863
        %v867 = vunpack.c.l.b16 %v844
        %v868 = vpack.c.b16 %v867, %v867
        %v869 = vrot.slane %v868, 7
        %870 = vrot.lane.b32.xlu0 %v869, 120
        %v871 = vpop.permute.xlu0 %870
        %873 = vst.msk [vmem:[#allocation4] sm:$0x2] %vm856, %v871
        %v874 = vrot.slane %v851, 6
        %875 = vrot.lane.b32.xlu0 %v874, 112
        %v876 = vpop.permute.xlu0 %875
        %vm878 = vcmask 59394
        %879 = vst.msk [vmem:[#allocation2] sm:$0x4] %vm878, %v876
        %v880 = vrot.slane %v860, 6
        %881 = vrot.lane.b32.xlu0 %v880, 112
        %v882 = vpop.permute.xlu0 %881
        %884 = vst.msk [vmem:[#allocation3] sm:$0x4] %vm878, %v882
        %v885 = vrot.slane %v868, 6
        %886 = vrot.lane.b32.xlu0 %v885, 112
        %v887 = vpop.permute.xlu0 %886
        %889 = vst.msk [vmem:[#allocation4] sm:$0x4] %vm878, %v887
        %v890 = vrot.slane %v851, 5
        %891 = vrot.lane.b32.xlu0 %v890, 104
        %v892 = vpop.permute.xlu0 %891
        %vm894 = vcmask 60419
        %895 = vst.msk [vmem:[#allocation2] sm:$0x8] %vm894, %v892
        %v896 = vrot.slane %v860, 5
        %897 = vrot.lane.b32.xlu0 %v896, 104
        %v898 = vpop.permute.xlu0 %897
        %900 = vst.msk [vmem:[#allocation3] sm:$0x8] %vm894, %v898
        %v901 = vrot.slane %v868, 5
        %902 = vrot.lane.b32.xlu0 %v901, 104
        %v903 = vpop.permute.xlu0 %902
        %905 = vst.msk [vmem:[#allocation4] sm:$0x8] %vm894, %v903
        %v906 = vrot.slane %v890, 4
        %s908 = scalar_lea.vmem [#allocation2], 4
        %909 = vst.msk [vmem:[%s908] sm:$0x1] %vm845, %v906
        %v910 = vrot.slane %v896, 4
        %s912 = scalar_lea.vmem [#allocation3], 4
        %913 = vst.msk [vmem:[%s912] sm:$0x1] %vm845, %v910
        %v914 = vrot.slane %v901, 4
        %s916 = scalar_lea.vmem [#allocation4], 4
        %917 = vst.msk [vmem:[%s916] sm:$0x1] %vm845, %v914
        %918 = vrot.lane.b32.xlu0 %v851, 120
        %v919 = vpop.permute.xlu0 %918
        %921 = vst.msk [vmem:[%s908] sm:$0x2] %vm856, %v919
        %922 = vrot.lane.b32.xlu0 %v860, 120
        %v923 = vpop.permute.xlu0 %922
        %925 = vst.msk [vmem:[%s912] sm:$0x2] %vm856, %v923
        %926 = vrot.lane.b32.xlu0 %v868, 120
        %v927 = vpop.permute.xlu0 %926
        %929 = vst.msk [vmem:[%s916] sm:$0x2] %vm856, %v927
        %930 = vrot.lane.b32.xlu0 %v852, 112
        %v931 = vpop.permute.xlu0 %930
        %933 = vst.msk [vmem:[%s908] sm:$0x4] %vm878, %v931
        %934 = vrot.lane.b32.xlu0 %v861, 112
        %v935 = vpop.permute.xlu0 %934
        %937 = vst.msk [vmem:[%s912] sm:$0x4] %vm878, %v935
        %938 = vrot.lane.b32.xlu0 %v869, 112
        %v939 = vpop.permute.xlu0 %938
        %941 = vst.msk [vmem:[%s916] sm:$0x4] %vm878, %v939
        %942 = vrot.lane.b32.xlu0 %v874, 104
        %v943 = vpop.permute.xlu0 %942
        %945 = vst.msk [vmem:[%s908] sm:$0x8] %vm894, %v943
        %946 = vrot.lane.b32.xlu0 %v880, 104
        %v947 = vpop.permute.xlu0 %946
        %949 = vst.msk [vmem:[%s912] sm:$0x8] %vm894, %v947
        %950 = vrot.lane.b32.xlu0 %v885, 104
        %v951 = vpop.permute.xlu0 %950
        %953 = vst.msk [vmem:[%s916] sm:$0x8] %vm894, %v951
        %v954 = vrot.slane %v874, 4
        %s956 = scalar_lea.vmem [#allocation2], 8
        %957 = vst.msk [vmem:[%s956] sm:$0x1] %vm845, %v954
        %v958 = vrot.slane %v880, 4
        %s960 = scalar_lea.vmem [#allocation3], 8
        %961 = vst.msk [vmem:[%s960] sm:$0x1] %vm845, %v958
        %v962 = vrot.slane %v885, 4
        %s964 = scalar_lea.vmem [#allocation4], 8
        %965 = vst.msk [vmem:[%s964] sm:$0x1] %vm845, %v962
        %966 = vrot.lane.b32.xlu0 %v906, 120
        %v967 = vpop.permute.xlu0 %966
        %969 = vst.msk [vmem:[%s956] sm:$0x2] %vm856, %v967
        %970 = vrot.lane.b32.xlu0 %v910, 120
        %v971 = vpop.permute.xlu0 %970
        %973 = vst.msk [vmem:[%s960] sm:$0x2] %vm856, %v971
        %974 = vrot.lane.b32.xlu0 %v914, 120
        %v975 = vpop.permute.xlu0 %974
        %977 = vst.msk [vmem:[%s964] sm:$0x2] %vm856, %v975
        %978 = vrot.lane.b32.xlu0 %v851, 112
        %v979 = vpop.permute.xlu0 %978
        %981 = vst.msk [vmem:[%s956] sm:$0x4] %vm878, %v979
        %982 = vrot.lane.b32.xlu0 %v860, 112
        %v983 = vpop.permute.xlu0 %982
        %985 = vst.msk [vmem:[%s960] sm:$0x4] %vm878, %v983
        %986 = vrot.lane.b32.xlu0 %v868, 112
        %v987 = vpop.permute.xlu0 %986
        %989 = vst.msk [vmem:[%s964] sm:$0x4] %vm878, %v987
        %990 = vrot.lane.b32.xlu0 %v852, 104
        %v991 = vpop.permute.xlu0 %990
        %993 = vst.msk [vmem:[%s956] sm:$0x8] %vm894, %v991
        %994 = vrot.lane.b32.xlu0 %v861, 104
        %v995 = vpop.permute.xlu0 %994
        %997 = vst.msk [vmem:[%s960] sm:$0x8] %vm894, %v995
        %998 = vrot.lane.b32.xlu0 %v869, 104
        %v999 = vpop.permute.xlu0 %998
        %1001 = vst.msk [vmem:[%s964] sm:$0x8] %vm894, %v999
        %v1002 = vrot.slane %v852, 4
        %s1004 = scalar_lea.vmem [#allocation2], 12
        %1005 = vst.msk [vmem:[%s1004] sm:$0x1] %vm845, %v1002
        %v1006 = vrot.slane %v861, 4
        %s1008 = scalar_lea.vmem [#allocation3], 12
        %1009 = vst.msk [vmem:[%s1008] sm:$0x1] %vm845, %v1006
        %v1010 = vrot.slane %v869, 4
        %s1012 = scalar_lea.vmem [#allocation4], 12
        %1013 = vst.msk [vmem:[%s1012] sm:$0x1] %vm845, %v1010
        %1014 = vrot.lane.b32.xlu0 %v954, 120
        %v1015 = vpop.permute.xlu0 %1014
        %1017 = vst.msk [vmem:[%s1004] sm:$0x2] %vm856, %v1015
        %1018 = vrot.lane.b32.xlu0 %v958, 120
        %v1019 = vpop.permute.xlu0 %1018
        %1021 = vst.msk [vmem:[%s1008] sm:$0x2] %vm856, %v1019
        %1022 = vrot.lane.b32.xlu0 %v962, 120
        %v1023 = vpop.permute.xlu0 %1022
        %1025 = vst.msk [vmem:[%s1012] sm:$0x2] %vm856, %v1023
        %1026 = vrot.lane.b32.xlu0 %v906, 112
        %v1027 = vpop.permute.xlu0 %1026
        %1029 = vst.msk [vmem:[%s1004] sm:$0x4] %vm878, %v1027
        %1030 = vrot.lane.b32.xlu0 %v910, 112
        %v1031 = vpop.permute.xlu0 %1030
        %1033 = vst.msk [vmem:[%s1008] sm:$0x4] %vm878, %v1031
        %1034 = vrot.lane.b32.xlu0 %v914, 112
        %v1035 = vpop.permute.xlu0 %1034
        %1037 = vst.msk [vmem:[%s1012] sm:$0x4] %vm878, %v1035
        %1038 = vrot.lane.b32.xlu0 %v851, 104
        %v1039 = vpop.permute.xlu0 %1038
        %1041 = vst.msk [vmem:[%s1004] sm:$0x8] %vm894, %v1039
        %1042 = vrot.lane.b32.xlu0 %v860, 104
        %v1043 = vpop.permute.xlu0 %1042
        %1045 = vst.msk [vmem:[%s1008] sm:$0x8] %vm894, %v1043
        %1046 = vrot.lane.b32.xlu0 %v868, 104
        %v1047 = vpop.permute.xlu0 %1046
        %1049 = vst.msk [vmem:[%s1012] sm:$0x8] %vm894, %v1047
        %v1050 = vld [vmem:[#allocation2] sm:$0xf]
        %v1051 = vld [vmem:[#allocation2 + $0x4] sm:$0xf]
        %v1052 = vld [vmem:[#allocation2 + $0x8] sm:$0xf]
        %v1053 = vld [vmem:[#allocation2 + $0xc] sm:$0xf]
        %v1054 = vld [vmem:[#allocation3] sm:$0xf]
        %v1055 = vld [vmem:[#allocation3 + $0x4] sm:$0xf]
        %v1056 = vld [vmem:[#allocation3 + $0x8] sm:$0xf]
        %v1057 = vld [vmem:[#allocation3 + $0xc] sm:$0xf]
        %v1058 = vld [vmem:[#allocation4] sm:$0xf]
        %v1059 = vld [vmem:[#allocation4 + $0x4] sm:$0xf]
        %v1060 = vld [vmem:[#allocation4 + $0x8] sm:$0xf]
        %v1061 = vld [vmem:[#allocation4 + $0xc] sm:$0xf]
        %vm1062 = vcmask 64512
        %v1064 = vsel %vm1062, %v1050, 0
        %v1067 = vsel %vm1062, %v1054, 0
        %1069 = vmatprep.subr.bf16.mxu0 0
        %1070 = vmatpush1.bf16.xpose.msra.mxu0 %v1067
        %1071 = vmatprep.subr.bf16.mxu0 0
        %1072 = vmatpush1.bf16.xpose.msra.mxu0 0
        %1073 = vmatprep.subr.bf16.mxu0 0
        %1074 = vmatpush1.bf16.xpose.msra.mxu0 0
        %1075 = vmatprep.subr.bf16.mxu0 0
        %1076 = vmatpush1.bf16.xpose.msra.mxu0 0
        %1077 = vmatprep.subr.bf16.mxu0 0
        %1078 = vmatpush1.bf16.xpose.msra.mxu0 0
        %1079 = vmatprep.subr.bf16.mxu0 0
        %1080 = vmatpush1.bf16.xpose.msra.mxu0 0
        %1081 = vmatprep.subr.bf16.mxu0 0
        %1082 = vmatpush1.bf16.xpose.msra.mxu0 0
        %1083 = vmatprep.subr.bf16.mxu0 0
        %1084 = vmatpush1.bf16.xpose.msra.mxu0 0
        %1085 = vmatprep.subr.bf16.mxu0 0
        %1086 = vmatpush1.bf16.xpose.msra.mxu0 0
        %1087 = vmatprep.subr.bf16.mxu0 0
        %1088 = vmatpush1.bf16.xpose.msra.mxu0 0
        %1089 = vmatprep.subr.bf16.mxu0 0
        %1090 = vmatpush1.bf16.xpose.msra.mxu0 0
        %1091 = vmatprep.subr.bf16.mxu0 0
        %1092 = vmatpush1.bf16.xpose.msra.mxu0 0
        %1093 = vmatprep.subr.bf16.mxu0 0
        %1094 = vmatpush1.bf16.xpose.msra.mxu0 0
        %1095 = vmatprep.subr.bf16.mxu0 0
        %1096 = vmatpush1.bf16.xpose.msra.mxu0 0
        %1097 = vmatprep.subr.bf16.mxu0 0
        %1098 = vmatpush1.bf16.xpose.msra.mxu0 0
        %1099 = vmatprep.subr.bf16.mxu0 0
        %1100 = vmatpush1.bf16.xpose.msra.mxu0 0
        %1101 = vmatprep.mubr.bf16.mxu0 0
        %1102 = vmatmul.mubr.bf16.gmra.mrb[0].mxu0 %v1064
        %v1103 = vpop.f32.mrb[0].mxu0
        %v1104 = vadd.f32 0.0, %v1103
        %v1105 = vpop.f32.mrb[0].mxu0
        %v1106 = vpop.f32.mrb[0].mxu0
        %v1107 = vpop.f32.mrb[0].mxu0
        %1108 = vdwg.mxu0
        %v1110 = vsel %vm1062, %v1051, 0
        %v1113 = vsel %vm1062, %v1055, 0
        %1115 = vmatprep.subr.bf16.mxu0 0
        %1116 = vmatpush1.bf16.xpose.msra.mxu0 %v1113
        %1117 = vmatprep.subr.bf16.mxu0 0
        %1118 = vmatpush1.bf16.xpose.msra.mxu0 0
        %1119 = vmatprep.subr.bf16.mxu0 0
        %1120 = vmatpush1.bf16.xpose.msra.mxu0 0
        %1121 = vmatprep.subr.bf16.mxu0 0
        %1122 = vmatpush1.bf16.xpose.msra.mxu0 0
        %1123 = vmatprep.subr.bf16.mxu0 0
        %1124 = vmatpush1.bf16.xpose.msra.mxu0 0
        %1125 = vmatprep.subr.bf16.mxu0 0
        %1126 = vmatpush1.bf16.xpose.msra.mxu0 0
        %1127 = vmatprep.subr.bf16.mxu0 0
        %1128 = vmatpush1.bf16.xpose.msra.mxu0 0
        %1129 = vmatprep.subr.bf16.mxu0 0
        %1130 = vmatpush1.bf16.xpose.msra.mxu0 0
        %1131 = vmatprep.subr.bf16.mxu0 0
        %1132 = vmatpush1.bf16.xpose.msra.mxu0 0
        %1133 = vmatprep.subr.bf16.mxu0 0
        %1134 = vmatpush1.bf16.xpose.msra.mxu0 0
        %1135 = vmatprep.subr.bf16.mxu0 0
        %1136 = vmatpush1.bf16.xpose.msra.mxu0 0
        %1137 = vmatprep.subr.bf16.mxu0 0
        %1138 = vmatpush1.bf16.xpose.msra.mxu0 0
        %1139 = vmatprep.subr.bf16.mxu0 0
        %1140 = vmatpush1.bf16.xpose.msra.mxu0 0
        %1141 = vmatprep.subr.bf16.mxu0 0
        %1142 = vmatpush1.bf16.xpose.msra.mxu0 0
        %1143 = vmatprep.subr.bf16.mxu0 0
        %1144 = vmatpush1.bf16.xpose.msra.mxu0 0
        %1145 = vmatprep.subr.bf16.mxu0 0
        %1146 = vmatpush1.bf16.xpose.msra.mxu0 0
        %1147 = vmatprep.mubr.bf16.mxu0 0
        %1148 = vmatmul.mubr.bf16.gmra.mrb[0].mxu0 %v1110
        %v1149 = vpop.f32.mrb[0].mxu0
        %v1150 = vadd.f32 0.0, %v1149
        %v1151 = vpop.f32.mrb[0].mxu0
        %v1152 = vpop.f32.mrb[0].mxu0
        %v1153 = vpop.f32.mrb[0].mxu0
        %1154 = vdwg.mxu0
        %v1156 = vsel %vm1062, %v1052, 0
        %v1159 = vsel %vm1062, %v1056, 0
        %1161 = vmatprep.subr.bf16.mxu0 0
        %1162 = vmatpush1.bf16.xpose.msra.mxu0 %v1159
        %1163 = vmatprep.subr.bf16.mxu0 0
        %1164 = vmatpush1.bf16.xpose.msra.mxu0 0
        %1165 = vmatprep.subr.bf16.mxu0 0
        %1166 = vmatpush1.bf16.xpose.msra.mxu0 0
        %1167 = vmatprep.subr.bf16.mxu0 0
        %1168 = vmatpush1.bf16.xpose.msra.mxu0 0
        %1169 = vmatprep.subr.bf16.mxu0 0
        %1170 = vmatpush1.bf16.xpose.msra.mxu0 0
        %1171 = vmatprep.subr.bf16.mxu0 0
        %1172 = vmatpush1.bf16.xpose.msra.mxu0 0
        %1173 = vmatprep.subr.bf16.mxu0 0
        %1174 = vmatpush1.bf16.xpose.msra.mxu0 0
        %1175 = vmatprep.subr.bf16.mxu0 0
        %1176 = vmatpush1.bf16.xpose.msra.mxu0 0
        %1177 = vmatprep.subr.bf16.mxu0 0
        %1178 = vmatpush1.bf16.xpose.msra.mxu0 0
        %1179 = vmatprep.subr.bf16.mxu0 0
        %1180 = vmatpush1.bf16.xpose.msra.mxu0 0
        %1181 = vmatprep.subr.bf16.mxu0 0
        %1182 = vmatpush1.bf16.xpose.msra.mxu0 0
        %1183 = vmatprep.subr.bf16.mxu0 0
        %1184 = vmatpush1.bf16.xpose.msra.mxu0 0
        %1185 = vmatprep.subr.bf16.mxu0 0
        %1186 = vmatpush1.bf16.xpose.msra.mxu0 0
        %1187 = vmatprep.subr.bf16.mxu0 0
        %1188 = vmatpush1.bf16.xpose.msra.mxu0 0
        %1189 = vmatprep.subr.bf16.mxu0 0
        %1190 = vmatpush1.bf16.xpose.msra.mxu0 0
        %1191 = vmatprep.subr.bf16.mxu0 0
        %1192 = vmatpush1.bf16.xpose.msra.mxu0 0
        %1193 = vmatprep.mubr.bf16.mxu0 0
        %1194 = vmatmul.mubr.bf16.gmra.mrb[0].mxu0 %v1156
        %v1195 = vpop.f32.mrb[0].mxu0
        %v1196 = vadd.f32 0.0, %v1195
        %v1197 = vpop.f32.mrb[0].mxu0
        %v1198 = vpop.f32.mrb[0].mxu0
        %v1199 = vpop.f32.mrb[0].mxu0
        %1200 = vdwg.mxu0
        %v1202 = vsel %vm1062, %v1053, 0
        %v1205 = vsel %vm1062, %v1057, 0
        %1207 = vmatprep.subr.bf16.mxu0 0
        %1208 = vmatpush1.bf16.xpose.msra.mxu0 %v1205
        %1209 = vmatprep.subr.bf16.mxu0 0
        %1210 = vmatpush1.bf16.xpose.msra.mxu0 0
        %1211 = vmatprep.subr.bf16.mxu0 0
        %1212 = vmatpush1.bf16.xpose.msra.mxu0 0
        %1213 = vmatprep.subr.bf16.mxu0 0
        %1214 = vmatpush1.bf16.xpose.msra.mxu0 0
        %1215 = vmatprep.subr.bf16.mxu0 0
        %1216 = vmatpush1.bf16.xpose.msra.mxu0 0
        %1217 = vmatprep.subr.bf16.mxu0 0
        %1218 = vmatpush1.bf16.xpose.msra.mxu0 0
        %1219 = vmatprep.subr.bf16.mxu0 0
        %1220 = vmatpush1.bf16.xpose.msra.mxu0 0
        %1221 = vmatprep.subr.bf16.mxu0 0
        %1222 = vmatpush1.bf16.xpose.msra.mxu0 0
        %1223 = vmatprep.subr.bf16.mxu0 0
        %1224 = vmatpush1.bf16.xpose.msra.mxu0 0
        %1225 = vmatprep.subr.bf16.mxu0 0
        %1226 = vmatpush1.bf16.xpose.msra.mxu0 0
        %1227 = vmatprep.subr.bf16.mxu0 0
        %1228 = vmatpush1.bf16.xpose.msra.mxu0 0
        %1229 = vmatprep.subr.bf16.mxu0 0
        %1230 = vmatpush1.bf16.xpose.msra.mxu0 0
        %1231 = vmatprep.subr.bf16.mxu0 0
        %1232 = vmatpush1.bf16.xpose.msra.mxu0 0
        %1233 = vmatprep.subr.bf16.mxu0 0
        %1234 = vmatpush1.bf16.xpose.msra.mxu0 0
        %1235 = vmatprep.subr.bf16.mxu0 0
        %1236 = vmatpush1.bf16.xpose.msra.mxu0 0
        %1237 = vmatprep.subr.bf16.mxu0 0
        %1238 = vmatpush1.bf16.xpose.msra.mxu0 0
        %1239 = vmatprep.mubr.bf16.mxu0 0
        %1240 = vmatmul.mubr.bf16.gmra.mrb[0].mxu0 %v1202
        %v1241 = vpop.f32.mrb[0].mxu0
        %v1242 = vadd.f32 0.0, %v1241
        %v1243 = vpop.f32.mrb[0].mxu0
        %v1244 = vpop.f32.mrb[0].mxu0
        %v1245 = vpop.f32.mrb[0].mxu0
        %1246 = vdwg.mxu0
        %v1247 = vsel %vm1062, %v1104, -inf
        %1248 = vmax.xlane.f32.xlu0 %v1247
        %v1249 = vpop.xlane.xlu0 %1248
        %v1250 = vsel %vm1062, %v1150, -inf
        %1251 = vmax.xlane.f32.xlu0 %v1250
        %v1252 = vpop.xlane.xlu0 %1251
        %v1253 = vsel %vm1062, %v1196, -inf
        %1254 = vmax.xlane.f32.xlu0 %v1253
        %v1255 = vpop.xlane.xlu0 %1254
        %v1256 = vsel %vm1062, %v1242, -inf
        %1257 = vmax.xlane.f32.xlu0 %v1256
        %v1258 = vpop.xlane.xlu0 %1257
        %v1259 = vsub.f32 %v1104, %v1249
        %v1260 = vsub.f32 %v1150, %v1252
        %v1261 = vsub.f32 %v1196, %v1255
        %v1262 = vsub.f32 %v1242, %v1258
        %v1263 = vmul.f32 %v1259, 1.442695
        %v1264 = vpow.pop %v1263
        %v1265 = vmul.f32 %v1260, 1.442695
        %v1266 = vpow.pop %v1265
        %v1267 = vmul.f32 %v1261, 1.442695
        %v1268 = vpow.pop %v1267
        %v1269 = vmul.f32 %v1262, 1.442695
        %v1270 = vpow.pop %v1269
        %v1271 = vsel %vm1062, %v1264, 0.0
        %1272 = vadd.xlane.f32.xlu0 %v1271
        %v1273 = vpop.xlane.xlu0 %1272
        %v1274 = vsel %vm1062, %v1266, 0.0
        %1275 = vadd.xlane.f32.xlu0 %v1274
        %v1276 = vpop.xlane.xlu0 %1275
        %v1277 = vsel %vm1062, %v1268, 0.0
        %1278 = vadd.xlane.f32.xlu0 %v1277
        %v1279 = vpop.xlane.xlu0 %1278
        %v1280 = vsel %vm1062, %v1270, 0.0
        %1281 = vadd.xlane.f32.xlu0 %v1280
        %v1282 = vpop.xlane.xlu0 %1281
        %v1283 = vrcp.pop %v1273
        %v1284 = vrcp.pop %v1276
        %v1285 = vrcp.pop %v1279
        %v1286 = vrcp.pop %v1282
        %v1287 = vmul.f32 %v1264, %v1283
        %v1288 = vmul.f32 %v1266, %v1284
        %v1289 = vmul.f32 %v1268, %v1285
        %v1290 = vmul.f32 %v1270, %v1286
        %v1291 = vpack.c.bf16 %v1287, %v1287
        %v1292 = vpack.c.bf16 %v1288, %v1288
        %v1293 = vpack.c.bf16 %v1289, %v1289
        %v1294 = vpack.c.bf16 %v1290, %v1290
        %v1296 = vsel %vm1062, %v1291, 0
        %vm1298 = vcmask 1043456
        %v1300 = vsel %vm1298, %v1058, 0
        %1302 = vmatprep.subr.bf16.mxu0 0
        %1303 = vmatpush1.bf16.msra.mxu0 %v1300
        %1304 = vmatprep.subr.bf16.mxu0 0
        %1305 = vmatpush1.bf16.msra.mxu0 0
        %1306 = vmatprep.subr.bf16.mxu0 0
        %1307 = vmatpush1.bf16.msra.mxu0 0
        %1308 = vmatprep.subr.bf16.mxu0 0
        %1309 = vmatpush1.bf16.msra.mxu0 0
        %1310 = vmatprep.subr.bf16.mxu0 0
        %1311 = vmatpush1.bf16.msra.mxu0 0
        %1312 = vmatprep.subr.bf16.mxu0 0
        %1313 = vmatpush1.bf16.msra.mxu0 0
        %1314 = vmatprep.subr.bf16.mxu0 0
        %1315 = vmatpush1.bf16.msra.mxu0 0
        %1316 = vmatprep.subr.bf16.mxu0 0
        %1317 = vmatpush1.bf16.msra.mxu0 0
        %1318 = vmatprep.subr.bf16.mxu0 0
        %1319 = vmatpush1.bf16.msra.mxu0 0
        %1320 = vmatprep.subr.bf16.mxu0 0
        %1321 = vmatpush1.bf16.msra.mxu0 0
        %1322 = vmatprep.subr.bf16.mxu0 0
        %1323 = vmatpush1.bf16.msra.mxu0 0
        %1324 = vmatprep.subr.bf16.mxu0 0
        %1325 = vmatpush1.bf16.msra.mxu0 0
        %1326 = vmatprep.subr.bf16.mxu0 0
        %1327 = vmatpush1.bf16.msra.mxu0 0
        %1328 = vmatprep.subr.bf16.mxu0 0
        %1329 = vmatpush1.bf16.msra.mxu0 0
        %1330 = vmatprep.subr.bf16.mxu0 0
        %1331 = vmatpush1.bf16.msra.mxu0 0
        %1332 = vmatprep.subr.bf16.mxu0 0
        %1333 = vmatpush1.bf16.msra.mxu0 0
        %1334 = vmatprep.mubr.bf16.mxu0 0
        %1335 = vmatmul.mubr.bf16.gmra.mrb[0].mxu0 %v1296
        %v1336 = vpop.f32.mrb[0].mxu0
        %v1337 = vadd.f32 0.0, %v1336
        %v1338 = vpop.f32.mrb[0].mxu0
        %v1339 = vpop.f32.mrb[0].mxu0
        %v1340 = vpop.f32.mrb[0].mxu0
        %1341 = vdwg.mxu0
        %v1343 = vsel %vm1062, %v1292, 0
        %v1346 = vsel %vm1298, %v1059, 0
        %1348 = vmatprep.subr.bf16.mxu0 0
        %1349 = vmatpush1.bf16.msra.mxu0 %v1346
        %1350 = vmatprep.subr.bf16.mxu0 0
        %1351 = vmatpush1.bf16.msra.mxu0 0
        %1352 = vmatprep.subr.bf16.mxu0 0
        %1353 = vmatpush1.bf16.msra.mxu0 0
        %1354 = vmatprep.subr.bf16.mxu0 0
        %1355 = vmatpush1.bf16.msra.mxu0 0
        %1356 = vmatprep.subr.bf16.mxu0 0
        %1357 = vmatpush1.bf16.msra.mxu0 0
        %1358 = vmatprep.subr.bf16.mxu0 0
        %1359 = vmatpush1.bf16.msra.mxu0 0
        %1360 = vmatprep.subr.bf16.mxu0 0
        %1361 = vmatpush1.bf16.msra.mxu0 0
        %1362 = vmatprep.subr.bf16.mxu0 0
        %1363 = vmatpush1.bf16.msra.mxu0 0
        %1364 = vmatprep.subr.bf16.mxu0 0
        %1365 = vmatpush1.bf16.msra.mxu0 0
        %1366 = vmatprep.subr.bf16.mxu0 0
        %1367 = vmatpush1.bf16.msra.mxu0 0
        %1368 = vmatprep.subr.bf16.mxu0 0
        %1369 = vmatpush1.bf16.msra.mxu0 0
        %1370 = vmatprep.subr.bf16.mxu0 0
        %1371 = vmatpush1.bf16.msra.mxu0 0
        %1372 = vmatprep.subr.bf16.mxu0 0
        %1373 = vmatpush1.bf16.msra.mxu0 0
        %1374 = vmatprep.subr.bf16.mxu0 0
        %1375 = vmatpush1.bf16.msra.mxu0 0
        %1376 = vmatprep.subr.bf16.mxu0 0
        %1377 = vmatpush1.bf16.msra.mxu0 0
        %1378 = vmatprep.subr.bf16.mxu0 0
        %1379 = vmatpush1.bf16.msra.mxu0 0
        %1380 = vmatprep.mubr.bf16.mxu0 0
        %1381 = vmatmul.mubr.bf16.gmra.mrb[0].mxu0 %v1343
        %v1382 = vpop.f32.mrb[0].mxu0
        %v1383 = vadd.f32 0.0, %v1382
        %v1384 = vpop.f32.mrb[0].mxu0
        %v1385 = vpop.f32.mrb[0].mxu0
        %v1386 = vpop.f32.mrb[0].mxu0
        %1387 = vdwg.mxu0
        %v1389 = vsel %vm1062, %v1293, 0
        %v1392 = vsel %vm1298, %v1060, 0
        %1394 = vmatprep.subr.bf16.mxu0 0
        %1395 = vmatpush1.bf16.msra.mxu0 %v1392
        %1396 = vmatprep.subr.bf16.mxu0 0
        %1397 = vmatpush1.bf16.msra.mxu0 0
        %1398 = vmatprep.subr.bf16.mxu0 0
        %1399 = vmatpush1.bf16.msra.mxu0 0
        %1400 = vmatprep.subr.bf16.mxu0 0
        %1401 = vmatpush1.bf16.msra.mxu0 0
        %1402 = vmatprep.subr.bf16.mxu0 0
        %1403 = vmatpush1.bf16.msra.mxu0 0
        %1404 = vmatprep.subr.bf16.mxu0 0
        %1405 = vmatpush1.bf16.msra.mxu0 0
        %1406 = vmatprep.subr.bf16.mxu0 0
        %1407 = vmatpush1.bf16.msra.mxu0 0
        %1408 = vmatprep.subr.bf16.mxu0 0
        %1409 = vmatpush1.bf16.msra.mxu0 0
        %1410 = vmatprep.subr.bf16.mxu0 0
        %1411 = vmatpush1.bf16.msra.mxu0 0
        %1412 = vmatprep.subr.bf16.mxu0 0
        %1413 = vmatpush1.bf16.msra.mxu0 0
        %1414 = vmatprep.subr.bf16.mxu0 0
        %1415 = vmatpush1.bf16.msra.mxu0 0
        %1416 = vmatprep.subr.bf16.mxu0 0
        %1417 = vmatpush1.bf16.msra.mxu0 0
        %1418 = vmatprep.subr.bf16.mxu0 0
        %1419 = vmatpush1.bf16.msra.mxu0 0
        %1420 = vmatprep.subr.bf16.mxu0 0
        %1421 = vmatpush1.bf16.msra.mxu0 0
        %1422 = vmatprep.subr.bf16.mxu0 0
        %1423 = vmatpush1.bf16.msra.mxu0 0
        %1424 = vmatprep.subr.bf16.mxu0 0
        %1425 = vmatpush1.bf16.msra.mxu0 0
        %1426 = vmatprep.mubr.bf16.mxu0 0
        %1427 = vmatmul.mubr.bf16.gmra.mrb[0].mxu0 %v1389
        %v1428 = vpop.f32.mrb[0].mxu0
        %v1429 = vadd.f32 0.0, %v1428
        %v1430 = vpop.f32.mrb[0].mxu0
        %v1431 = vpop.f32.mrb[0].mxu0
        %v1432 = vpop.f32.mrb[0].mxu0
        %1433 = vdwg.mxu0
        %v1435 = vsel %vm1062, %v1294, 0
        %v1438 = vsel %vm1298, %v1061, 0
        %1440 = vmatprep.subr.bf16.mxu0 0
        %1441 = vmatpush1.bf16.msra.mxu0 %v1438
        %1442 = vmatprep.subr.bf16.mxu0 0
        %1443 = vmatpush1.bf16.msra.mxu0 0
        %1444 = vmatprep.subr.bf16.mxu0 0
        %1445 = vmatpush1.bf16.msra.mxu0 0
        %1446 = vmatprep.subr.bf16.mxu0 0
        %1447 = vmatpush1.bf16.msra.mxu0 0
        %1448 = vmatprep.subr.bf16.mxu0 0
        %1449 = vmatpush1.bf16.msra.mxu0 0
        %1450 = vmatprep.subr.bf16.mxu0 0
        %1451 = vmatpush1.bf16.msra.mxu0 0
        %1452 = vmatprep.subr.bf16.mxu0 0
        %1453 = vmatpush1.bf16.msra.mxu0 0
        %1454 = vmatprep.subr.bf16.mxu0 0
        %1455 = vmatpush1.bf16.msra.mxu0 0
        %1456 = vmatprep.subr.bf16.mxu0 0
        %1457 = vmatpush1.bf16.msra.mxu0 0
        %1458 = vmatprep.subr.bf16.mxu0 0
        %1459 = vmatpush1.bf16.msra.mxu0 0
        %1460 = vmatprep.subr.bf16.mxu0 0
        %1461 = vmatpush1.bf16.msra.mxu0 0
        %1462 = vmatprep.subr.bf16.mxu0 0
        %1463 = vmatpush1.bf16.msra.mxu0 0
        %1464 = vmatprep.subr.bf16.mxu0 0
        %1465 = vmatpush1.bf16.msra.mxu0 0
        %1466 = vmatprep.subr.bf16.mxu0 0
        %1467 = vmatpush1.bf16.msra.mxu0 0
        %1468 = vmatprep.subr.bf16.mxu0 0
        %1469 = vmatpush1.bf16.msra.mxu0 0
        %1470 = vmatprep.subr.bf16.mxu0 0
        %1471 = vmatpush1.bf16.msra.mxu0 0
        %1472 = vmatprep.mubr.bf16.mxu0 0
        %1473 = vmatmul.mubr.bf16.gmra.mrb[0].mxu0 %v1435
        %v1474 = vpop.f32.mrb[0].mxu0
        %v1475 = vadd.f32 0.0, %v1474
        %v1476 = vpop.f32.mrb[0].mxu0
        %v1477 = vpop.f32.mrb[0].mxu0
        %v1478 = vpop.f32.mrb[0].mxu0
        %1479 = vdwg.mxu0
        %v1480 = vpack.c.bf16 %v1337, %v1337
        %v1481 = vpack.c.bf16 %v1383, %v1383
        %v1482 = vpack.c.bf16 %v1429, %v1429
        %v1483 = vpack.c.bf16 %v1475, %v1475
        %1484 = vst.msk [vmem:[#allocation5] sm:$0x1] %vm845, %v1480
        %v1486 = vunpack.c.l.b16 %v1480
        %v1487 = vpack.c.b16 %v1486, %v1486
        %v1488 = vrot.slane %v1487, 5
        %v1489 = vrot.slane %v1488, 4
        %1490 = vrot.lane.b32.xlu0 %v1489, 8
        %v1491 = vpop.permute.xlu0 %1490
        %vm1493 = vcmask 122944
        %1494 = vst.msk [vmem:[#allocation5] sm:$0x1] %vm1493, %v1491
        %v1495 = vrot.slane %v1487, 6
        %v1496 = vrot.slane %v1495, 4
        %1497 = vrot.lane.b32.xlu0 %v1496, 16
        %v1498 = vpop.permute.xlu0 %1497
        %vm1500 = vcmask 188544
        %1501 = vst.msk [vmem:[#allocation5] sm:$0x1] %vm1500, %v1498
        %v1502 = vrot.slane %v1487, 7
        %v1503 = vrot.slane %v1502, 4
        %1504 = vrot.lane.b32.xlu0 %v1503, 24
        %v1505 = vpop.permute.xlu0 %1504
        %vm1507 = vcmask 254144
        %1508 = vst.msk [vmem:[#allocation5] sm:$0x1] %vm1507, %v1505
        %v1510 = vunpack.c.l.b16 %v1481
        %v1511 = vpack.c.b16 %v1510, %v1510
        %v1512 = vrot.slane %v1511, 7
        %1514 = vst.msk [vmem:[#allocation5] sm:$0x2] %vm856, %v1512
        %1515 = vrot.lane.b32.xlu0 %v1511, 8
        %v1516 = vpop.permute.xlu0 %1515
        %vm1518 = vcmask 123969
        %1519 = vst.msk [vmem:[#allocation5] sm:$0x2] %vm1518, %v1516
        %v1520 = vrot.slane %v1511, 5
        %v1521 = vrot.slane %v1520, 4
        %1522 = vrot.lane.b32.xlu0 %v1521, 16
        %v1523 = vpop.permute.xlu0 %1522
        %vm1525 = vcmask 189569
        %1526 = vst.msk [vmem:[#allocation5] sm:$0x2] %vm1525, %v1523
        %v1527 = vrot.slane %v1511, 6
        %v1528 = vrot.slane %v1527, 4
        %1529 = vrot.lane.b32.xlu0 %v1528, 24
        %v1530 = vpop.permute.xlu0 %1529
        %vm1532 = vcmask 255169
        %1533 = vst.msk [vmem:[#allocation5] sm:$0x2] %vm1532, %v1530
        %v1535 = vunpack.c.l.b16 %v1482
        %v1536 = vpack.c.b16 %v1535, %v1535
        %v1537 = vrot.slane %v1536, 6
        %1539 = vst.msk [vmem:[#allocation5] sm:$0x4] %vm878, %v1537
        %v1540 = vrot.slane %v1536, 7
        %1541 = vrot.lane.b32.xlu0 %v1540, 8
        %v1542 = vpop.permute.xlu0 %1541
        %vm1544 = vcmask 124994
        %1545 = vst.msk [vmem:[#allocation5] sm:$0x4] %vm1544, %v1542
        %1546 = vrot.lane.b32.xlu0 %v1536, 16
        %v1547 = vpop.permute.xlu0 %1546
        %vm1549 = vcmask 190594
        %1550 = vst.msk [vmem:[#allocation5] sm:$0x4] %vm1549, %v1547
        %v1551 = vrot.slane %v1536, 5
        %v1552 = vrot.slane %v1551, 4
        %1553 = vrot.lane.b32.xlu0 %v1552, 24
        %v1554 = vpop.permute.xlu0 %1553
        %vm1556 = vcmask 256194
        %1557 = vst.msk [vmem:[#allocation5] sm:$0x4] %vm1556, %v1554
        %v1559 = vunpack.c.l.b16 %v1483
        %v1560 = vpack.c.b16 %v1559, %v1559
        %v1561 = vrot.slane %v1560, 5
        %1563 = vst.msk [vmem:[#allocation5] sm:$0x8] %vm894, %v1561
        %v1564 = vrot.slane %v1560, 6
        %1565 = vrot.lane.b32.xlu0 %v1564, 8
        %v1566 = vpop.permute.xlu0 %1565
        %vm1568 = vcmask 126019
        %1569 = vst.msk [vmem:[#allocation5] sm:$0x8] %vm1568, %v1566
        %v1570 = vrot.slane %v1560, 7
        %1571 = vrot.lane.b32.xlu0 %v1570, 16
        %v1572 = vpop.permute.xlu0 %1571
        %vm1574 = vcmask 191619
        %1575 = vst.msk [vmem:[#allocation5] sm:$0x8] %vm1574, %v1572
        %1576 = vrot.lane.b32.xlu0 %v1560, 24
        %v1577 = vpop.permute.xlu0 %1576
        %vm1579 = vcmask 257219
        %1580 = vst.msk [vmem:[#allocation5] sm:$0x8] %vm1579, %v1577
        %v1581 = vld [vmem:[#allocation5] sm:$0xf]
        %v1582 = vld [vmem:[%s9] sm:$0xf]
        %v1583 = vld [vmem:[%s9 + $0x4] sm:$0xf]
        %v1584 = vld [vmem:[%s9 + $0x8] sm:$0xf]
        %v1585 = vld [vmem:[%s9 + $0xc] sm:$0xf]
        %v1590 = vunpack.c.l.b16 %v1582
        %v1591 = vunpack.c.l.b16 %v1583
        %v1592 = vunpack.c.l.b16 %v1584
        %v1593 = vunpack.c.l.b16 %v1585
        %v1594 = vpack.c.b16 %v1591, %v1590
        %v1595 = vpack.c.b16 %v1593, %v1592
        %v1599 = vsel %vm599, %v1581, 0
        %1601 = vmatprep.subr.bf16.mxu0 0
        %1602 = vmatpush1.bf16.msra.mxu0 %v1594
        %1603 = vmatprep.subr.bf16.mxu0 0
        %1604 = vmatpush1.bf16.msra.mxu0 %v1595
        %1605 = vmatprep.subr.bf16.mxu0 0
        %1606 = vmatpush1.bf16.msra.mxu0 0
        %1607 = vmatprep.subr.bf16.mxu0 0
        %1608 = vmatpush1.bf16.msra.mxu0 0
        %1609 = vmatprep.subr.bf16.mxu0 0
        %1610 = vmatpush1.bf16.msra.mxu0 0
        %1611 = vmatprep.subr.bf16.mxu0 0
        %1612 = vmatpush1.bf16.msra.mxu0 0
        %1613 = vmatprep.subr.bf16.mxu0 0
        %1614 = vmatpush1.bf16.msra.mxu0 0
        %1615 = vmatprep.subr.bf16.mxu0 0
        %1616 = vmatpush1.bf16.msra.mxu0 0
        %1617 = vmatprep.subr.bf16.mxu0 0
        %1618 = vmatpush1.bf16.msra.mxu0 0
        %1619 = vmatprep.subr.bf16.mxu0 0
        %1620 = vmatpush1.bf16.msra.mxu0 0
        %1621 = vmatprep.subr.bf16.mxu0 0
        %1622 = vmatpush1.bf16.msra.mxu0 0
        %1623 = vmatprep.subr.bf16.mxu0 0
        %1624 = vmatpush1.bf16.msra.mxu0 0
        %1625 = vmatprep.subr.bf16.mxu0 0
        %1626 = vmatpush1.bf16.msra.mxu0 0
        %1627 = vmatprep.subr.bf16.mxu0 0
        %1628 = vmatpush1.bf16.msra.mxu0 0
        %1629 = vmatprep.subr.bf16.mxu0 0
        %1630 = vmatpush1.bf16.msra.mxu0 0
        %1631 = vmatprep.subr.bf16.mxu0 0
        %1632 = vmatpush1.bf16.msra.mxu0 0
        %1633 = vmatprep.mubr.bf16.mxu0 0
        %1634 = vmatmul.mubr.bf16.gmra.mrb[0].mxu0 %v1599
        %v1635 = vpop.f32.mrb[0].mxu0
        %v1636 = vadd.f32 0.0, %v1635
        %v1637 = vpop.f32.mrb[0].mxu0
        %v1638 = vpop.f32.mrb[0].mxu0
        %v1639 = vpop.f32.mrb[0].mxu0
        %1640 = vdwg.mxu0
        %v1641 = vadd.f32 %v596, %v1636
        %v1642 = vld [vmem:[#allocation16] sm:$0x1]
        %v1643 = vld [vmem:[#allocation18] sm:$0x1]
        %v1644 = vsel %vm599, %v1641, 0.0
        %1645 = vadd.xlane.f32.xlu0 %v1644
        %v1646 = vpop.xlane.xlu0 %1645
        %v1647 = vmul.f32 %v1646, %v603
        %v1648 = vsub.f32 %v1641, %v1647
        %v1649 = vmul.f32 %v1648, %v1648
        %v1650 = vsel %vm599, %v1649, 0.0
        %1651 = vadd.xlane.f32.xlu0 %v1650
        %v1652 = vpop.xlane.xlu0 %1651
        %v1653 = vmul.f32 %v1652, %v603
        %v1654 = vadd.f32 %v1653, 1e-05
        %v1655 = vrsqrt.pop %v1654
        %v1656 = vmul.f32 %v1648, %v1655
        %v1658 = vlaneseq
        %v1659 = vshrl.u32 %v1658, 7
        %v1660 = vsub.s32 0, %v1659
        %v1661 = vrot.slane %v1642, %v1660
        %v1663 = vmul.f32 %v1656, %v1661
        %v1665 = vlaneseq
        %v1666 = vshrl.u32 %v1665, 7
        %v1667 = vsub.s32 0, %v1666
        %v1668 = vrot.slane %v1643, %v1667
        %v1670 = vadd.f32 %v1663, %v1668
        %v1671 = vpack.c.bf16 %v1670, %v1670
        %v1672 = vld [vmem:[#allocation19] sm:$0xf]
        %v1673 = vld [vmem:[#allocation19 + $0x4] sm:$0xf]
        %v1674 = vld [vmem:[#allocation19 + $0x8] sm:$0xf]
        %v1675 = vld [vmem:[#allocation19 + $0xc] sm:$0xf]
        %v1680 = vunpack.c.l.b16 %v1672
        %v1681 = vunpack.c.l.b16 %v1673
        %v1682 = vunpack.c.l.b16 %v1674
        %v1683 = vunpack.c.l.b16 %v1675
        %v1684 = vpack.c.b16 %v1681, %v1680
        %v1685 = vpack.c.b16 %v1683, %v1682
        %v1689 = vsel %vm599, %v1671, 0
        %1691 = vmatprep.subr.bf16.mxu0 0
        %1692 = vmatpush1.bf16.msra.mxu0 %v1684
        %1693 = vmatprep.subr.bf16.mxu0 0
        %1694 = vmatpush1.bf16.msra.mxu0 %v1685
        %1695 = vmatprep.subr.bf16.mxu0 0
        %1696 = vmatpush1.bf16.msra.mxu0 0
        %1697 = vmatprep.subr.bf16.mxu0 0
        %1698 = vmatpush1.bf16.msra.mxu0 0
        %1699 = vmatprep.subr.bf16.mxu0 0
        %1700 = vmatpush1.bf16.msra.mxu0 0
        %1701 = vmatprep.subr.bf16.mxu0 0
        %1702 = vmatpush1.bf16.msra.mxu0 0
        %1703 = vmatprep.subr.bf16.mxu0 0
        %1704 = vmatpush1.bf16.msra.mxu0 0
        %1705 = vmatprep.subr.bf16.mxu0 0
        %1706 = vmatpush1.bf16.msra.mxu0 0
        %1707 = vmatprep.subr.bf16.mxu0 0
        %1708 = vmatpush1.bf16.msra.mxu0 0
        %1709 = vmatprep.subr.bf16.mxu0 0
        %1710 = vmatpush1.bf16.msra.mxu0 0
        %1711 = vmatprep.subr.bf16.mxu0 0
        %1712 = vmatpush1.bf16.msra.mxu0 0
        %1713 = vmatprep.subr.bf16.mxu0 0
        %1714 = vmatpush1.bf16.msra.mxu0 0
        %1715 = vmatprep.subr.bf16.mxu0 0
        %1716 = vmatpush1.bf16.msra.mxu0 0
        %1717 = vmatprep.subr.bf16.mxu0 0
        %1718 = vmatpush1.bf16.msra.mxu0 0
        %1719 = vmatprep.subr.bf16.mxu0 0
        %1720 = vmatpush1.bf16.msra.mxu0 0
        %1721 = vmatprep.subr.bf16.mxu0 0
        %1722 = vmatpush1.bf16.msra.mxu0 0
        %1723 = vmatprep.mubr.bf16.mxu0 0
        %1724 = vmatmul.mubr.bf16.gmra.mrb[0].mxu0 %v1689
        %v1725 = vpop.f32.mrb[0].mxu0
        %v1726 = vadd.f32 0.0, %v1725
        %v1727 = vpop.f32.mrb[0].mxu0
        %v1728 = vpop.f32.mrb[0].mxu0
        %v1729 = vpop.f32.mrb[0].mxu0
        %1730 = vdwg.mxu0
        %v1731 = vld [vmem:[%s13] sm:$0xf]
        %v1732 = vld [vmem:[%s13 + $0x4] sm:$0xf]
        %v1733 = vld [vmem:[%s13 + $0x8] sm:$0xf]
        %v1734 = vld [vmem:[%s13 + $0xc] sm:$0xf]
        %v1739 = vunpack.c.l.b16 %v1731
        %v1740 = vunpack.c.l.b16 %v1732
        %v1741 = vunpack.c.l.b16 %v1733
        %v1742 = vunpack.c.l.b16 %v1734
        %v1743 = vpack.c.b16 %v1740, %v1739
        %v1744 = vpack.c.b16 %v1742, %v1741
        %1747 = vmatprep.subr.bf16.mxu0 0
        %1748 = vmatpush1.bf16.msra.mxu0 %v1743
        %1749 = vmatprep.subr.bf16.mxu0 0
        %1750 = vmatpush1.bf16.msra.mxu0 %v1744
        %1751 = vmatprep.subr.bf16.mxu0 0
        %1752 = vmatpush1.bf16.msra.mxu0 0
        %1753 = vmatprep.subr.bf16.mxu0 0
        %1754 = vmatpush1.bf16.msra.mxu0 0
        %1755 = vmatprep.subr.bf16.mxu0 0
        %1756 = vmatpush1.bf16.msra.mxu0 0
        %1757 = vmatprep.subr.bf16.mxu0 0
        %1758 = vmatpush1.bf16.msra.mxu0 0
        %1759 = vmatprep.subr.bf16.mxu0 0
        %1760 = vmatpush1.bf16.msra.mxu0 0
        %1761 = vmatprep.subr.bf16.mxu0 0
        %1762 = vmatpush1.bf16.msra.mxu0 0
        %1763 = vmatprep.subr.bf16.mxu0 0
        %1764 = vmatpush1.bf16.msra.mxu0 0
        %1765 = vmatprep.subr.bf16.mxu0 0
        %1766 = vmatpush1.bf16.msra.mxu0 0
        %1767 = vmatprep.subr.bf16.mxu0 0
        %1768 = vmatpush1.bf16.msra.mxu0 0
        %1769 = vmatprep.subr.bf16.mxu0 0
        %1770 = vmatpush1.bf16.msra.mxu0 0
        %1771 = vmatprep.subr.bf16.mxu0 0
        %1772 = vmatpush1.bf16.msra.mxu0 0
        %1773 = vmatprep.subr.bf16.mxu0 0
        %1774 = vmatpush1.bf16.msra.mxu0 0
        %1775 = vmatprep.subr.bf16.mxu0 0
        %1776 = vmatpush1.bf16.msra.mxu0 0
        %1777 = vmatprep.subr.bf16.mxu0 0
        %1778 = vmatpush1.bf16.msra.mxu0 0
        %1779 = vmatprep.mubr.bf16.mxu0 0
        %1780 = vmatmul.mubr.bf16.gmra.mrb[0].mxu0 %v1689
        %v1781 = vpop.f32.mrb[0].mxu0
        %v1782 = vadd.f32 0.0, %v1781
        %v1783 = vpop.f32.mrb[0].mxu0
        %v1784 = vpop.f32.mrb[0].mxu0
        %v1785 = vpop.f32.mrb[0].mxu0
        %1786 = vdwg.mxu0
        %v1787 = vxor.u32 %v1726, 2147483648
        %v1788 = vmul.f32 %v1787, 1.442695
        %v1789 = vpow.pop %v1788
        %v1790 = vadd.f32 %v1789, 1.0
        %v1791 = vrcp.pop %v1790
        %v1792 = vmul.f32 1.0, %v1791
        %v1793 = vmul.f32 %v1726, %v1792
        %v1794 = vmul.f32 %v1793, %v1782
        %v1795 = vpack.c.bf16 %v1794, %v1794
        %v1796 = vld [vmem:[%s14] sm:$0xf]
        %v1797 = vld [vmem:[%s14 + $0x4] sm:$0xf]
        %v1798 = vld [vmem:[%s14 + $0x8] sm:$0xf]
        %v1799 = vld [vmem:[%s14 + $0xc] sm:$0xf]
        %v1800 = vld [vmem:[%s14 + $0x10] sm:$0xf]
        %v1801 = vld [vmem:[%s14 + $0x14] sm:$0xf]
        %v1802 = vld [vmem:[%s14 + $0x18] sm:$0xf]
        %v1803 = vld [vmem:[%s14 + $0x1c] sm:$0xf]
        %v1812 = vunpack.c.l.b16 %v1796
        %v1813 = vunpack.c.l.b16 %v1797
        %v1814 = vunpack.c.l.b16 %v1798
        %v1815 = vunpack.c.l.b16 %v1799
        %v1816 = vunpack.c.l.b16 %v1800
        %v1817 = vunpack.c.l.b16 %v1801
        %v1818 = vunpack.c.l.b16 %v1802
        %v1819 = vunpack.c.l.b16 %v1803
        %v1820 = vpack.c.b16 %v1813, %v1812
        %v1821 = vpack.c.b16 %v1815, %v1814
        %v1822 = vpack.c.b16 %v1817, %v1816
        %v1823 = vpack.c.b16 %v1819, %v1818
        %vm1828 = vcmask 523264
        %v1830 = vsel %vm1828, %v1795, 0
        %1832 = vmatprep.subr.bf16.mxu0 0
        %1833 = vmatpush1.bf16.msra.mxu0 %v1820
        %1834 = vmatprep.subr.bf16.mxu0 0
        %1835 = vmatpush1.bf16.msra.mxu0 %v1821
        %1836 = vmatprep.subr.bf16.mxu0 0
        %1837 = vmatpush1.bf16.msra.mxu0 %v1822
        %1838 = vmatprep.subr.bf16.mxu0 0
        %1839 = vmatpush1.bf16.msra.mxu0 %v1823
        %1840 = vmatprep.subr.bf16.mxu0 0
        %1841 = vmatpush1.bf16.msra.mxu0 0
        %1842 = vmatprep.subr.bf16.mxu0 0
        %1843 = vmatpush1.bf16.msra.mxu0 0
        %1844 = vmatprep.subr.bf16.mxu0 0
        %1845 = vmatpush1.bf16.msra.mxu0 0
        %1846 = vmatprep.subr.bf16.mxu0 0
        %1847 = vmatpush1.bf16.msra.mxu0 0
        %1848 = vmatprep.subr.bf16.mxu0 0
        %1849 = vmatpush1.bf16.msra.mxu0 0
        %1850 = vmatprep.subr.bf16.mxu0 0
        %1851 = vmatpush1.bf16.msra.mxu0 0
        %1852 = vmatprep.subr.bf16.mxu0 0
        %1853 = vmatpush1.bf16.msra.mxu0 0
        %1854 = vmatprep.subr.bf16.mxu0 0
        %1855 = vmatpush1.bf16.msra.mxu0 0
        %1856 = vmatprep.subr.bf16.mxu0 0
        %1857 = vmatpush1.bf16.msra.mxu0 0
        %1858 = vmatprep.subr.bf16.mxu0 0
        %1859 = vmatpush1.bf16.msra.mxu0 0
        %1860 = vmatprep.subr.bf16.mxu0 0
        %1861 = vmatpush1.bf16.msra.mxu0 0
        %1862 = vmatprep.subr.bf16.mxu0 0
        %1863 = vmatpush1.bf16.msra.mxu0 0
        %1864 = vmatprep.mubr.bf16.mxu0 0
        %1865 = vmatmul.mubr.bf16.gmra.mrb[0].mxu0 %v1830
        %v1866 = vpop.f32.mrb[0].mxu0
        %v1867 = vadd.f32 0.0, %v1866
        %v1868 = vpop.f32.mrb[0].mxu0
        %v1869 = vpop.f32.mrb[0].mxu0
        %v1870 = vpop.f32.mrb[0].mxu0
        %1871 = vdwg.mxu0
        %v1872 = vadd.f32 %v1641, %v1867
        %1873 = vst.msk [vmem:[%s590] sm:$0xff] %vm599, %v1872
        %s1874 = sand.u32 %s362, 1
        %s1875 = scalar_lea.sflag [#allocation9], %s1874
        %s1876 = sand.u32 %s362, 1
        %s1877 = smul.addr %s1876, 8
        %s1878 = scalar_lea.vmem [#allocation21], %s1877
        // Predicated region
        $region113: #{tpu_custom_call.1} parent=79 // pred_check
          %p1879 = pneg %p372
        $region114: #{tpu_custom_call.1} parent=79 // pred_check_branch
          %1881 = sbr.rel (%p1879) target = $region116
        $region115: #{tpu_custom_call.1} parent=79 // pred_region
          %s1883 = ssub.s32 128, 128
          %1884 = vsyncadd %s1875, %s1883
          %s1885 = smul.addr %s34, 128
          %s1886 = scalar_lea.hbm %s15, %s1885
          %s1888 = sshll.u32 %s1878, 4
          %s1889 = int_to_ptr.vmem [resolvable:$true] %s1888
          %1891 = dma.vmem_to_hbm [thread:$0]  %s1889, 128, %s1886, %s1875
        $region116: #{tpu_custom_call.1} parent=79 // pred_fallthru
          _
      $region80: #{tpu_custom_call.1} parent=5 // pred_fallthru
        _
      %p1892 = scmp.le.s32.totalorder 2, %s29
      // Predicated region
      $region117: #{tpu_custom_call.1} parent=5 // pred_check
        %p1893 = pneg %p1892
      $region118: #{tpu_custom_call.1} parent=5 // pred_check_branch
        %1895 = sbr.rel (%p1893) target = $region120
      $region119: #{tpu_custom_call.1} parent=5 // pred_region
        %s1896 = ssub.s32 %s29, 2
        // Predicated region
        $region121: #{tpu_custom_call.1} parent=119 // pred_check
          %p1897 = pneg %p378
        $region122: #{tpu_custom_call.1} parent=119 // pred_check_branch
          %1899 = sbr.rel (%p1897) target = $region124
        $region123: #{tpu_custom_call.1} parent=119 // pred_region
          %s1900 = sand.u32 %s363, 1
          %s1901 = scalar_lea.sflag [#allocation9], %s1900
          %s1902 = sand.u32 %s363, 1
          %s1903 = smul.addr %s1902, 8
          %s1904 = scalar_lea.vmem [#allocation21], %s1903
          %1905 = dma.done %s1901, 128
        $region124: #{tpu_custom_call.1} parent=119 // pred_fallthru
          _
      $region120: #{tpu_custom_call.1} parent=5 // pred_fallthru
        _
    $region6: #{tpu_custom_call.1} parent=1 // loop_footer
      %s33 = sadd.s32 1, %s29
    $region7: #{tpu_custom_call.1} parent=1 // loop_footer_branch
      %28 = sbr.rel target = $region3
    $region8: #{tpu_custom_call.1} parent=1 // loop_exit
      _
    %1906 = vsyncpa [#allocation8], 1
    %s1907 = scalar_lea.sflag [#allocation8], 1
    %1908 = vsyncpa %s1907, 1
    %1909 = vsyncpa [#allocation11], 1
    %1910 = vsyncpa [#allocation14], 1
    %1911 = vsyncpa [#allocation17], 1
    %1912 = vsyncpa [#allocation20], 1
    %1913 = vsyncpa [#allocation9], 1
    %s1914 = scalar_lea.sflag [#allocation9], 1
    %1915 = vsyncpa %s1914, 1

</llo_original>
